<compile_context>
chip_gen: v5e
topology: v5e:2x2
jax: 0.10.0
libtpu: 0.0.40
codegen_flags: <defaults>
</compile_context>

<pallas_src>
import functools

import jax
import jax.numpy as jnp
from jax import lax
from jax.experimental import pallas as pl
from jax.experimental.pallas import tpu as pltpu

# Small, self-consistent config (same structure as the PyTorch `config`).
CONFIG = {
    "embedding_size": 32,
    "hidden_size": 32,
    "n_layers": 2,
    "dropout": 0.2,            # identity at inference
    "bidirectional": True,
    "linear": [32, 32, 2],
    "sentence_length": 8,
}
N_TOKEN = 50
BATCH = 2


def _sigmoid(x):
    return 1.0 / (1.0 + jnp.exp(-x))


def _lstm_cell(gx_t, h, c, w_hh, H):
    """One LSTM step.  gx_t = x_t @ W_ih^T + (b_ih + b_hh), shape (B, 4H).
    PyTorch gate order (i, f, g, o)."""
    gates = gx_t + jnp.dot(h, w_hh, preferred_element_type=jnp.float32)
    i = _sigmoid(gates[:, 0:H])
    f = _sigmoid(gates[:, H:2 * H])
    g = jnp.tanh(gates[:, 2 * H:3 * H])
    o = _sigmoid(gates[:, 3 * H:4 * H])
    c_new = f * c + i * g
    h_new = o * jnp.tanh(c_new)
    return h_new, c_new


def _bidir_lstm_layer(x_tm, wih_ref, whh_ref, b_ref, T, B, H):
    """One bidirectional LSTM layer, fully unrolled over time.

    x_tm:    (T*B, D_in) time-major input (row index = t*B + b)
    wih_ref: (2, D_in, 4H)  whh_ref: (2, H, 4H)  b_ref: (2, 1, 4H)
             (index 0 = forward direction, 1 = backward direction)
    Returns a list of T arrays of shape (B, 2H): [h_fwd(t) ; h_bwd(t)].
    """
    # Hoisted input projection + bias: one MXU op per direction for all steps.
    gx_f = jnp.dot(x_tm, wih_ref[0], preferred_element_type=jnp.float32) + b_ref[0]
    gx_b = jnp.dot(x_tm, wih_ref[1], preferred_element_type=jnp.float32) + b_ref[1]
    whh_f = whh_ref[0]
    whh_b = whh_ref[1]

    zeros = jnp.zeros((B, H), jnp.float32)
    h_f, c_f = zeros, zeros
    h_b, c_b = zeros, zeros
    outs_f = [None] * T
    outs_b = [None] * T
    # Both directions advance in the same fully-unrolled loop; all slices are
    # static so states stay in vregs (no per-step masked stores).
    for s in range(T):
        tf = s
        tb = T - 1 - s
        h_f, c_f = _lstm_cell(gx_f[tf * B:(tf + 1) * B, :], h_f, c_f, whh_f, H)
        h_b, c_b = _lstm_cell(gx_b[tb * B:(tb + 1) * B, :], h_b, c_b, whh_b, H)
        outs_f[tf] = h_f
        outs_b[tb] = h_b
    return [jnp.concatenate([outs_f[t], outs_b[t]], axis=1) for t in range(T)]


def _make_fused_kernel(n_token, E, H, T, B, n_layers, n_mlp):
    """Build the single fused forward-pass kernel (arg layout fixed by config)."""

    def kernel(*refs):
        ids_ref, embed_ref = refs[0], refs[1]
        lstm_refs = refs[2:2 + 3 * n_layers]
        mlp_refs = refs[2 + 3 * n_layers:2 + 3 * n_layers + 2 * n_mlp]
        out_ref = refs[-1]

        # ---- embedding lookup as a one-hot matmul (ids are time-major) ----
        ids = ids_ref[...]                                           # (T*B, 1) int32
        tok = lax.broadcasted_iota(jnp.int32, (T * B, n_token), 1)
        onehot = (tok == ids).astype(jnp.float32)                    # (T*B, V)
        seq = jnp.dot(onehot, embed_ref[...],
                      preferred_element_type=jnp.float32)            # (T*B, E)
        # word_dropout: identity at inference.

        # ---- stacked bidirectional LSTM ----
        outs = None
        for layer in range(n_layers):
            wih_ref, whh_ref, b_ref = lstm_refs[3 * layer:3 * layer + 3]
            outs = _bidir_lstm_layer(seq, wih_ref, whh_ref, b_ref, T, B, H)
            if layer + 1 < n_layers:
                seq = jnp.concatenate(outs, axis=0)                  # (T*B, 2H)
            # inter-layer LSTM dropout: identity at inference.
        # sent_dropout: identity at inference.

        # ---- flatten: batch-first (B, T, 2H).reshape(B, -1) ordering ----
        h = jnp.concatenate(outs, axis=1)                            # (B, T*2H)

        # ---- MLP head: (Linear -> ReLU -> Dropout[identity]) x n_mlp ----
        # NOTE: reference applies ReLU after EVERY Linear, including the last.
        for m in range(n_mlp):
            w_ref, bm_ref = mlp_refs[2 * m], mlp_refs[2 * m + 1]
            h = jnp.dot(h, w_ref[...], preferred_element_type=jnp.float32) + bm_ref[...]
            h = jnp.maximum(h, 0.0)

        # ---- softmax(dim=1) with approx reciprocal on the EUP ----
        mx = jnp.max(h, axis=1, keepdims=True)
        e = jnp.exp(h - mx)
        denom = jnp.sum(e, axis=1, keepdims=True)
        out_ref[...] = e * pl.reciprocal(denom, approx=True)

    return kernel


# ---------------------------------------------------------------------------
# Parameter construction (deterministic, PyTorch-default-style uniform init).
# Per-direction weights are stacked on a leading axis: (2, ...), 0=fwd, 1=bwd.
# ---------------------------------------------------------------------------
def _uniform(key, shape, bound):
    return jax.random.uniform(key, shape, jnp.float32, -bound, bound)


def init_params(key, n_token, config):
    E = config["embedding_size"]
    H = config["hidden_size"]
    T = config["sentence_length"]
    n_layers = config["n_layers"]
    n_mlp = len(config["linear"])

    n_keys = 1 + 8 * n_layers + 2 * n_mlp
    keys = iter(jax.random.split(key, n_keys))

    params = {"embed": jax.random.normal(next(keys), (n_token, E), jnp.float32)}

    bound = 1.0 / (H ** 0.5)
    lstm_layers = []
    for layer in range(n_layers):
        d_in = E if layer == 0 else 2 * H
        wih_dirs, whh_dirs, b_dirs = [], [], []
        for _ in range(2):                                   # fwd, bwd
            w_ih = _uniform(next(keys), (4 * H, d_in), bound)
            w_hh = _uniform(next(keys), (4 * H, H), bound)
            b_ih = _uniform(next(keys), (4 * H,), bound)
            b_hh = _uniform(next(keys), (4 * H,), bound)
            wih_dirs.append(w_ih.T)                          # (d_in, 4H)
            whh_dirs.append(w_hh.T)                          # (H, 4H)
            b_dirs.append((b_ih + b_hh).reshape(1, 4 * H))   # (1, 4H)
        lstm_layers.append({
            "w_ih_t": jnp.stack(wih_dirs),                   # (2, d_in, 4H)
            "w_hh_t": jnp.stack(whh_dirs),                   # (2, H, 4H)
            "b": jnp.stack(b_dirs),                          # (2, 1, 4H)
        })
    params["lstm"] = lstm_layers

    dims = [2 * H * T] + config["linear"]
    for idx, (d_in, d_out) in enumerate(zip(dims[:-1], dims[1:]), start=1):
        kb = 1.0 / (d_in ** 0.5)
        params[f"w{idx}"] = _uniform(next(keys), (d_in, d_out), kb)
        params[f"b{idx}"] = _uniform(next(keys), (1, d_out), kb)
    return params


# ---------------------------------------------------------------------------
# Full forward pass (matches RNNModel.forward, eval mode) — single pallas_call.
# ---------------------------------------------------------------------------
def rnn_model_forward(x_tokens, params, config):
    B, T = x_tokens.shape
    E = config["embedding_size"]
    H = config["hidden_size"]
    n_layers = config["n_layers"]
    n_mlp = len(config["linear"])
    out_dim = config["linear"][-1]
    n_token = params["embed"].shape[0]

    # Time-major flat token ids (row = t*B + b) so the in-kernel one-hot gather
    # already produces the layout the recurrence consumes.
    ids_tm = jnp.transpose(x_tokens).reshape(T * B, 1).astype(jnp.int32)

    inputs = [ids_tm, params["embed"]]
    for layer in range(n_layers):
        lw = params["lstm"][layer]
        inputs += [lw["w_ih_t"], lw["w_hh_t"], lw["b"]]
    for idx in range(1, n_mlp + 1):
        inputs += [params[f"w{idx}"], params[f"b{idx}"]]

    kernel = _make_fused_kernel(n_token, E, H, T, B, n_layers, n_mlp)
    vmem = pl.BlockSpec(memory_space=pltpu.MemorySpace.VMEM)
    # TODO(synk): before scaling beyond toy sizes, add a B-/T-tiled grid with
    # BlockSpecs (and split the two directions across v7x's 2 TensorCores);
    # at these sizes everything fits in <1 MiB of VMEM on all generations.
    out = pl.pallas_call(
        kernel,
        out_shape=jax.ShapeDtypeStruct((B, out_dim), jnp.float32),
        in_specs=[vmem] * len(inputs),
        out_specs=vmem,
        compiler_params=pltpu.CompilerParams(vmem_limit_bytes=32 * 1024 * 1024),
    )(*inputs)
    return out.reshape(-1, out_dim)          # == torch .view(-1, 2)


if __name__ == "__main__":
    key = jax.random.PRNGKey(0)
    k_param, k_tok = jax.random.split(key)
    params = init_params(k_param, N_TOKEN, CONFIG)

    T = CONFIG["sentence_length"]
    x = jax.random.randint(k_tok, (BATCH, T), 0, N_TOKEN, dtype=jnp.int32)

    fwd = jax.jit(functools.partial(rnn_model_forward, config=CONFIG))
    out = jax.block_until_ready(fwd(x, params))

    assert out.shape == (BATCH, 2), out.shape
    assert bool(jnp.all(jnp.isfinite(out)))
    assert bool(jnp.all((out >= 0.0) & (out <= 1.0 + 1e-3)))
    # approx reciprocal in the softmax epilogue -> slightly relaxed tolerance.
    assert jnp.allclose(jnp.sum(out, axis=1), 1.0, atol=5e-3)
    print("KERNEL_OK")
</pallas_src>

<mosaic_0001>
module attributes {stable_mosaic.version = 11 : i64} {
  func.func @kernel(%arg0: memref<16x1xi32, #tpu.memory_space<vmem>>, %arg1: memref<50x32xf32, #tpu.memory_space<vmem>>, %arg2: memref<2x32x128xf32, #tpu.memory_space<vmem>>, %arg3: memref<2x32x128xf32, #tpu.memory_space<vmem>>, %arg4: memref<2x1x128xf32, #tpu.memory_space<vmem>>, %arg5: memref<2x64x128xf32, #tpu.memory_space<vmem>>, %arg6: memref<2x32x128xf32, #tpu.memory_space<vmem>>, %arg7: memref<2x1x128xf32, #tpu.memory_space<vmem>>, %arg8: memref<512x32xf32, #tpu.memory_space<vmem>>, %arg9: memref<1x32xf32, #tpu.memory_space<vmem>>, %arg10: memref<32x32xf32, #tpu.memory_space<vmem>>, %arg11: memref<1x32xf32, #tpu.memory_space<vmem>>, %arg12: memref<32x2xf32, #tpu.memory_space<vmem>>, %arg13: memref<1x2xf32, #tpu.memory_space<vmem>>, %arg14: memref<2x2xf32, #tpu.memory_space<vmem>>) attributes {dimension_semantics = [], scalar_prefetch = 0 : i64, scratch_operands = 0 : i64, tpu.core_type = #tpu.core_type<tc>} {
    %c0 = arith.constant 0 : index
    %c0_0 = arith.constant 0 : index
    %0 = vector.load %arg0[%c0, %c0_0] : memref<16x1xi32, #tpu.memory_space<vmem>>, vector<16x1xi32>
    %1 = tpu.iota {dimensions = array<i32: 1>} : vector<16x50xi32>
    %2 = vector.broadcast %0 : vector<16x1xi32> to vector<16x50xi32>
    %3 = arith.cmpi eq, %1, %2 : vector<16x50xi32>
    %4 = arith.extui %3 : vector<16x50xi1> to vector<16x50xi32>
    %5 = arith.sitofp %4 : vector<16x50xi32> to vector<16x50xf32>
    %c0_1 = arith.constant 0 : index
    %c0_2 = arith.constant 0 : index
    %6 = vector.load %arg1[%c0_1, %c0_2] : memref<50x32xf32, #tpu.memory_space<vmem>>, vector<50x32xf32>
    %cst = arith.constant dense<0.000000e+00> : vector<16x32xf32>
    %7 = tpu.matmul %5, %6, %cst {dimension_numbers = #tpu.dot_dimension_numbers<[1], [0], [0], [1], [0, 0, 1, 1], [], []>} : vector<16x50xf32>, vector<50x32xf32>, vector<16x32xf32> -> vector<16x32xf32>
    %c0_3 = arith.constant 0 : index
    %c0_4 = arith.constant 0 : index
    %c0_5 = arith.constant 0 : index
    %8 = vector.load %arg2[%c0_3, %c0_4, %c0_5] : memref<2x32x128xf32, #tpu.memory_space<vmem>>, vector<1x32x128xf32>
    %9 = vector.shape_cast %8 : vector<1x32x128xf32> to vector<32x128xf32>
    %cst_6 = arith.constant dense<0.000000e+00> : vector<16x128xf32>
    %10 = tpu.matmul %7, %9, %cst_6 {dimension_numbers = #tpu.dot_dimension_numbers<[1], [0], [0], [1], [0, 0, 1, 1], [], []>} : vector<16x32xf32>, vector<32x128xf32>, vector<16x128xf32> -> vector<16x128xf32>
    %c0_7 = arith.constant 0 : index
    %c0_8 = arith.constant 0 : index
    %c0_9 = arith.constant 0 : index
    %11 = vector.load %arg4[%c0_7, %c0_8, %c0_9] : memref<2x1x128xf32, #tpu.memory_space<vmem>>, vector<1x1x128xf32>
    %12 = vector.shape_cast %11 : vector<1x1x128xf32> to vector<1x128xf32>
    %13 = vector.broadcast %12 : vector<1x128xf32> to vector<16x128xf32>
    %14 = arith.addf %10, %13 : vector<16x128xf32>
    %c1 = arith.constant 1 : index
    %c0_10 = arith.constant 0 : index
    %c0_11 = arith.constant 0 : index
    %15 = vector.load %arg2[%c1, %c0_10, %c0_11] : memref<2x32x128xf32, #tpu.memory_space<vmem>>, vector<1x32x128xf32>
    %16 = vector.shape_cast %15 : vector<1x32x128xf32> to vector<32x128xf32>
    %cst_12 = arith.constant dense<0.000000e+00> : vector<16x128xf32>
    %17 = tpu.matmul %7, %16, %cst_12 {dimension_numbers = #tpu.dot_dimension_numbers<[1], [0], [0], [1], [0, 0, 1, 1], [], []>} : vector<16x32xf32>, vector<32x128xf32>, vector<16x128xf32> -> vector<16x128xf32>
    %c1_13 = arith.constant 1 : index
    %c0_14 = arith.constant 0 : index
    %c0_15 = arith.constant 0 : index
    %18 = vector.load %arg4[%c1_13, %c0_14, %c0_15] : memref<2x1x128xf32, #tpu.memory_space<vmem>>, vector<1x1x128xf32>
    %19 = vector.shape_cast %18 : vector<1x1x128xf32> to vector<1x128xf32>
    %20 = vector.broadcast %19 : vector<1x128xf32> to vector<16x128xf32>
    %21 = arith.addf %17, %20 : vector<16x128xf32>
    %c0_16 = arith.constant 0 : index
    %c0_17 = arith.constant 0 : index
    %c0_18 = arith.constant 0 : index
    %22 = vector.load %arg3[%c0_16, %c0_17, %c0_18] : memref<2x32x128xf32, #tpu.memory_space<vmem>>, vector<1x32x128xf32>
    %23 = vector.shape_cast %22 : vector<1x32x128xf32> to vector<32x128xf32>
    %c1_19 = arith.constant 1 : index
    %c0_20 = arith.constant 0 : index
    %c0_21 = arith.constant 0 : index
    %24 = vector.load %arg3[%c1_19, %c0_20, %c0_21] : memref<2x32x128xf32, #tpu.memory_space<vmem>>, vector<1x32x128xf32>
    %25 = vector.shape_cast %24 : vector<1x32x128xf32> to vector<32x128xf32>
    %cst_22 = arith.constant 0.000000e+00 : f32
    %26 = vector.broadcast %cst_22 : f32 to vector<2x32xf32>
    %27 = vector.extract_strided_slice %14 {offsets = [0, 0], sizes = [2, 128], strides = [1, 1]} : vector<16x128xf32> to vector<2x128xf32>
    %cst_23 = arith.constant dense<0.000000e+00> : vector<2x128xf32>
    %28 = tpu.matmul %26, %23, %cst_23 {dimension_numbers = #tpu.dot_dimension_numbers<[1], [0], [0], [1], [0, 0, 1, 1], [], []>} : vector<2x32xf32>, vector<32x128xf32>, vector<2x128xf32> -> vector<2x128xf32>
    %29 = arith.addf %27, %28 : vector<2x128xf32>
    %30 = vector.extract_strided_slice %29 {offsets = [0, 0], sizes = [2, 32], strides = [1, 1]} : vector<2x128xf32> to vector<2x32xf32>
    %cst_24 = arith.constant 0.000000e+00 : f32
    %31 = vector.broadcast %cst_24 : f32 to vector<2x32xf32>
    %32 = arith.subf %31, %30 : vector<2x32xf32>
    %33 = math.exp %32 : vector<2x32xf32>
    %cst_25 = arith.constant 1.000000e+00 : f32
    %34 = vector.broadcast %cst_25 : f32 to vector<2x32xf32>
    %35 = arith.addf %34, %33 : vector<2x32xf32>
    %cst_26 = arith.constant 1.000000e+00 : f32
    %36 = vector.broadcast %cst_26 : f32 to vector<2x32xf32>
    %37 = arith.divf %36, %35 : vector<2x32xf32>
    %38 = vector.extract_strided_slice %29 {offsets = [0, 32], sizes = [2, 32], strides = [1, 1]} : vector<2x128xf32> to vector<2x32xf32>
    %cst_27 = arith.constant 0.000000e+00 : f32
    %39 = vector.broadcast %cst_27 : f32 to vector<2x32xf32>
    %40 = arith.subf %39, %38 : vector<2x32xf32>
    %41 = math.exp %40 : vector<2x32xf32>
    %cst_28 = arith.constant 1.000000e+00 : f32
    %42 = vector.broadcast %cst_28 : f32 to vector<2x32xf32>
    %43 = arith.addf %42, %41 : vector<2x32xf32>
    %cst_29 = arith.constant 1.000000e+00 : f32
    %44 = vector.broadcast %cst_29 : f32 to vector<2x32xf32>
    %45 = arith.divf %44, %43 : vector<2x32xf32>
    %46 = vector.extract_strided_slice %29 {offsets = [0, 64], sizes = [2, 32], strides = [1, 1]} : vector<2x128xf32> to vector<2x32xf32>
    %47 = math.tanh %46 : vector<2x32xf32>
    %48 = vector.extract_strided_slice %29 {offsets = [0, 96], sizes = [2, 32], strides = [1, 1]} : vector<2x128xf32> to vector<2x32xf32>
    %cst_30 = arith.constant 0.000000e+00 : f32
    %49 = vector.broadcast %cst_30 : f32 to vector<2x32xf32>
    %50 = arith.subf %49, %48 : vector<2x32xf32>
    %51 = math.exp %50 : vector<2x32xf32>
    %cst_31 = arith.constant 1.000000e+00 : f32
    %52 = vector.broadcast %cst_31 : f32 to vector<2x32xf32>
    %53 = arith.addf %52, %51 : vector<2x32xf32>
    %cst_32 = arith.constant 1.000000e+00 : f32
    %54 = vector.broadcast %cst_32 : f32 to vector<2x32xf32>
    %55 = arith.divf %54, %53 : vector<2x32xf32>
    %56 = arith.mulf %45, %26 : vector<2x32xf32>
    %57 = arith.mulf %37, %47 : vector<2x32xf32>
    %58 = arith.addf %56, %57 : vector<2x32xf32>
    %59 = math.tanh %58 : vector<2x32xf32>
    %60 = arith.mulf %55, %59 : vector<2x32xf32>
    %61 = vector.extract_strided_slice %21 {offsets = [14, 0], sizes = [2, 128], strides = [1, 1]} : vector<16x128xf32> to vector<2x128xf32>
    %cst_33 = arith.constant dense<0.000000e+00> : vector<2x128xf32>
    %62 = tpu.matmul %26, %25, %cst_33 {dimension_numbers = #tpu.dot_dimension_numbers<[1], [0], [0], [1], [0, 0, 1, 1], [], []>} : vector<2x32xf32>, vector<32x128xf32>, vector<2x128xf32> -> vector<2x128xf32>
    %63 = arith.addf %61, %62 : vector<2x128xf32>
    %64 = vector.extract_strided_slice %63 {offsets = [0, 0], sizes = [2, 32], strides = [1, 1]} : vector<2x128xf32> to vector<2x32xf32>
    %cst_34 = arith.constant 0.000000e+00 : f32
    %65 = vector.broadcast %cst_34 : f32 to vector<2x32xf32>
    %66 = arith.subf %65, %64 : vector<2x32xf32>
    %67 = math.exp %66 : vector<2x32xf32>
    %cst_35 = arith.constant 1.000000e+00 : f32
    %68 = vector.broadcast %cst_35 : f32 to vector<2x32xf32>
    %69 = arith.addf %68, %67 : vector<2x32xf32>
    %cst_36 = arith.constant 1.000000e+00 : f32
    %70 = vector.broadcast %cst_36 : f32 to vector<2x32xf32>
    %71 = arith.divf %70, %69 : vector<2x32xf32>
    %72 = vector.extract_strided_slice %63 {offsets = [0, 32], sizes = [2, 32], strides = [1, 1]} : vector<2x128xf32> to vector<2x32xf32>
    %cst_37 = arith.constant 0.000000e+00 : f32
    %73 = vector.broadcast %cst_37 : f32 to vector<2x32xf32>
    %74 = arith.subf %73, %72 : vector<2x32xf32>
    %75 = math.exp %74 : vector<2x32xf32>
    %cst_38 = arith.constant 1.000000e+00 : f32
    %76 = vector.broadcast %cst_38 : f32 to vector<2x32xf32>
    %77 = arith.addf %76, %75 : vector<2x32xf32>
    %cst_39 = arith.constant 1.000000e+00 : f32
    %78 = vector.broadcast %cst_39 : f32 to vector<2x32xf32>
    %79 = arith.divf %78, %77 : vector<2x32xf32>
    %80 = vector.extract_strided_slice %63 {offsets = [0, 64], sizes = [2, 32], strides = [1, 1]} : vector<2x128xf32> to vector<2x32xf32>
    %81 = math.tanh %80 : vector<2x32xf32>
    %82 = vector.extract_strided_slice %63 {offsets = [0, 96], sizes = [2, 32], strides = [1, 1]} : vector<2x128xf32> to vector<2x32xf32>
    %cst_40 = arith.constant 0.000000e+00 : f32
    %83 = vector.broadcast %cst_40 : f32 to vector<2x32xf32>
    %84 = arith.subf %83, %82 : vector<2x32xf32>
    %85 = math.exp %84 : vector<2x32xf32>
    %cst_41 = arith.constant 1.000000e+00 : f32
    %86 = vector.broadcast %cst_41 : f32 to vector<2x32xf32>
    %87 = arith.addf %86, %85 : vector<2x32xf32>
    %cst_42 = arith.constant 1.000000e+00 : f32
    %88 = vector.broadcast %cst_42 : f32 to vector<2x32xf32>
    %89 = arith.divf %88, %87 : vector<2x32xf32>
    %90 = arith.mulf %79, %26 : vector<2x32xf32>
    %91 = arith.mulf %71, %81 : vector<2x32xf32>
    %92 = arith.addf %90, %91 : vector<2x32xf32>
    %93 = math.tanh %92 : vector<2x32xf32>
    %94 = arith.mulf %89, %93 : vector<2x32xf32>
    %95 = vector.extract_strided_slice %14 {offsets = [2, 0], sizes = [2, 128], strides = [1, 1]} : vector<16x128xf32> to vector<2x128xf32>
    %cst_43 = arith.constant dense<0.000000e+00> : vector<2x128xf32>
    %96 = tpu.matmul %60, %23, %cst_43 {dimension_numbers = #tpu.dot_dimension_numbers<[1], [0], [0], [1], [0, 0, 1, 1], [], []>} : vector<2x32xf32>, vector<32x128xf32>, vector<2x128xf32> -> vector<2x128xf32>
    %97 = arith.addf %95, %96 : vector<2x128xf32>
    %98 = vector.extract_strided_slice %97 {offsets = [0, 0], sizes = [2, 32], strides = [1, 1]} : vector<2x128xf32> to vector<2x32xf32>
    %cst_44 = arith.constant 0.000000e+00 : f32
    %99 = vector.broadcast %cst_44 : f32 to vector<2x32xf32>
    %100 = arith.subf %99, %98 : vector<2x32xf32>
    %101 = math.exp %100 : vector<2x32xf32>
    %cst_45 = arith.constant 1.000000e+00 : f32
    %102 = vector.broadcast %cst_45 : f32 to vector<2x32xf32>
    %103 = arith.addf %102, %101 : vector<2x32xf32>
    %cst_46 = arith.constant 1.000000e+00 : f32
    %104 = vector.broadcast %cst_46 : f32 to vector<2x32xf32>
    %105 = arith.divf %104, %103 : vector<2x32xf32>
    %106 = vector.extract_strided_slice %97 {offsets = [0, 32], sizes = [2, 32], strides = [1, 1]} : vector<2x128xf32> to vector<2x32xf32>
    %cst_47 = arith.constant 0.000000e+00 : f32
    %107 = vector.broadcast %cst_47 : f32 to vector<2x32xf32>
    %108 = arith.subf %107, %106 : vector<2x32xf32>
    %109 = math.exp %108 : vector<2x32xf32>
    %cst_48 = arith.constant 1.000000e+00 : f32
    %110 = vector.broadcast %cst_48 : f32 to vector<2x32xf32>
    %111 = arith.addf %110, %109 : vector<2x32xf32>
    %cst_49 = arith.constant 1.000000e+00 : f32
    %112 = vector.broadcast %cst_49 : f32 to vector<2x32xf32>
    %113 = arith.divf %112, %111 : vector<2x32xf32>
    %114 = vector.extract_strided_slice %97 {offsets = [0, 64], sizes = [2, 32], strides = [1, 1]} : vector<2x128xf32> to vector<2x32xf32>
    %115 = math.tanh %114 : vector<2x32xf32>
    %116 = vector.extract_strided_slice %97 {offsets = [0, 96], sizes = [2, 32], strides = [1, 1]} : vector<2x128xf32> to vector<2x32xf32>
    %cst_50 = arith.constant 0.000000e+00 : f32
    %117 = vector.broadcast %cst_50 : f32 to vector<2x32xf32>
    %118 = arith.subf %117, %116 : vector<2x32xf32>
    %119 = math.exp %118 : vector<2x32xf32>
    %cst_51 = arith.constant 1.000000e+00 : f32
    %120 = vector.broadcast %cst_51 : f32 to vector<2x32xf32>
    %121 = arith.addf %120, %119 : vector<2x32xf32>
    %cst_52 = arith.constant 1.000000e+00 : f32
    %122 = vector.broadcast %cst_52 : f32 to vector<2x32xf32>
    %123 = arith.divf %122, %121 : vector<2x32xf32>
    %124 = arith.mulf %113, %58 : vector<2x32xf32>
    %125 = arith.mulf %105, %115 : vector<2x32xf32>
    %126 = arith.addf %124, %125 : vector<2x32xf32>
    %127 = math.tanh %126 : vector<2x32xf32>
    %128 = arith.mulf %123, %127 : vector<2x32xf32>
    %129 = vector.extract_strided_slice %21 {offsets = [12, 0], sizes = [2, 128], strides = [1, 1]} : vector<16x128xf32> to vector<2x128xf32>
    %cst_53 = arith.constant dense<0.000000e+00> : vector<2x128xf32>
    %130 = tpu.matmul %94, %25, %cst_53 {dimension_numbers = #tpu.dot_dimension_numbers<[1], [0], [0], [1], [0, 0, 1, 1], [], []>} : vector<2x32xf32>, vector<32x128xf32>, vector<2x128xf32> -> vector<2x128xf32>
    %131 = arith.addf %129, %130 : vector<2x128xf32>
    %132 = vector.extract_strided_slice %131 {offsets = [0, 0], sizes = [2, 32], strides = [1, 1]} : vector<2x128xf32> to vector<2x32xf32>
    %cst_54 = arith.constant 0.000000e+00 : f32
    %133 = vector.broadcast %cst_54 : f32 to vector<2x32xf32>
    %134 = arith.subf %133, %132 : vector<2x32xf32>
    %135 = math.exp %134 : vector<2x32xf32>
    %cst_55 = arith.constant 1.000000e+00 : f32
    %136 = vector.broadcast %cst_55 : f32 to vector<2x32xf32>
    %137 = arith.addf %136, %135 : vector<2x32xf32>
    %cst_56 = arith.constant 1.000000e+00 : f32
    %138 = vector.broadcast %cst_56 : f32 to vector<2x32xf32>
    %139 = arith.divf %138, %137 : vector<2x32xf32>
    %140 = vector.extract_strided_slice %131 {offsets = [0, 32], sizes = [2, 32], strides = [1, 1]} : vector<2x128xf32> to vector<2x32xf32>
    %cst_57 = arith.constant 0.000000e+00 : f32
    %141 = vector.broadcast %cst_57 : f32 to vector<2x32xf32>
    %142 = arith.subf %141, %140 : vector<2x32xf32>
    %143 = math.exp %142 : vector<2x32xf32>
    %cst_58 = arith.constant 1.000000e+00 : f32
    %144 = vector.broadcast %cst_58 : f32 to vector<2x32xf32>
    %145 = arith.addf %144, %143 : vector<2x32xf32>
    %cst_59 = arith.constant 1.000000e+00 : f32
    %146 = vector.broadcast %cst_59 : f32 to vector<2x32xf32>
    %147 = arith.divf %146, %145 : vector<2x32xf32>
    %148 = vector.extract_strided_slice %131 {offsets = [0, 64], sizes = [2, 32], strides = [1, 1]} : vector<2x128xf32> to vector<2x32xf32>
    %149 = math.tanh %148 : vector<2x32xf32>
    %150 = vector.extract_strided_slice %131 {offsets = [0, 96], sizes = [2, 32], strides = [1, 1]} : vector<2x128xf32> to vector<2x32xf32>
    %cst_60 = arith.constant 0.000000e+00 : f32
    %151 = vector.broadcast %cst_60 : f32 to vector<2x32xf32>
    %152 = arith.subf %151, %150 : vector<2x32xf32>
    %153 = math.exp %152 : vector<2x32xf32>
    %cst_61 = arith.constant 1.000000e+00 : f32
    %154 = vector.broadcast %cst_61 : f32 to vector<2x32xf32>
    %155 = arith.addf %154, %153 : vector<2x32xf32>
    %cst_62 = arith.constant 1.000000e+00 : f32
    %156 = vector.broadcast %cst_62 : f32 to vector<2x32xf32>
    %157 = arith.divf %156, %155 : vector<2x32xf32>
    %158 = arith.mulf %147, %92 : vector<2x32xf32>
    %159 = arith.mulf %139, %149 : vector<2x32xf32>
    %160 = arith.addf %158, %159 : vector<2x32xf32>
    %161 = math.tanh %160 : vector<2x32xf32>
    %162 = arith.mulf %157, %161 : vector<2x32xf32>
    %163 = vector.extract_strided_slice %14 {offsets = [4, 0], sizes = [2, 128], strides = [1, 1]} : vector<16x128xf32> to vector<2x128xf32>
    %cst_63 = arith.constant dense<0.000000e+00> : vector<2x128xf32>
    %164 = tpu.matmul %128, %23, %cst_63 {dimension_numbers = #tpu.dot_dimension_numbers<[1], [0], [0], [1], [0, 0, 1, 1], [], []>} : vector<2x32xf32>, vector<32x128xf32>, vector<2x128xf32> -> vector<2x128xf32>
    %165 = arith.addf %163, %164 : vector<2x128xf32>
    %166 = vector.extract_strided_slice %165 {offsets = [0, 0], sizes = [2, 32], strides = [1, 1]} : vector<2x128xf32> to vector<2x32xf32>
    %cst_64 = arith.constant 0.000000e+00 : f32
    %167 = vector.broadcast %cst_64 : f32 to vector<2x32xf32>
    %168 = arith.subf %167, %166 : vector<2x32xf32>
    %169 = math.exp %168 : vector<2x32xf32>
    %cst_65 = arith.constant 1.000000e+00 : f32
    %170 = vector.broadcast %cst_65 : f32 to vector<2x32xf32>
    %171 = arith.addf %170, %169 : vector<2x32xf32>
    %cst_66 = arith.constant 1.000000e+00 : f32
    %172 = vector.broadcast %cst_66 : f32 to vector<2x32xf32>
    %173 = arith.divf %172, %171 : vector<2x32xf32>
    %174 = vector.extract_strided_slice %165 {offsets = [0, 32], sizes = [2, 32], strides = [1, 1]} : vector<2x128xf32> to vector<2x32xf32>
    %cst_67 = arith.constant 0.000000e+00 : f32
    %175 = vector.broadcast %cst_67 : f32 to vector<2x32xf32>
    %176 = arith.subf %175, %174 : vector<2x32xf32>
    %177 = math.exp %176 : vector<2x32xf32>
    %cst_68 = arith.constant 1.000000e+00 : f32
    %178 = vector.broadcast %cst_68 : f32 to vector<2x32xf32>
    %179 = arith.addf %178, %177 : vector<2x32xf32>
    %cst_69 = arith.constant 1.000000e+00 : f32
    %180 = vector.broadcast %cst_69 : f32 to vector<2x32xf32>
    %181 = arith.divf %180, %179 : vector<2x32xf32>
    %182 = vector.extract_strided_slice %165 {offsets = [0, 64], sizes = [2, 32], strides = [1, 1]} : vector<2x128xf32> to vector<2x32xf32>
    %183 = math.tanh %182 : vector<2x32xf32>
    %184 = vector.extract_strided_slice %165 {offsets = [0, 96], sizes = [2, 32], strides = [1, 1]} : vector<2x128xf32> to vector<2x32xf32>
    %cst_70 = arith.constant 0.000000e+00 : f32
    %185 = vector.broadcast %cst_70 : f32 to vector<2x32xf32>
    %186 = arith.subf %185, %184 : vector<2x32xf32>
    %187 = math.exp %186 : vector<2x32xf32>
    %cst_71 = arith.constant 1.000000e+00 : f32
    %188 = vector.broadcast %cst_71 : f32 to vector<2x32xf32>
    %189 = arith.addf %188, %187 : vector<2x32xf32>
    %cst_72 = arith.constant 1.000000e+00 : f32
    %190 = vector.broadcast %cst_72 : f32 to vector<2x32xf32>
    %191 = arith.divf %190, %189 : vector<2x32xf32>
    %192 = arith.mulf %181, %126 : vector<2x32xf32>
    %193 = arith.mulf %173, %183 : vector<2x32xf32>
    %194 = arith.addf %192, %193 : vector<2x32xf32>
    %195 = math.tanh %194 : vector<2x32xf32>
    %196 = arith.mulf %191, %195 : vector<2x32xf32>
    %197 = vector.extract_strided_slice %21 {offsets = [10, 0], sizes = [2, 128], strides = [1, 1]} : vector<16x128xf32> to vector<2x128xf32>
    %cst_73 = arith.constant dense<0.000000e+00> : vector<2x128xf32>
    %198 = tpu.matmul %162, %25, %cst_73 {dimension_numbers = #tpu.dot_dimension_numbers<[1], [0], [0], [1], [0, 0, 1, 1], [], []>} : vector<2x32xf32>, vector<32x128xf32>, vector<2x128xf32> -> vector<2x128xf32>
    %199 = arith.addf %197, %198 : vector<2x128xf32>
    %200 = vector.extract_strided_slice %199 {offsets = [0, 0], sizes = [2, 32], strides = [1, 1]} : vector<2x128xf32> to vector<2x32xf32>
    %cst_74 = arith.constant 0.000000e+00 : f32
    %201 = vector.broadcast %cst_74 : f32 to vector<2x32xf32>
    %202 = arith.subf %201, %200 : vector<2x32xf32>
    %203 = math.exp %202 : vector<2x32xf32>
    %cst_75 = arith.constant 1.000000e+00 : f32
    %204 = vector.broadcast %cst_75 : f32 to vector<2x32xf32>
    %205 = arith.addf %204, %203 : vector<2x32xf32>
    %cst_76 = arith.constant 1.000000e+00 : f32
    %206 = vector.broadcast %cst_76 : f32 to vector<2x32xf32>
    %207 = arith.divf %206, %205 : vector<2x32xf32>
    %208 = vector.extract_strided_slice %199 {offsets = [0, 32], sizes = [2, 32], strides = [1, 1]} : vector<2x128xf32> to vector<2x32xf32>
    %cst_77 = arith.constant 0.000000e+00 : f32
    %209 = vector.broadcast %cst_77 : f32 to vector<2x32xf32>
    %210 = arith.subf %209, %208 : vector<2x32xf32>
    %211 = math.exp %210 : vector<2x32xf32>
    %cst_78 = arith.constant 1.000000e+00 : f32
    %212 = vector.broadcast %cst_78 : f32 to vector<2x32xf32>
    %213 = arith.addf %212, %211 : vector<2x32xf32>
    %cst_79 = arith.constant 1.000000e+00 : f32
    %214 = vector.broadcast %cst_79 : f32 to vector<2x32xf32>
    %215 = arith.divf %214, %213 : vector<2x32xf32>
    %216 = vector.extract_strided_slice %199 {offsets = [0, 64], sizes = [2, 32], strides = [1, 1]} : vector<2x128xf32> to vector<2x32xf32>
    %217 = math.tanh %216 : vector<2x32xf32>
    %218 = vector.extract_strided_slice %199 {offsets = [0, 96], sizes = [2, 32], strides = [1, 1]} : vector<2x128xf32> to vector<2x32xf32>
    %cst_80 = arith.constant 0.000000e+00 : f32
    %219 = vector.broadcast %cst_80 : f32 to vector<2x32xf32>
    %220 = arith.subf %219, %218 : vector<2x32xf32>
    %221 = math.exp %220 : vector<2x32xf32>
    %cst_81 = arith.constant 1.000000e+00 : f32
    %222 = vector.broadcast %cst_81 : f32 to vector<2x32xf32>
    %223 = arith.addf %222, %221 : vector<2x32xf32>
    %cst_82 = arith.constant 1.000000e+00 : f32
    %224 = vector.broadcast %cst_82 : f32 to vector<2x32xf32>
    %225 = arith.divf %224, %223 : vector<2x32xf32>
    %226 = arith.mulf %215, %160 : vector<2x32xf32>
    %227 = arith.mulf %207, %217 : vector<2x32xf32>
    %228 = arith.addf %226, %227 : vector<2x32xf32>
    %229 = math.tanh %228 : vector<2x32xf32>
    %230 = arith.mulf %225, %229 : vector<2x32xf32>
    %231 = vector.extract_strided_slice %14 {offsets = [6, 0], sizes = [2, 128], strides = [1, 1]} : vector<16x128xf32> to vector<2x128xf32>
    %cst_83 = arith.constant dense<0.000000e+00> : vector<2x128xf32>
    %232 = tpu.matmul %196, %23, %cst_83 {dimension_numbers = #tpu.dot_dimension_numbers<[1], [0], [0], [1], [0, 0, 1, 1], [], []>} : vector<2x32xf32>, vector<32x128xf32>, vector<2x128xf32> -> vector<2x128xf32>
    %233 = arith.addf %231, %232 : vector<2x128xf32>
    %234 = vector.extract_strided_slice %233 {offsets = [0, 0], sizes = [2, 32], strides = [1, 1]} : vector<2x128xf32> to vector<2x32xf32>
    %cst_84 = arith.constant 0.000000e+00 : f32
    %235 = vector.broadcast %cst_84 : f32 to vector<2x32xf32>
    %236 = arith.subf %235, %234 : vector<2x32xf32>
    %237 = math.exp %236 : vector<2x32xf32>
    %cst_85 = arith.constant 1.000000e+00 : f32
    %238 = vector.broadcast %cst_85 : f32 to vector<2x32xf32>
    %239 = arith.addf %238, %237 : vector<2x32xf32>
    %cst_86 = arith.constant 1.000000e+00 : f32
    %240 = vector.broadcast %cst_86 : f32 to vector<2x32xf32>
    %241 = arith.divf %240, %239 : vector<2x32xf32>
    %242 = vector.extract_strided_slice %233 {offsets = [0, 32], sizes = [2, 32], strides = [1, 1]} : vector<2x128xf32> to vector<2x32xf32>
    %cst_87 = arith.constant 0.000000e+00 : f32
    %243 = vector.broadcast %cst_87 : f32 to vector<2x32xf32>
    %244 = arith.subf %243, %242 : vector<2x32xf32>
    %245 = math.exp %244 : vector<2x32xf32>
    %cst_88 = arith.constant 1.000000e+00 : f32
    %246 = vector.broadcast %cst_88 : f32 to vector<2x32xf32>
    %247 = arith.addf %246, %245 : vector<2x32xf32>
    %cst_89 = arith.constant 1.000000e+00 : f32
    %248 = vector.broadcast %cst_89 : f32 to vector<2x32xf32>
    %249 = arith.divf %248, %247 : vector<2x32xf32>
    %250 = vector.extract_strided_slice %233 {offsets = [0, 64], sizes = [2, 32], strides = [1, 1]} : vector<2x128xf32> to vector<2x32xf32>
    %251 = math.tanh %250 : vector<2x32xf32>
    %252 = vector.extract_strided_slice %233 {offsets = [0, 96], sizes = [2, 32], strides = [1, 1]} : vector<2x128xf32> to vector<2x32xf32>
    %cst_90 = arith.constant 0.000000e+00 : f32
    %253 = vector.broadcast %cst_90 : f32 to vector<2x32xf32>
    %254 = arith.subf %253, %252 : vector<2x32xf32>
    %255 = math.exp %254 : vector<2x32xf32>
    %cst_91 = arith.constant 1.000000e+00 : f32
    %256 = vector.broadcast %cst_91 : f32 to vector<2x32xf32>
    %257 = arith.addf %256, %255 : vector<2x32xf32>
    %cst_92 = arith.constant 1.000000e+00 : f32
    %258 = vector.broadcast %cst_92 : f32 to vector<2x32xf32>
    %259 = arith.divf %258, %257 : vector<2x32xf32>
    %260 = arith.mulf %249, %194 : vector<2x32xf32>
    %261 = arith.mulf %241, %251 : vector<2x32xf32>
    %262 = arith.addf %260, %261 : vector<2x32xf32>
    %263 = math.tanh %262 : vector<2x32xf32>
    %264 = arith.mulf %259, %263 : vector<2x32xf32>
    %265 = vector.extract_strided_slice %21 {offsets = [8, 0], sizes = [2, 128], strides = [1, 1]} : vector<16x128xf32> to vector<2x128xf32>
    %cst_93 = arith.constant dense<0.000000e+00> : vector<2x128xf32>
    %266 = tpu.matmul %230, %25, %cst_93 {dimension_numbers = #tpu.dot_dimension_numbers<[1], [0], [0], [1], [0, 0, 1, 1], [], []>} : vector<2x32xf32>, vector<32x128xf32>, vector<2x128xf32> -> vector<2x128xf32>
    %267 = arith.addf %265, %266 : vector<2x128xf32>
    %268 = vector.extract_strided_slice %267 {offsets = [0, 0], sizes = [2, 32], strides = [1, 1]} : vector<2x128xf32> to vector<2x32xf32>
    %cst_94 = arith.constant 0.000000e+00 : f32
    %269 = vector.broadcast %cst_94 : f32 to vector<2x32xf32>
    %270 = arith.subf %269, %268 : vector<2x32xf32>
    %271 = math.exp %270 : vector<2x32xf32>
    %cst_95 = arith.constant 1.000000e+00 : f32
    %272 = vector.broadcast %cst_95 : f32 to vector<2x32xf32>
    %273 = arith.addf %272, %271 : vector<2x32xf32>
    %cst_96 = arith.constant 1.000000e+00 : f32
    %274 = vector.broadcast %cst_96 : f32 to vector<2x32xf32>
    %275 = arith.divf %274, %273 : vector<2x32xf32>
    %276 = vector.extract_strided_slice %267 {offsets = [0, 32], sizes = [2, 32], strides = [1, 1]} : vector<2x128xf32> to vector<2x32xf32>
    %cst_97 = arith.constant 0.000000e+00 : f32
    %277 = vector.broadcast %cst_97 : f32 to vector<2x32xf32>
    %278 = arith.subf %277, %276 : vector<2x32xf32>
    %279 = math.exp %278 : vector<2x32xf32>
    %cst_98 = arith.constant 1.000000e+00 : f32
    %280 = vector.broadcast %cst_98 : f32 to vector<2x32xf32>
    %281 = arith.addf %280, %279 : vector<2x32xf32>
    %cst_99 = arith.constant 1.000000e+00 : f32
    %282 = vector.broadcast %cst_99 : f32 to vector<2x32xf32>
    %283 = arith.divf %282, %281 : vector<2x32xf32>
    %284 = vector.extract_strided_slice %267 {offsets = [0, 64], sizes = [2, 32], strides = [1, 1]} : vector<2x128xf32> to vector<2x32xf32>
    %285 = math.tanh %284 : vector<2x32xf32>
    %286 = vector.extract_strided_slice %267 {offsets = [0, 96], sizes = [2, 32], strides = [1, 1]} : vector<2x128xf32> to vector<2x32xf32>
    %cst_100 = arith.constant 0.000000e+00 : f32
    %287 = vector.broadcast %cst_100 : f32 to vector<2x32xf32>
    %288 = arith.subf %287, %286 : vector<2x32xf32>
    %289 = math.exp %288 : vector<2x32xf32>
    %cst_101 = arith.constant 1.000000e+00 : f32
    %290 = vector.broadcast %cst_101 : f32 to vector<2x32xf32>
    %291 = arith.addf %290, %289 : vector<2x32xf32>
    %cst_102 = arith.constant 1.000000e+00 : f32
    %292 = vector.broadcast %cst_102 : f32 to vector<2x32xf32>
    %293 = arith.divf %292, %291 : vector<2x32xf32>
    %294 = arith.mulf %283, %228 : vector<2x32xf32>
    %295 = arith.mulf %275, %285 : vector<2x32xf32>
    %296 = arith.addf %294, %295 : vector<2x32xf32>
    %297 = math.tanh %296 : vector<2x32xf32>
    %298 = arith.mulf %293, %297 : vector<2x32xf32>
    %299 = vector.extract_strided_slice %14 {offsets = [8, 0], sizes = [2, 128], strides = [1, 1]} : vector<16x128xf32> to vector<2x128xf32>
    %cst_103 = arith.constant dense<0.000000e+00> : vector<2x128xf32>
    %300 = tpu.matmul %264, %23, %cst_103 {dimension_numbers = #tpu.dot_dimension_numbers<[1], [0], [0], [1], [0, 0, 1, 1], [], []>} : vector<2x32xf32>, vector<32x128xf32>, vector<2x128xf32> -> vector<2x128xf32>
    %301 = arith.addf %299, %300 : vector<2x128xf32>
    %302 = vector.extract_strided_slice %301 {offsets = [0, 0], sizes = [2, 32], strides = [1, 1]} : vector<2x128xf32> to vector<2x32xf32>
    %cst_104 = arith.constant 0.000000e+00 : f32
    %303 = vector.broadcast %cst_104 : f32 to vector<2x32xf32>
    %304 = arith.subf %303, %302 : vector<2x32xf32>
    %305 = math.exp %304 : vector<2x32xf32>
    %cst_105 = arith.constant 1.000000e+00 : f32
    %306 = vector.broadcast %cst_105 : f32 to vector<2x32xf32>
    %307 = arith.addf %306, %305 : vector<2x32xf32>
    %cst_106 = arith.constant 1.000000e+00 : f32
    %308 = vector.broadcast %cst_106 : f32 to vector<2x32xf32>
    %309 = arith.divf %308, %307 : vector<2x32xf32>
    %310 = vector.extract_strided_slice %301 {offsets = [0, 32], sizes = [2, 32], strides = [1, 1]} : vector<2x128xf32> to vector<2x32xf32>
    %cst_107 = arith.constant 0.000000e+00 : f32
    %311 = vector.broadcast %cst_107 : f32 to vector<2x32xf32>
    %312 = arith.subf %311, %310 : vector<2x32xf32>
    %313 = math.exp %312 : vector<2x32xf32>
    %cst_108 = arith.constant 1.000000e+00 : f32
    %314 = vector.broadcast %cst_108 : f32 to vector<2x32xf32>
    %315 = arith.addf %314, %313 : vector<2x32xf32>
    %cst_109 = arith.constant 1.000000e+00 : f32
    %316 = vector.broadcast %cst_109 : f32 to vector<2x32xf32>
    %317 = arith.divf %316, %315 : vector<2x32xf32>
    %318 = vector.extract_strided_slice %301 {offsets = [0, 64], sizes = [2, 32], strides = [1, 1]} : vector<2x128xf32> to vector<2x32xf32>
    %319 = math.tanh %318 : vector<2x32xf32>
    %320 = vector.extract_strided_slice %301 {offsets = [0, 96], sizes = [2, 32], strides = [1, 1]} : vector<2x128xf32> to vector<2x32xf32>
    %cst_110 = arith.constant 0.000000e+00 : f32
    %321 = vector.broadcast %cst_110 : f32 to vector<2x32xf32>
    %322 = arith.subf %321, %320 : vector<2x32xf32>
    %323 = math.exp %322 : vector<2x32xf32>
    %cst_111 = arith.constant 1.000000e+00 : f32
    %324 = vector.broadcast %cst_111 : f32 to vector<2x32xf32>
    %325 = arith.addf %324, %323 : vector<2x32xf32>
    %cst_112 = arith.constant 1.000000e+00 : f32
    %326 = vector.broadcast %cst_112 : f32 to vector<2x32xf32>
    %327 = arith.divf %326, %325 : vector<2x32xf32>
    %328 = arith.mulf %317, %262 : vector<2x32xf32>
    %329 = arith.mulf %309, %319 : vector<2x32xf32>
    %330 = arith.addf %328, %329 : vector<2x32xf32>
    %331 = math.tanh %330 : vector<2x32xf32>
    %332 = arith.mulf %327, %331 : vector<2x32xf32>
    %333 = vector.extract_strided_slice %21 {offsets = [6, 0], sizes = [2, 128], strides = [1, 1]} : vector<16x128xf32> to vector<2x128xf32>
    %cst_113 = arith.constant dense<0.000000e+00> : vector<2x128xf32>
    %334 = tpu.matmul %298, %25, %cst_113 {dimension_numbers = #tpu.dot_dimension_numbers<[1], [0], [0], [1], [0, 0, 1, 1], [], []>} : vector<2x32xf32>, vector<32x128xf32>, vector<2x128xf32> -> vector<2x128xf32>
    %335 = arith.addf %333, %334 : vector<2x128xf32>
    %336 = vector.extract_strided_slice %335 {offsets = [0, 0], sizes = [2, 32], strides = [1, 1]} : vector<2x128xf32> to vector<2x32xf32>
    %cst_114 = arith.constant 0.000000e+00 : f32
    %337 = vector.broadcast %cst_114 : f32 to vector<2x32xf32>
    %338 = arith.subf %337, %336 : vector<2x32xf32>
    %339 = math.exp %338 : vector<2x32xf32>
    %cst_115 = arith.constant 1.000000e+00 : f32
    %340 = vector.broadcast %cst_115 : f32 to vector<2x32xf32>
    %341 = arith.addf %340, %339 : vector<2x32xf32>
    %cst_116 = arith.constant 1.000000e+00 : f32
    %342 = vector.broadcast %cst_116 : f32 to vector<2x32xf32>
    %343 = arith.divf %342, %341 : vector<2x32xf32>
    %344 = vector.extract_strided_slice %335 {offsets = [0, 32], sizes = [2, 32], strides = [1, 1]} : vector<2x128xf32> to vector<2x32xf32>
    %cst_117 = arith.constant 0.000000e+00 : f32
    %345 = vector.broadcast %cst_117 : f32 to vector<2x32xf32>
    %346 = arith.subf %345, %344 : vector<2x32xf32>
    %347 = math.exp %346 : vector<2x32xf32>
    %cst_118 = arith.constant 1.000000e+00 : f32
    %348 = vector.broadcast %cst_118 : f32 to vector<2x32xf32>
    %349 = arith.addf %348, %347 : vector<2x32xf32>
    %cst_119 = arith.constant 1.000000e+00 : f32
    %350 = vector.broadcast %cst_119 : f32 to vector<2x32xf32>
    %351 = arith.divf %350, %349 : vector<2x32xf32>
    %352 = vector.extract_strided_slice %335 {offsets = [0, 64], sizes = [2, 32], strides = [1, 1]} : vector<2x128xf32> to vector<2x32xf32>
    %353 = math.tanh %352 : vector<2x32xf32>
    %354 = vector.extract_strided_slice %335 {offsets = [0, 96], sizes = [2, 32], strides = [1, 1]} : vector<2x128xf32> to vector<2x32xf32>
    %cst_120 = arith.constant 0.000000e+00 : f32
    %355 = vector.broadcast %cst_120 : f32 to vector<2x32xf32>
    %356 = arith.subf %355, %354 : vector<2x32xf32>
    %357 = math.exp %356 : vector<2x32xf32>
    %cst_121 = arith.constant 1.000000e+00 : f32
    %358 = vector.broadcast %cst_121 : f32 to vector<2x32xf32>
    %359 = arith.addf %358, %357 : vector<2x32xf32>
    %cst_122 = arith.constant 1.000000e+00 : f32
    %360 = vector.broadcast %cst_122 : f32 to vector<2x32xf32>
    %361 = arith.divf %360, %359 : vector<2x32xf32>
    %362 = arith.mulf %351, %296 : vector<2x32xf32>
    %363 = arith.mulf %343, %353 : vector<2x32xf32>
    %364 = arith.addf %362, %363 : vector<2x32xf32>
    %365 = math.tanh %364 : vector<2x32xf32>
    %366 = arith.mulf %361, %365 : vector<2x32xf32>
    %367 = vector.extract_strided_slice %14 {offsets = [10, 0], sizes = [2, 128], strides = [1, 1]} : vector<16x128xf32> to vector<2x128xf32>
    %cst_123 = arith.constant dense<0.000000e+00> : vector<2x128xf32>
    %368 = tpu.matmul %332, %23, %cst_123 {dimension_numbers = #tpu.dot_dimension_numbers<[1], [0], [0], [1], [0, 0, 1, 1], [], []>} : vector<2x32xf32>, vector<32x128xf32>, vector<2x128xf32> -> vector<2x128xf32>
    %369 = arith.addf %367, %368 : vector<2x128xf32>
    %370 = vector.extract_strided_slice %369 {offsets = [0, 0], sizes = [2, 32], strides = [1, 1]} : vector<2x128xf32> to vector<2x32xf32>
    %cst_124 = arith.constant 0.000000e+00 : f32
    %371 = vector.broadcast %cst_124 : f32 to vector<2x32xf32>
    %372 = arith.subf %371, %370 : vector<2x32xf32>
    %373 = math.exp %372 : vector<2x32xf32>
    %cst_125 = arith.constant 1.000000e+00 : f32
    %374 = vector.broadcast %cst_125 : f32 to vector<2x32xf32>
    %375 = arith.addf %374, %373 : vector<2x32xf32>
    %cst_126 = arith.constant 1.000000e+00 : f32
    %376 = vector.broadcast %cst_126 : f32 to vector<2x32xf32>
    %377 = arith.divf %376, %375 : vector<2x32xf32>
    %378 = vector.extract_strided_slice %369 {offsets = [0, 32], sizes = [2, 32], strides = [1, 1]} : vector<2x128xf32> to vector<2x32xf32>
    %cst_127 = arith.constant 0.000000e+00 : f32
    %379 = vector.broadcast %cst_127 : f32 to vector<2x32xf32>
    %380 = arith.subf %379, %378 : vector<2x32xf32>
    %381 = math.exp %380 : vector<2x32xf32>
    %cst_128 = arith.constant 1.000000e+00 : f32
    %382 = vector.broadcast %cst_128 : f32 to vector<2x32xf32>
    %383 = arith.addf %382, %381 : vector<2x32xf32>
    %cst_129 = arith.constant 1.000000e+00 : f32
    %384 = vector.broadcast %cst_129 : f32 to vector<2x32xf32>
    %385 = arith.divf %384, %383 : vector<2x32xf32>
    %386 = vector.extract_strided_slice %369 {offsets = [0, 64], sizes = [2, 32], strides = [1, 1]} : vector<2x128xf32> to vector<2x32xf32>
    %387 = math.tanh %386 : vector<2x32xf32>
    %388 = vector.extract_strided_slice %369 {offsets = [0, 96], sizes = [2, 32], strides = [1, 1]} : vector<2x128xf32> to vector<2x32xf32>
    %cst_130 = arith.constant 0.000000e+00 : f32
    %389 = vector.broadcast %cst_130 : f32 to vector<2x32xf32>
    %390 = arith.subf %389, %388 : vector<2x32xf32>
    %391 = math.exp %390 : vector<2x32xf32>
    %cst_131 = arith.constant 1.000000e+00 : f32
    %392 = vector.broadcast %cst_131 : f32 to vector<2x32xf32>
    %393 = arith.addf %392, %391 : vector<2x32xf32>
    %cst_132 = arith.constant 1.000000e+00 : f32
    %394 = vector.broadcast %cst_132 : f32 to vector<2x32xf32>
    %395 = arith.divf %394, %393 : vector<2x32xf32>
    %396 = arith.mulf %385, %330 : vector<2x32xf32>
    %397 = arith.mulf %377, %387 : vector<2x32xf32>
    %398 = arith.addf %396, %397 : vector<2x32xf32>
    %399 = math.tanh %398 : vector<2x32xf32>
    %400 = arith.mulf %395, %399 : vector<2x32xf32>
    %401 = vector.extract_strided_slice %21 {offsets = [4, 0], sizes = [2, 128], strides = [1, 1]} : vector<16x128xf32> to vector<2x128xf32>
    %cst_133 = arith.constant dense<0.000000e+00> : vector<2x128xf32>
    %402 = tpu.matmul %366, %25, %cst_133 {dimension_numbers = #tpu.dot_dimension_numbers<[1], [0], [0], [1], [0, 0, 1, 1], [], []>} : vector<2x32xf32>, vector<32x128xf32>, vector<2x128xf32> -> vector<2x128xf32>
    %403 = arith.addf %401, %402 : vector<2x128xf32>
    %404 = vector.extract_strided_slice %403 {offsets = [0, 0], sizes = [2, 32], strides = [1, 1]} : vector<2x128xf32> to vector<2x32xf32>
    %cst_134 = arith.constant 0.000000e+00 : f32
    %405 = vector.broadcast %cst_134 : f32 to vector<2x32xf32>
    %406 = arith.subf %405, %404 : vector<2x32xf32>
    %407 = math.exp %406 : vector<2x32xf32>
    %cst_135 = arith.constant 1.000000e+00 : f32
    %408 = vector.broadcast %cst_135 : f32 to vector<2x32xf32>
    %409 = arith.addf %408, %407 : vector<2x32xf32>
    %cst_136 = arith.constant 1.000000e+00 : f32
    %410 = vector.broadcast %cst_136 : f32 to vector<2x32xf32>
    %411 = arith.divf %410, %409 : vector<2x32xf32>
    %412 = vector.extract_strided_slice %403 {offsets = [0, 32], sizes = [2, 32], strides = [1, 1]} : vector<2x128xf32> to vector<2x32xf32>
    %cst_137 = arith.constant 0.000000e+00 : f32
    %413 = vector.broadcast %cst_137 : f32 to vector<2x32xf32>
    %414 = arith.subf %413, %412 : vector<2x32xf32>
    %415 = math.exp %414 : vector<2x32xf32>
    %cst_138 = arith.constant 1.000000e+00 : f32
    %416 = vector.broadcast %cst_138 : f32 to vector<2x32xf32>
    %417 = arith.addf %416, %415 : vector<2x32xf32>
    %cst_139 = arith.constant 1.000000e+00 : f32
    %418 = vector.broadcast %cst_139 : f32 to vector<2x32xf32>
    %419 = arith.divf %418, %417 : vector<2x32xf32>
    %420 = vector.extract_strided_slice %403 {offsets = [0, 64], sizes = [2, 32], strides = [1, 1]} : vector<2x128xf32> to vector<2x32xf32>
    %421 = math.tanh %420 : vector<2x32xf32>
    %422 = vector.extract_strided_slice %403 {offsets = [0, 96], sizes = [2, 32], strides = [1, 1]} : vector<2x128xf32> to vector<2x32xf32>
    %cst_140 = arith.constant 0.000000e+00 : f32
    %423 = vector.broadcast %cst_140 : f32 to vector<2x32xf32>
    %424 = arith.subf %423, %422 : vector<2x32xf32>
    %425 = math.exp %424 : vector<2x32xf32>
    %cst_141 = arith.constant 1.000000e+00 : f32
    %426 = vector.broadcast %cst_141 : f32 to vector<2x32xf32>
    %427 = arith.addf %426, %425 : vector<2x32xf32>
    %cst_142 = arith.constant 1.000000e+00 : f32
    %428 = vector.broadcast %cst_142 : f32 to vector<2x32xf32>
    %429 = arith.divf %428, %427 : vector<2x32xf32>
    %430 = arith.mulf %419, %364 : vector<2x32xf32>
    %431 = arith.mulf %411, %421 : vector<2x32xf32>
    %432 = arith.addf %430, %431 : vector<2x32xf32>
    %433 = math.tanh %432 : vector<2x32xf32>
    %434 = arith.mulf %429, %433 : vector<2x32xf32>
    %435 = vector.extract_strided_slice %14 {offsets = [12, 0], sizes = [2, 128], strides = [1, 1]} : vector<16x128xf32> to vector<2x128xf32>
    %cst_143 = arith.constant dense<0.000000e+00> : vector<2x128xf32>
    %436 = tpu.matmul %400, %23, %cst_143 {dimension_numbers = #tpu.dot_dimension_numbers<[1], [0], [0], [1], [0, 0, 1, 1], [], []>} : vector<2x32xf32>, vector<32x128xf32>, vector<2x128xf32> -> vector<2x128xf32>
    %437 = arith.addf %435, %436 : vector<2x128xf32>
    %438 = vector.extract_strided_slice %437 {offsets = [0, 0], sizes = [2, 32], strides = [1, 1]} : vector<2x128xf32> to vector<2x32xf32>
    %cst_144 = arith.constant 0.000000e+00 : f32
    %439 = vector.broadcast %cst_144 : f32 to vector<2x32xf32>
    %440 = arith.subf %439, %438 : vector<2x32xf32>
    %441 = math.exp %440 : vector<2x32xf32>
    %cst_145 = arith.constant 1.000000e+00 : f32
    %442 = vector.broadcast %cst_145 : f32 to vector<2x32xf32>
    %443 = arith.addf %442, %441 : vector<2x32xf32>
    %cst_146 = arith.constant 1.000000e+00 : f32
    %444 = vector.broadcast %cst_146 : f32 to vector<2x32xf32>
    %445 = arith.divf %444, %443 : vector<2x32xf32>
    %446 = vector.extract_strided_slice %437 {offsets = [0, 32], sizes = [2, 32], strides = [1, 1]} : vector<2x128xf32> to vector<2x32xf32>
    %cst_147 = arith.constant 0.000000e+00 : f32
    %447 = vector.broadcast %cst_147 : f32 to vector<2x32xf32>
    %448 = arith.subf %447, %446 : vector<2x32xf32>
    %449 = math.exp %448 : vector<2x32xf32>
    %cst_148 = arith.constant 1.000000e+00 : f32
    %450 = vector.broadcast %cst_148 : f32 to vector<2x32xf32>
    %451 = arith.addf %450, %449 : vector<2x32xf32>
    %cst_149 = arith.constant 1.000000e+00 : f32
    %452 = vector.broadcast %cst_149 : f32 to vector<2x32xf32>
    %453 = arith.divf %452, %451 : vector<2x32xf32>
    %454 = vector.extract_strided_slice %437 {offsets = [0, 64], sizes = [2, 32], strides = [1, 1]} : vector<2x128xf32> to vector<2x32xf32>
    %455 = math.tanh %454 : vector<2x32xf32>
    %456 = vector.extract_strided_slice %437 {offsets = [0, 96], sizes = [2, 32], strides = [1, 1]} : vector<2x128xf32> to vector<2x32xf32>
    %cst_150 = arith.constant 0.000000e+00 : f32
    %457 = vector.broadcast %cst_150 : f32 to vector<2x32xf32>
    %458 = arith.subf %457, %456 : vector<2x32xf32>
    %459 = math.exp %458 : vector<2x32xf32>
    %cst_151 = arith.constant 1.000000e+00 : f32
    %460 = vector.broadcast %cst_151 : f32 to vector<2x32xf32>
    %461 = arith.addf %460, %459 : vector<2x32xf32>
    %cst_152 = arith.constant 1.000000e+00 : f32
    %462 = vector.broadcast %cst_152 : f32 to vector<2x32xf32>
    %463 = arith.divf %462, %461 : vector<2x32xf32>
    %464 = arith.mulf %453, %398 : vector<2x32xf32>
    %465 = arith.mulf %445, %455 : vector<2x32xf32>
    %466 = arith.addf %464, %465 : vector<2x32xf32>
    %467 = math.tanh %466 : vector<2x32xf32>
    %468 = arith.mulf %463, %467 : vector<2x32xf32>
    %469 = vector.extract_strided_slice %21 {offsets = [2, 0], sizes = [2, 128], strides = [1, 1]} : vector<16x128xf32> to vector<2x128xf32>
    %cst_153 = arith.constant dense<0.000000e+00> : vector<2x128xf32>
    %470 = tpu.matmul %434, %25, %cst_153 {dimension_numbers = #tpu.dot_dimension_numbers<[1], [0], [0], [1], [0, 0, 1, 1], [], []>} : vector<2x32xf32>, vector<32x128xf32>, vector<2x128xf32> -> vector<2x128xf32>
    %471 = arith.addf %469, %470 : vector<2x128xf32>
    %472 = vector.extract_strided_slice %471 {offsets = [0, 0], sizes = [2, 32], strides = [1, 1]} : vector<2x128xf32> to vector<2x32xf32>
    %cst_154 = arith.constant 0.000000e+00 : f32
    %473 = vector.broadcast %cst_154 : f32 to vector<2x32xf32>
    %474 = arith.subf %473, %472 : vector<2x32xf32>
    %475 = math.exp %474 : vector<2x32xf32>
    %cst_155 = arith.constant 1.000000e+00 : f32
    %476 = vector.broadcast %cst_155 : f32 to vector<2x32xf32>
    %477 = arith.addf %476, %475 : vector<2x32xf32>
    %cst_156 = arith.constant 1.000000e+00 : f32
    %478 = vector.broadcast %cst_156 : f32 to vector<2x32xf32>
    %479 = arith.divf %478, %477 : vector<2x32xf32>
    %480 = vector.extract_strided_slice %471 {offsets = [0, 32], sizes = [2, 32], strides = [1, 1]} : vector<2x128xf32> to vector<2x32xf32>
    %cst_157 = arith.constant 0.000000e+00 : f32
    %481 = vector.broadcast %cst_157 : f32 to vector<2x32xf32>
    %482 = arith.subf %481, %480 : vector<2x32xf32>
    %483 = math.exp %482 : vector<2x32xf32>
    %cst_158 = arith.constant 1.000000e+00 : f32
    %484 = vector.broadcast %cst_158 : f32 to vector<2x32xf32>
    %485 = arith.addf %484, %483 : vector<2x32xf32>
    %cst_159 = arith.constant 1.000000e+00 : f32
    %486 = vector.broadcast %cst_159 : f32 to vector<2x32xf32>
    %487 = arith.divf %486, %485 : vector<2x32xf32>
    %488 = vector.extract_strided_slice %471 {offsets = [0, 64], sizes = [2, 32], strides = [1, 1]} : vector<2x128xf32> to vector<2x32xf32>
    %489 = math.tanh %488 : vector<2x32xf32>
    %490 = vector.extract_strided_slice %471 {offsets = [0, 96], sizes = [2, 32], strides = [1, 1]} : vector<2x128xf32> to vector<2x32xf32>
    %cst_160 = arith.constant 0.000000e+00 : f32
    %491 = vector.broadcast %cst_160 : f32 to vector<2x32xf32>
    %492 = arith.subf %491, %490 : vector<2x32xf32>
    %493 = math.exp %492 : vector<2x32xf32>
    %cst_161 = arith.constant 1.000000e+00 : f32
    %494 = vector.broadcast %cst_161 : f32 to vector<2x32xf32>
    %495 = arith.addf %494, %493 : vector<2x32xf32>
    %cst_162 = arith.constant 1.000000e+00 : f32
    %496 = vector.broadcast %cst_162 : f32 to vector<2x32xf32>
    %497 = arith.divf %496, %495 : vector<2x32xf32>
    %498 = arith.mulf %487, %432 : vector<2x32xf32>
    %499 = arith.mulf %479, %489 : vector<2x32xf32>
    %500 = arith.addf %498, %499 : vector<2x32xf32>
    %501 = math.tanh %500 : vector<2x32xf32>
    %502 = arith.mulf %497, %501 : vector<2x32xf32>
    %503 = vector.extract_strided_slice %14 {offsets = [14, 0], sizes = [2, 128], strides = [1, 1]} : vector<16x128xf32> to vector<2x128xf32>
    %cst_163 = arith.constant dense<0.000000e+00> : vector<2x128xf32>
    %504 = tpu.matmul %468, %23, %cst_163 {dimension_numbers = #tpu.dot_dimension_numbers<[1], [0], [0], [1], [0, 0, 1, 1], [], []>} : vector<2x32xf32>, vector<32x128xf32>, vector<2x128xf32> -> vector<2x128xf32>
    %505 = arith.addf %503, %504 : vector<2x128xf32>
    %506 = vector.extract_strided_slice %505 {offsets = [0, 0], sizes = [2, 32], strides = [1, 1]} : vector<2x128xf32> to vector<2x32xf32>
    %cst_164 = arith.constant 0.000000e+00 : f32
    %507 = vector.broadcast %cst_164 : f32 to vector<2x32xf32>
    %508 = arith.subf %507, %506 : vector<2x32xf32>
    %509 = math.exp %508 : vector<2x32xf32>
    %cst_165 = arith.constant 1.000000e+00 : f32
    %510 = vector.broadcast %cst_165 : f32 to vector<2x32xf32>
    %511 = arith.addf %510, %509 : vector<2x32xf32>
    %cst_166 = arith.constant 1.000000e+00 : f32
    %512 = vector.broadcast %cst_166 : f32 to vector<2x32xf32>
    %513 = arith.divf %512, %511 : vector<2x32xf32>
    %514 = vector.extract_strided_slice %505 {offsets = [0, 32], sizes = [2, 32], strides = [1, 1]} : vector<2x128xf32> to vector<2x32xf32>
    %cst_167 = arith.constant 0.000000e+00 : f32
    %515 = vector.broadcast %cst_167 : f32 to vector<2x32xf32>
    %516 = arith.subf %515, %514 : vector<2x32xf32>
    %517 = math.exp %516 : vector<2x32xf32>
    %cst_168 = arith.constant 1.000000e+00 : f32
    %518 = vector.broadcast %cst_168 : f32 to vector<2x32xf32>
    %519 = arith.addf %518, %517 : vector<2x32xf32>
    %cst_169 = arith.constant 1.000000e+00 : f32
    %520 = vector.broadcast %cst_169 : f32 to vector<2x32xf32>
    %521 = arith.divf %520, %519 : vector<2x32xf32>
    %522 = vector.extract_strided_slice %505 {offsets = [0, 64], sizes = [2, 32], strides = [1, 1]} : vector<2x128xf32> to vector<2x32xf32>
    %523 = math.tanh %522 : vector<2x32xf32>
    %524 = vector.extract_strided_slice %505 {offsets = [0, 96], sizes = [2, 32], strides = [1, 1]} : vector<2x128xf32> to vector<2x32xf32>
    %cst_170 = arith.constant 0.000000e+00 : f32
    %525 = vector.broadcast %cst_170 : f32 to vector<2x32xf32>
    %526 = arith.subf %525, %524 : vector<2x32xf32>
    %527 = math.exp %526 : vector<2x32xf32>
    %cst_171 = arith.constant 1.000000e+00 : f32
    %528 = vector.broadcast %cst_171 : f32 to vector<2x32xf32>
    %529 = arith.addf %528, %527 : vector<2x32xf32>
    %cst_172 = arith.constant 1.000000e+00 : f32
    %530 = vector.broadcast %cst_172 : f32 to vector<2x32xf32>
    %531 = arith.divf %530, %529 : vector<2x32xf32>
    %532 = arith.mulf %521, %466 : vector<2x32xf32>
    %533 = arith.mulf %513, %523 : vector<2x32xf32>
    %534 = arith.addf %532, %533 : vector<2x32xf32>
    %535 = math.tanh %534 : vector<2x32xf32>
    %536 = arith.mulf %531, %535 : vector<2x32xf32>
    %537 = vector.extract_strided_slice %21 {offsets = [0, 0], sizes = [2, 128], strides = [1, 1]} : vector<16x128xf32> to vector<2x128xf32>
    %cst_173 = arith.constant dense<0.000000e+00> : vector<2x128xf32>
    %538 = tpu.matmul %502, %25, %cst_173 {dimension_numbers = #tpu.dot_dimension_numbers<[1], [0], [0], [1], [0, 0, 1, 1], [], []>} : vector<2x32xf32>, vector<32x128xf32>, vector<2x128xf32> -> vector<2x128xf32>
    %539 = arith.addf %537, %538 : vector<2x128xf32>
    %540 = vector.extract_strided_slice %539 {offsets = [0, 0], sizes = [2, 32], strides = [1, 1]} : vector<2x128xf32> to vector<2x32xf32>
    %cst_174 = arith.constant 0.000000e+00 : f32
    %541 = vector.broadcast %cst_174 : f32 to vector<2x32xf32>
    %542 = arith.subf %541, %540 : vector<2x32xf32>
    %543 = math.exp %542 : vector<2x32xf32>
    %cst_175 = arith.constant 1.000000e+00 : f32
    %544 = vector.broadcast %cst_175 : f32 to vector<2x32xf32>
    %545 = arith.addf %544, %543 : vector<2x32xf32>
    %cst_176 = arith.constant 1.000000e+00 : f32
    %546 = vector.broadcast %cst_176 : f32 to vector<2x32xf32>
    %547 = arith.divf %546, %545 : vector<2x32xf32>
    %548 = vector.extract_strided_slice %539 {offsets = [0, 32], sizes = [2, 32], strides = [1, 1]} : vector<2x128xf32> to vector<2x32xf32>
    %cst_177 = arith.constant 0.000000e+00 : f32
    %549 = vector.broadcast %cst_177 : f32 to vector<2x32xf32>
    %550 = arith.subf %549, %548 : vector<2x32xf32>
    %551 = math.exp %550 : vector<2x32xf32>
    %cst_178 = arith.constant 1.000000e+00 : f32
    %552 = vector.broadcast %cst_178 : f32 to vector<2x32xf32>
    %553 = arith.addf %552, %551 : vector<2x32xf32>
    %cst_179 = arith.constant 1.000000e+00 : f32
    %554 = vector.broadcast %cst_179 : f32 to vector<2x32xf32>
    %555 = arith.divf %554, %553 : vector<2x32xf32>
    %556 = vector.extract_strided_slice %539 {offsets = [0, 64], sizes = [2, 32], strides = [1, 1]} : vector<2x128xf32> to vector<2x32xf32>
    %557 = math.tanh %556 : vector<2x32xf32>
    %558 = vector.extract_strided_slice %539 {offsets = [0, 96], sizes = [2, 32], strides = [1, 1]} : vector<2x128xf32> to vector<2x32xf32>
    %cst_180 = arith.constant 0.000000e+00 : f32
    %559 = vector.broadcast %cst_180 : f32 to vector<2x32xf32>
    %560 = arith.subf %559, %558 : vector<2x32xf32>
    %561 = math.exp %560 : vector<2x32xf32>
    %cst_181 = arith.constant 1.000000e+00 : f32
    %562 = vector.broadcast %cst_181 : f32 to vector<2x32xf32>
    %563 = arith.addf %562, %561 : vector<2x32xf32>
    %cst_182 = arith.constant 1.000000e+00 : f32
    %564 = vector.broadcast %cst_182 : f32 to vector<2x32xf32>
    %565 = arith.divf %564, %563 : vector<2x32xf32>
    %566 = arith.mulf %555, %500 : vector<2x32xf32>
    %567 = arith.mulf %547, %557 : vector<2x32xf32>
    %568 = arith.addf %566, %567 : vector<2x32xf32>
    %569 = math.tanh %568 : vector<2x32xf32>
    %570 = arith.mulf %565, %569 : vector<2x32xf32>
    %571 = tpu.concatenate %60, %570 in 1 : vector<2x32xf32>, vector<2x32xf32> -> vector<2x64xf32>
    %572 = tpu.concatenate %128, %502 in 1 : vector<2x32xf32>, vector<2x32xf32> -> vector<2x64xf32>
    %573 = tpu.concatenate %196, %434 in 1 : vector<2x32xf32>, vector<2x32xf32> -> vector<2x64xf32>
    %574 = tpu.concatenate %264, %366 in 1 : vector<2x32xf32>, vector<2x32xf32> -> vector<2x64xf32>
    %575 = tpu.concatenate %332, %298 in 1 : vector<2x32xf32>, vector<2x32xf32> -> vector<2x64xf32>
    %576 = tpu.concatenate %400, %230 in 1 : vector<2x32xf32>, vector<2x32xf32> -> vector<2x64xf32>
    %577 = tpu.concatenate %468, %162 in 1 : vector<2x32xf32>, vector<2x32xf32> -> vector<2x64xf32>
    %578 = tpu.concatenate %536, %94 in 1 : vector<2x32xf32>, vector<2x32xf32> -> vector<2x64xf32>
    %579 = tpu.concatenate %571, %572, %573, %574, %575, %576, %577, %578 in 0 : vector<2x64xf32>, vector<2x64xf32>, vector<2x64xf32>, vector<2x64xf32>, vector<2x64xf32>, vector<2x64xf32>, vector<2x64xf32>, vector<2x64xf32> -> vector<16x64xf32>
    %c0_183 = arith.constant 0 : index
    %c0_184 = arith.constant 0 : index
    %c0_185 = arith.constant 0 : index
    %580 = vector.load %arg5[%c0_183, %c0_184, %c0_185] : memref<2x64x128xf32, #tpu.memory_space<vmem>>, vector<1x64x128xf32>
    %581 = vector.shape_cast %580 : vector<1x64x128xf32> to vector<64x128xf32>
    %cst_186 = arith.constant dense<0.000000e+00> : vector<16x128xf32>
    %582 = tpu.matmul %579, %581, %cst_186 {dimension_numbers = #tpu.dot_dimension_numbers<[1], [0], [0], [1], [0, 0, 1, 1], [], []>} : vector<16x64xf32>, vector<64x128xf32>, vector<16x128xf32> -> vector<16x128xf32>
    %c0_187 = arith.constant 0 : index
    %c0_188 = arith.constant 0 : index
    %c0_189 = arith.constant 0 : index
    %583 = vector.load %arg7[%c0_187, %c0_188, %c0_189] : memref<2x1x128xf32, #tpu.memory_space<vmem>>, vector<1x1x128xf32>
    %584 = vector.shape_cast %583 : vector<1x1x128xf32> to vector<1x128xf32>
    %585 = vector.broadcast %584 : vector<1x128xf32> to vector<16x128xf32>
    %586 = arith.addf %582, %585 : vector<16x128xf32>
    %c1_190 = arith.constant 1 : index
    %c0_191 = arith.constant 0 : index
    %c0_192 = arith.constant 0 : index
    %587 = vector.load %arg5[%c1_190, %c0_191, %c0_192] : memref<2x64x128xf32, #tpu.memory_space<vmem>>, vector<1x64x128xf32>
    %588 = vector.shape_cast %587 : vector<1x64x128xf32> to vector<64x128xf32>
    %cst_193 = arith.constant dense<0.000000e+00> : vector<16x128xf32>
    %589 = tpu.matmul %579, %588, %cst_193 {dimension_numbers = #tpu.dot_dimension_numbers<[1], [0], [0], [1], [0, 0, 1, 1], [], []>} : vector<16x64xf32>, vector<64x128xf32>, vector<16x128xf32> -> vector<16x128xf32>
    %c1_194 = arith.constant 1 : index
    %c0_195 = arith.constant 0 : index
    %c0_196 = arith.constant 0 : index
    %590 = vector.load %arg7[%c1_194, %c0_195, %c0_196] : memref<2x1x128xf32, #tpu.memory_space<vmem>>, vector<1x1x128xf32>
    %591 = vector.shape_cast %590 : vector<1x1x128xf32> to vector<1x128xf32>
    %592 = vector.broadcast %591 : vector<1x128xf32> to vector<16x128xf32>
    %593 = arith.addf %589, %592 : vector<16x128xf32>
    %c0_197 = arith.constant 0 : index
    %c0_198 = arith.constant 0 : index
    %c0_199 = arith.constant 0 : index
    %594 = vector.load %arg6[%c0_197, %c0_198, %c0_199] : memref<2x32x128xf32, #tpu.memory_space<vmem>>, vector<1x32x128xf32>
    %595 = vector.shape_cast %594 : vector<1x32x128xf32> to vector<32x128xf32>
    %c1_200 = arith.constant 1 : index
    %c0_201 = arith.constant 0 : index
    %c0_202 = arith.constant 0 : index
    %596 = vector.load %arg6[%c1_200, %c0_201, %c0_202] : memref<2x32x128xf32, #tpu.memory_space<vmem>>, vector<1x32x128xf32>
    %597 = vector.shape_cast %596 : vector<1x32x128xf32> to vector<32x128xf32>
    %cst_203 = arith.constant 0.000000e+00 : f32
    %598 = vector.broadcast %cst_203 : f32 to vector<2x32xf32>
    %599 = vector.extract_strided_slice %586 {offsets = [0, 0], sizes = [2, 128], strides = [1, 1]} : vector<16x128xf32> to vector<2x128xf32>
    %cst_204 = arith.constant dense<0.000000e+00> : vector<2x128xf32>
    %600 = tpu.matmul %598, %595, %cst_204 {dimension_numbers = #tpu.dot_dimension_numbers<[1], [0], [0], [1], [0, 0, 1, 1], [], []>} : vector<2x32xf32>, vector<32x128xf32>, vector<2x128xf32> -> vector<2x128xf32>
    %601 = arith.addf %599, %600 : vector<2x128xf32>
    %602 = vector.extract_strided_slice %601 {offsets = [0, 0], sizes = [2, 32], strides = [1, 1]} : vector<2x128xf32> to vector<2x32xf32>
    %cst_205 = arith.constant 0.000000e+00 : f32
    %603 = vector.broadcast %cst_205 : f32 to vector<2x32xf32>
    %604 = arith.subf %603, %602 : vector<2x32xf32>
    %605 = math.exp %604 : vector<2x32xf32>
    %cst_206 = arith.constant 1.000000e+00 : f32
    %606 = vector.broadcast %cst_206 : f32 to vector<2x32xf32>
    %607 = arith.addf %606, %605 : vector<2x32xf32>
    %cst_207 = arith.constant 1.000000e+00 : f32
    %608 = vector.broadcast %cst_207 : f32 to vector<2x32xf32>
    %609 = arith.divf %608, %607 : vector<2x32xf32>
    %610 = vector.extract_strided_slice %601 {offsets = [0, 32], sizes = [2, 32], strides = [1, 1]} : vector<2x128xf32> to vector<2x32xf32>
    %cst_208 = arith.constant 0.000000e+00 : f32
    %611 = vector.broadcast %cst_208 : f32 to vector<2x32xf32>
    %612 = arith.subf %611, %610 : vector<2x32xf32>
    %613 = math.exp %612 : vector<2x32xf32>
    %cst_209 = arith.constant 1.000000e+00 : f32
    %614 = vector.broadcast %cst_209 : f32 to vector<2x32xf32>
    %615 = arith.addf %614, %613 : vector<2x32xf32>
    %cst_210 = arith.constant 1.000000e+00 : f32
    %616 = vector.broadcast %cst_210 : f32 to vector<2x32xf32>
    %617 = arith.divf %616, %615 : vector<2x32xf32>
    %618 = vector.extract_strided_slice %601 {offsets = [0, 64], sizes = [2, 32], strides = [1, 1]} : vector<2x128xf32> to vector<2x32xf32>
    %619 = math.tanh %618 : vector<2x32xf32>
    %620 = vector.extract_strided_slice %601 {offsets = [0, 96], sizes = [2, 32], strides = [1, 1]} : vector<2x128xf32> to vector<2x32xf32>
    %cst_211 = arith.constant 0.000000e+00 : f32
    %621 = vector.broadcast %cst_211 : f32 to vector<2x32xf32>
    %622 = arith.subf %621, %620 : vector<2x32xf32>
    %623 = math.exp %622 : vector<2x32xf32>
    %cst_212 = arith.constant 1.000000e+00 : f32
    %624 = vector.broadcast %cst_212 : f32 to vector<2x32xf32>
    %625 = arith.addf %624, %623 : vector<2x32xf32>
    %cst_213 = arith.constant 1.000000e+00 : f32
    %626 = vector.broadcast %cst_213 : f32 to vector<2x32xf32>
    %627 = arith.divf %626, %625 : vector<2x32xf32>
    %628 = arith.mulf %617, %598 : vector<2x32xf32>
    %629 = arith.mulf %609, %619 : vector<2x32xf32>
    %630 = arith.addf %628, %629 : vector<2x32xf32>
    %631 = math.tanh %630 : vector<2x32xf32>
    %632 = arith.mulf %627, %631 : vector<2x32xf32>
    %633 = vector.extract_strided_slice %593 {offsets = [14, 0], sizes = [2, 128], strides = [1, 1]} : vector<16x128xf32> to vector<2x128xf32>
    %cst_214 = arith.constant dense<0.000000e+00> : vector<2x128xf32>
    %634 = tpu.matmul %598, %597, %cst_214 {dimension_numbers = #tpu.dot_dimension_numbers<[1], [0], [0], [1], [0, 0, 1, 1], [], []>} : vector<2x32xf32>, vector<32x128xf32>, vector<2x128xf32> -> vector<2x128xf32>
    %635 = arith.addf %633, %634 : vector<2x128xf32>
    %636 = vector.extract_strided_slice %635 {offsets = [0, 0], sizes = [2, 32], strides = [1, 1]} : vector<2x128xf32> to vector<2x32xf32>
    %cst_215 = arith.constant 0.000000e+00 : f32
    %637 = vector.broadcast %cst_215 : f32 to vector<2x32xf32>
    %638 = arith.subf %637, %636 : vector<2x32xf32>
    %639 = math.exp %638 : vector<2x32xf32>
    %cst_216 = arith.constant 1.000000e+00 : f32
    %640 = vector.broadcast %cst_216 : f32 to vector<2x32xf32>
    %641 = arith.addf %640, %639 : vector<2x32xf32>
    %cst_217 = arith.constant 1.000000e+00 : f32
    %642 = vector.broadcast %cst_217 : f32 to vector<2x32xf32>
    %643 = arith.divf %642, %641 : vector<2x32xf32>
    %644 = vector.extract_strided_slice %635 {offsets = [0, 32], sizes = [2, 32], strides = [1, 1]} : vector<2x128xf32> to vector<2x32xf32>
    %cst_218 = arith.constant 0.000000e+00 : f32
    %645 = vector.broadcast %cst_218 : f32 to vector<2x32xf32>
    %646 = arith.subf %645, %644 : vector<2x32xf32>
    %647 = math.exp %646 : vector<2x32xf32>
    %cst_219 = arith.constant 1.000000e+00 : f32
    %648 = vector.broadcast %cst_219 : f32 to vector<2x32xf32>
    %649 = arith.addf %648, %647 : vector<2x32xf32>
    %cst_220 = arith.constant 1.000000e+00 : f32
    %650 = vector.broadcast %cst_220 : f32 to vector<2x32xf32>
    %651 = arith.divf %650, %649 : vector<2x32xf32>
    %652 = vector.extract_strided_slice %635 {offsets = [0, 64], sizes = [2, 32], strides = [1, 1]} : vector<2x128xf32> to vector<2x32xf32>
    %653 = math.tanh %652 : vector<2x32xf32>
    %654 = vector.extract_strided_slice %635 {offsets = [0, 96], sizes = [2, 32], strides = [1, 1]} : vector<2x128xf32> to vector<2x32xf32>
    %cst_221 = arith.constant 0.000000e+00 : f32
    %655 = vector.broadcast %cst_221 : f32 to vector<2x32xf32>
    %656 = arith.subf %655, %654 : vector<2x32xf32>
    %657 = math.exp %656 : vector<2x32xf32>
    %cst_222 = arith.constant 1.000000e+00 : f32
    %658 = vector.broadcast %cst_222 : f32 to vector<2x32xf32>
    %659 = arith.addf %658, %657 : vector<2x32xf32>
    %cst_223 = arith.constant 1.000000e+00 : f32
    %660 = vector.broadcast %cst_223 : f32 to vector<2x32xf32>
    %661 = arith.divf %660, %659 : vector<2x32xf32>
    %662 = arith.mulf %651, %598 : vector<2x32xf32>
    %663 = arith.mulf %643, %653 : vector<2x32xf32>
    %664 = arith.addf %662, %663 : vector<2x32xf32>
    %665 = math.tanh %664 : vector<2x32xf32>
    %666 = arith.mulf %661, %665 : vector<2x32xf32>
    %667 = vector.extract_strided_slice %586 {offsets = [2, 0], sizes = [2, 128], strides = [1, 1]} : vector<16x128xf32> to vector<2x128xf32>
    %cst_224 = arith.constant dense<0.000000e+00> : vector<2x128xf32>
    %668 = tpu.matmul %632, %595, %cst_224 {dimension_numbers = #tpu.dot_dimension_numbers<[1], [0], [0], [1], [0, 0, 1, 1], [], []>} : vector<2x32xf32>, vector<32x128xf32>, vector<2x128xf32> -> vector<2x128xf32>
    %669 = arith.addf %667, %668 : vector<2x128xf32>
    %670 = vector.extract_strided_slice %669 {offsets = [0, 0], sizes = [2, 32], strides = [1, 1]} : vector<2x128xf32> to vector<2x32xf32>
    %cst_225 = arith.constant 0.000000e+00 : f32
    %671 = vector.broadcast %cst_225 : f32 to vector<2x32xf32>
    %672 = arith.subf %671, %670 : vector<2x32xf32>
    %673 = math.exp %672 : vector<2x32xf32>
    %cst_226 = arith.constant 1.000000e+00 : f32
    %674 = vector.broadcast %cst_226 : f32 to vector<2x32xf32>
    %675 = arith.addf %674, %673 : vector<2x32xf32>
    %cst_227 = arith.constant 1.000000e+00 : f32
    %676 = vector.broadcast %cst_227 : f32 to vector<2x32xf32>
    %677 = arith.divf %676, %675 : vector<2x32xf32>
    %678 = vector.extract_strided_slice %669 {offsets = [0, 32], sizes = [2, 32], strides = [1, 1]} : vector<2x128xf32> to vector<2x32xf32>
    %cst_228 = arith.constant 0.000000e+00 : f32
    %679 = vector.broadcast %cst_228 : f32 to vector<2x32xf32>
    %680 = arith.subf %679, %678 : vector<2x32xf32>
    %681 = math.exp %680 : vector<2x32xf32>
    %cst_229 = arith.constant 1.000000e+00 : f32
    %682 = vector.broadcast %cst_229 : f32 to vector<2x32xf32>
    %683 = arith.addf %682, %681 : vector<2x32xf32>
    %cst_230 = arith.constant 1.000000e+00 : f32
    %684 = vector.broadcast %cst_230 : f32 to vector<2x32xf32>
    %685 = arith.divf %684, %683 : vector<2x32xf32>
    %686 = vector.extract_strided_slice %669 {offsets = [0, 64], sizes = [2, 32], strides = [1, 1]} : vector<2x128xf32> to vector<2x32xf32>
    %687 = math.tanh %686 : vector<2x32xf32>
    %688 = vector.extract_strided_slice %669 {offsets = [0, 96], sizes = [2, 32], strides = [1, 1]} : vector<2x128xf32> to vector<2x32xf32>
    %cst_231 = arith.constant 0.000000e+00 : f32
    %689 = vector.broadcast %cst_231 : f32 to vector<2x32xf32>
    %690 = arith.subf %689, %688 : vector<2x32xf32>
    %691 = math.exp %690 : vector<2x32xf32>
    %cst_232 = arith.constant 1.000000e+00 : f32
    %692 = vector.broadcast %cst_232 : f32 to vector<2x32xf32>
    %693 = arith.addf %692, %691 : vector<2x32xf32>
    %cst_233 = arith.constant 1.000000e+00 : f32
    %694 = vector.broadcast %cst_233 : f32 to vector<2x32xf32>
    %695 = arith.divf %694, %693 : vector<2x32xf32>
    %696 = arith.mulf %685, %630 : vector<2x32xf32>
    %697 = arith.mulf %677, %687 : vector<2x32xf32>
    %698 = arith.addf %696, %697 : vector<2x32xf32>
    %699 = math.tanh %698 : vector<2x32xf32>
    %700 = arith.mulf %695, %699 : vector<2x32xf32>
    %701 = vector.extract_strided_slice %593 {offsets = [12, 0], sizes = [2, 128], strides = [1, 1]} : vector<16x128xf32> to vector<2x128xf32>
    %cst_234 = arith.constant dense<0.000000e+00> : vector<2x128xf32>
    %702 = tpu.matmul %666, %597, %cst_234 {dimension_numbers = #tpu.dot_dimension_numbers<[1], [0], [0], [1], [0, 0, 1, 1], [], []>} : vector<2x32xf32>, vector<32x128xf32>, vector<2x128xf32> -> vector<2x128xf32>
    %703 = arith.addf %701, %702 : vector<2x128xf32>
    %704 = vector.extract_strided_slice %703 {offsets = [0, 0], sizes = [2, 32], strides = [1, 1]} : vector<2x128xf32> to vector<2x32xf32>
    %cst_235 = arith.constant 0.000000e+00 : f32
    %705 = vector.broadcast %cst_235 : f32 to vector<2x32xf32>
    %706 = arith.subf %705, %704 : vector<2x32xf32>
    %707 = math.exp %706 : vector<2x32xf32>
    %cst_236 = arith.constant 1.000000e+00 : f32
    %708 = vector.broadcast %cst_236 : f32 to vector<2x32xf32>
    %709 = arith.addf %708, %707 : vector<2x32xf32>
    %cst_237 = arith.constant 1.000000e+00 : f32
    %710 = vector.broadcast %cst_237 : f32 to vector<2x32xf32>
    %711 = arith.divf %710, %709 : vector<2x32xf32>
    %712 = vector.extract_strided_slice %703 {offsets = [0, 32], sizes = [2, 32], strides = [1, 1]} : vector<2x128xf32> to vector<2x32xf32>
    %cst_238 = arith.constant 0.000000e+00 : f32
    %713 = vector.broadcast %cst_238 : f32 to vector<2x32xf32>
    %714 = arith.subf %713, %712 : vector<2x32xf32>
    %715 = math.exp %714 : vector<2x32xf32>
    %cst_239 = arith.constant 1.000000e+00 : f32
    %716 = vector.broadcast %cst_239 : f32 to vector<2x32xf32>
    %717 = arith.addf %716, %715 : vector<2x32xf32>
    %cst_240 = arith.constant 1.000000e+00 : f32
    %718 = vector.broadcast %cst_240 : f32 to vector<2x32xf32>
    %719 = arith.divf %718, %717 : vector<2x32xf32>
    %720 = vector.extract_strided_slice %703 {offsets = [0, 64], sizes = [2, 32], strides = [1, 1]} : vector<2x128xf32> to vector<2x32xf32>
    %721 = math.tanh %720 : vector<2x32xf32>
    %722 = vector.extract_strided_slice %703 {offsets = [0, 96], sizes = [2, 32], strides = [1, 1]} : vector<2x128xf32> to vector<2x32xf32>
    %cst_241 = arith.constant 0.000000e+00 : f32
    %723 = vector.broadcast %cst_241 : f32 to vector<2x32xf32>
    %724 = arith.subf %723, %722 : vector<2x32xf32>
    %725 = math.exp %724 : vector<2x32xf32>
    %cst_242 = arith.constant 1.000000e+00 : f32
    %726 = vector.broadcast %cst_242 : f32 to vector<2x32xf32>
    %727 = arith.addf %726, %725 : vector<2x32xf32>
    %cst_243 = arith.constant 1.000000e+00 : f32
    %728 = vector.broadcast %cst_243 : f32 to vector<2x32xf32>
    %729 = arith.divf %728, %727 : vector<2x32xf32>
    %730 = arith.mulf %719, %664 : vector<2x32xf32>
    %731 = arith.mulf %711, %721 : vector<2x32xf32>
    %732 = arith.addf %730, %731 : vector<2x32xf32>
    %733 = math.tanh %732 : vector<2x32xf32>
    %734 = arith.mulf %729, %733 : vector<2x32xf32>
    %735 = vector.extract_strided_slice %586 {offsets = [4, 0], sizes = [2, 128], strides = [1, 1]} : vector<16x128xf32> to vector<2x128xf32>
    %cst_244 = arith.constant dense<0.000000e+00> : vector<2x128xf32>
    %736 = tpu.matmul %700, %595, %cst_244 {dimension_numbers = #tpu.dot_dimension_numbers<[1], [0], [0], [1], [0, 0, 1, 1], [], []>} : vector<2x32xf32>, vector<32x128xf32>, vector<2x128xf32> -> vector<2x128xf32>
    %737 = arith.addf %735, %736 : vector<2x128xf32>
    %738 = vector.extract_strided_slice %737 {offsets = [0, 0], sizes = [2, 32], strides = [1, 1]} : vector<2x128xf32> to vector<2x32xf32>
    %cst_245 = arith.constant 0.000000e+00 : f32
    %739 = vector.broadcast %cst_245 : f32 to vector<2x32xf32>
    %740 = arith.subf %739, %738 : vector<2x32xf32>
    %741 = math.exp %740 : vector<2x32xf32>
    %cst_246 = arith.constant 1.000000e+00 : f32
    %742 = vector.broadcast %cst_246 : f32 to vector<2x32xf32>
    %743 = arith.addf %742, %741 : vector<2x32xf32>
    %cst_247 = arith.constant 1.000000e+00 : f32
    %744 = vector.broadcast %cst_247 : f32 to vector<2x32xf32>
    %745 = arith.divf %744, %743 : vector<2x32xf32>
    %746 = vector.extract_strided_slice %737 {offsets = [0, 32], sizes = [2, 32], strides = [1, 1]} : vector<2x128xf32> to vector<2x32xf32>
    %cst_248 = arith.constant 0.000000e+00 : f32
    %747 = vector.broadcast %cst_248 : f32 to vector<2x32xf32>
    %748 = arith.subf %747, %746 : vector<2x32xf32>
    %749 = math.exp %748 : vector<2x32xf32>
    %cst_249 = arith.constant 1.000000e+00 : f32
    %750 = vector.broadcast %cst_249 : f32 to vector<2x32xf32>
    %751 = arith.addf %750, %749 : vector<2x32xf32>
    %cst_250 = arith.constant 1.000000e+00 : f32
    %752 = vector.broadcast %cst_250 : f32 to vector<2x32xf32>
    %753 = arith.divf %752, %751 : vector<2x32xf32>
    %754 = vector.extract_strided_slice %737 {offsets = [0, 64], sizes = [2, 32], strides = [1, 1]} : vector<2x128xf32> to vector<2x32xf32>
    %755 = math.tanh %754 : vector<2x32xf32>
    %756 = vector.extract_strided_slice %737 {offsets = [0, 96], sizes = [2, 32], strides = [1, 1]} : vector<2x128xf32> to vector<2x32xf32>
    %cst_251 = arith.constant 0.000000e+00 : f32
    %757 = vector.broadcast %cst_251 : f32 to vector<2x32xf32>
    %758 = arith.subf %757, %756 : vector<2x32xf32>
    %759 = math.exp %758 : vector<2x32xf32>
    %cst_252 = arith.constant 1.000000e+00 : f32
    %760 = vector.broadcast %cst_252 : f32 to vector<2x32xf32>
    %761 = arith.addf %760, %759 : vector<2x32xf32>
    %cst_253 = arith.constant 1.000000e+00 : f32
    %762 = vector.broadcast %cst_253 : f32 to vector<2x32xf32>
    %763 = arith.divf %762, %761 : vector<2x32xf32>
    %764 = arith.mulf %753, %698 : vector<2x32xf32>
    %765 = arith.mulf %745, %755 : vector<2x32xf32>
    %766 = arith.addf %764, %765 : vector<2x32xf32>
    %767 = math.tanh %766 : vector<2x32xf32>
    %768 = arith.mulf %763, %767 : vector<2x32xf32>
    %769 = vector.extract_strided_slice %593 {offsets = [10, 0], sizes = [2, 128], strides = [1, 1]} : vector<16x128xf32> to vector<2x128xf32>
    %cst_254 = arith.constant dense<0.000000e+00> : vector<2x128xf32>
    %770 = tpu.matmul %734, %597, %cst_254 {dimension_numbers = #tpu.dot_dimension_numbers<[1], [0], [0], [1], [0, 0, 1, 1], [], []>} : vector<2x32xf32>, vector<32x128xf32>, vector<2x128xf32> -> vector<2x128xf32>
    %771 = arith.addf %769, %770 : vector<2x128xf32>
    %772 = vector.extract_strided_slice %771 {offsets = [0, 0], sizes = [2, 32], strides = [1, 1]} : vector<2x128xf32> to vector<2x32xf32>
    %cst_255 = arith.constant 0.000000e+00 : f32
    %773 = vector.broadcast %cst_255 : f32 to vector<2x32xf32>
    %774 = arith.subf %773, %772 : vector<2x32xf32>
    %775 = math.exp %774 : vector<2x32xf32>
    %cst_256 = arith.constant 1.000000e+00 : f32
    %776 = vector.broadcast %cst_256 : f32 to vector<2x32xf32>
    %777 = arith.addf %776, %775 : vector<2x32xf32>
    %cst_257 = arith.constant 1.000000e+00 : f32
    %778 = vector.broadcast %cst_257 : f32 to vector<2x32xf32>
    %779 = arith.divf %778, %777 : vector<2x32xf32>
    %780 = vector.extract_strided_slice %771 {offsets = [0, 32], sizes = [2, 32], strides = [1, 1]} : vector<2x128xf32> to vector<2x32xf32>
    %cst_258 = arith.constant 0.000000e+00 : f32
    %781 = vector.broadcast %cst_258 : f32 to vector<2x32xf32>
    %782 = arith.subf %781, %780 : vector<2x32xf32>
    %783 = math.exp %782 : vector<2x32xf32>
    %cst_259 = arith.constant 1.000000e+00 : f32
    %784 = vector.broadcast %cst_259 : f32 to vector<2x32xf32>
    %785 = arith.addf %784, %783 : vector<2x32xf32>
    %cst_260 = arith.constant 1.000000e+00 : f32
    %786 = vector.broadcast %cst_260 : f32 to vector<2x32xf32>
    %787 = arith.divf %786, %785 : vector<2x32xf32>
    %788 = vector.extract_strided_slice %771 {offsets = [0, 64], sizes = [2, 32], strides = [1, 1]} : vector<2x128xf32> to vector<2x32xf32>
    %789 = math.tanh %788 : vector<2x32xf32>
    %790 = vector.extract_strided_slice %771 {offsets = [0, 96], sizes = [2, 32], strides = [1, 1]} : vector<2x128xf32> to vector<2x32xf32>
    %cst_261 = arith.constant 0.000000e+00 : f32
    %791 = vector.broadcast %cst_261 : f32 to vector<2x32xf32>
    %792 = arith.subf %791, %790 : vector<2x32xf32>
    %793 = math.exp %792 : vector<2x32xf32>
    %cst_262 = arith.constant 1.000000e+00 : f32
    %794 = vector.broadcast %cst_262 : f32 to vector<2x32xf32>
    %795 = arith.addf %794, %793 : vector<2x32xf32>
    %cst_263 = arith.constant 1.000000e+00 : f32
    %796 = vector.broadcast %cst_263 : f32 to vector<2x32xf32>
    %797 = arith.divf %796, %795 : vector<2x32xf32>
    %798 = arith.mulf %787, %732 : vector<2x32xf32>
    %799 = arith.mulf %779, %789 : vector<2x32xf32>
    %800 = arith.addf %798, %799 : vector<2x32xf32>
    %801 = math.tanh %800 : vector<2x32xf32>
    %802 = arith.mulf %797, %801 : vector<2x32xf32>
    %803 = vector.extract_strided_slice %586 {offsets = [6, 0], sizes = [2, 128], strides = [1, 1]} : vector<16x128xf32> to vector<2x128xf32>
    %cst_264 = arith.constant dense<0.000000e+00> : vector<2x128xf32>
    %804 = tpu.matmul %768, %595, %cst_264 {dimension_numbers = #tpu.dot_dimension_numbers<[1], [0], [0], [1], [0, 0, 1, 1], [], []>} : vector<2x32xf32>, vector<32x128xf32>, vector<2x128xf32> -> vector<2x128xf32>
    %805 = arith.addf %803, %804 : vector<2x128xf32>
    %806 = vector.extract_strided_slice %805 {offsets = [0, 0], sizes = [2, 32], strides = [1, 1]} : vector<2x128xf32> to vector<2x32xf32>
    %cst_265 = arith.constant 0.000000e+00 : f32
    %807 = vector.broadcast %cst_265 : f32 to vector<2x32xf32>
    %808 = arith.subf %807, %806 : vector<2x32xf32>
    %809 = math.exp %808 : vector<2x32xf32>
    %cst_266 = arith.constant 1.000000e+00 : f32
    %810 = vector.broadcast %cst_266 : f32 to vector<2x32xf32>
    %811 = arith.addf %810, %809 : vector<2x32xf32>
    %cst_267 = arith.constant 1.000000e+00 : f32
    %812 = vector.broadcast %cst_267 : f32 to vector<2x32xf32>
    %813 = arith.divf %812, %811 : vector<2x32xf32>
    %814 = vector.extract_strided_slice %805 {offsets = [0, 32], sizes = [2, 32], strides = [1, 1]} : vector<2x128xf32> to vector<2x32xf32>
    %cst_268 = arith.constant 0.000000e+00 : f32
    %815 = vector.broadcast %cst_268 : f32 to vector<2x32xf32>
    %816 = arith.subf %815, %814 : vector<2x32xf32>
    %817 = math.exp %816 : vector<2x32xf32>
    %cst_269 = arith.constant 1.000000e+00 : f32
    %818 = vector.broadcast %cst_269 : f32 to vector<2x32xf32>
    %819 = arith.addf %818, %817 : vector<2x32xf32>
    %cst_270 = arith.constant 1.000000e+00 : f32
    %820 = vector.broadcast %cst_270 : f32 to vector<2x32xf32>
    %821 = arith.divf %820, %819 : vector<2x32xf32>
    %822 = vector.extract_strided_slice %805 {offsets = [0, 64], sizes = [2, 32], strides = [1, 1]} : vector<2x128xf32> to vector<2x32xf32>
    %823 = math.tanh %822 : vector<2x32xf32>
    %824 = vector.extract_strided_slice %805 {offsets = [0, 96], sizes = [2, 32], strides = [1, 1]} : vector<2x128xf32> to vector<2x32xf32>
    %cst_271 = arith.constant 0.000000e+00 : f32
    %825 = vector.broadcast %cst_271 : f32 to vector<2x32xf32>
    %826 = arith.subf %825, %824 : vector<2x32xf32>
    %827 = math.exp %826 : vector<2x32xf32>
    %cst_272 = arith.constant 1.000000e+00 : f32
    %828 = vector.broadcast %cst_272 : f32 to vector<2x32xf32>
    %829 = arith.addf %828, %827 : vector<2x32xf32>
    %cst_273 = arith.constant 1.000000e+00 : f32
    %830 = vector.broadcast %cst_273 : f32 to vector<2x32xf32>
    %831 = arith.divf %830, %829 : vector<2x32xf32>
    %832 = arith.mulf %821, %766 : vector<2x32xf32>
    %833 = arith.mulf %813, %823 : vector<2x32xf32>
    %834 = arith.addf %832, %833 : vector<2x32xf32>
    %835 = math.tanh %834 : vector<2x32xf32>
    %836 = arith.mulf %831, %835 : vector<2x32xf32>
    %837 = vector.extract_strided_slice %593 {offsets = [8, 0], sizes = [2, 128], strides = [1, 1]} : vector<16x128xf32> to vector<2x128xf32>
    %cst_274 = arith.constant dense<0.000000e+00> : vector<2x128xf32>
    %838 = tpu.matmul %802, %597, %cst_274 {dimension_numbers = #tpu.dot_dimension_numbers<[1], [0], [0], [1], [0, 0, 1, 1], [], []>} : vector<2x32xf32>, vector<32x128xf32>, vector<2x128xf32> -> vector<2x128xf32>
    %839 = arith.addf %837, %838 : vector<2x128xf32>
    %840 = vector.extract_strided_slice %839 {offsets = [0, 0], sizes = [2, 32], strides = [1, 1]} : vector<2x128xf32> to vector<2x32xf32>
    %cst_275 = arith.constant 0.000000e+00 : f32
    %841 = vector.broadcast %cst_275 : f32 to vector<2x32xf32>
    %842 = arith.subf %841, %840 : vector<2x32xf32>
    %843 = math.exp %842 : vector<2x32xf32>
    %cst_276 = arith.constant 1.000000e+00 : f32
    %844 = vector.broadcast %cst_276 : f32 to vector<2x32xf32>
    %845 = arith.addf %844, %843 : vector<2x32xf32>
    %cst_277 = arith.constant 1.000000e+00 : f32
    %846 = vector.broadcast %cst_277 : f32 to vector<2x32xf32>
    %847 = arith.divf %846, %845 : vector<2x32xf32>
    %848 = vector.extract_strided_slice %839 {offsets = [0, 32], sizes = [2, 32], strides = [1, 1]} : vector<2x128xf32> to vector<2x32xf32>
    %cst_278 = arith.constant 0.000000e+00 : f32
    %849 = vector.broadcast %cst_278 : f32 to vector<2x32xf32>
    %850 = arith.subf %849, %848 : vector<2x32xf32>
    %851 = math.exp %850 : vector<2x32xf32>
    %cst_279 = arith.constant 1.000000e+00 : f32
    %852 = vector.broadcast %cst_279 : f32 to vector<2x32xf32>
    %853 = arith.addf %852, %851 : vector<2x32xf32>
    %cst_280 = arith.constant 1.000000e+00 : f32
    %854 = vector.broadcast %cst_280 : f32 to vector<2x32xf32>
    %855 = arith.divf %854, %853 : vector<2x32xf32>
    %856 = vector.extract_strided_slice %839 {offsets = [0, 64], sizes = [2, 32], strides = [1, 1]} : vector<2x128xf32> to vector<2x32xf32>
    %857 = math.tanh %856 : vector<2x32xf32>
    %858 = vector.extract_strided_slice %839 {offsets = [0, 96], sizes = [2, 32], strides = [1, 1]} : vector<2x128xf32> to vector<2x32xf32>
    %cst_281 = arith.constant 0.000000e+00 : f32
    %859 = vector.broadcast %cst_281 : f32 to vector<2x32xf32>
    %860 = arith.subf %859, %858 : vector<2x32xf32>
    %861 = math.exp %860 : vector<2x32xf32>
    %cst_282 = arith.constant 1.000000e+00 : f32
    %862 = vector.broadcast %cst_282 : f32 to vector<2x32xf32>
    %863 = arith.addf %862, %861 : vector<2x32xf32>
    %cst_283 = arith.constant 1.000000e+00 : f32
    %864 = vector.broadcast %cst_283 : f32 to vector<2x32xf32>
    %865 = arith.divf %864, %863 : vector<2x32xf32>
    %866 = arith.mulf %855, %800 : vector<2x32xf32>
    %867 = arith.mulf %847, %857 : vector<2x32xf32>
    %868 = arith.addf %866, %867 : vector<2x32xf32>
    %869 = math.tanh %868 : vector<2x32xf32>
    %870 = arith.mulf %865, %869 : vector<2x32xf32>
    %871 = vector.extract_strided_slice %586 {offsets = [8, 0], sizes = [2, 128], strides = [1, 1]} : vector<16x128xf32> to vector<2x128xf32>
    %cst_284 = arith.constant dense<0.000000e+00> : vector<2x128xf32>
    %872 = tpu.matmul %836, %595, %cst_284 {dimension_numbers = #tpu.dot_dimension_numbers<[1], [0], [0], [1], [0, 0, 1, 1], [], []>} : vector<2x32xf32>, vector<32x128xf32>, vector<2x128xf32> -> vector<2x128xf32>
    %873 = arith.addf %871, %872 : vector<2x128xf32>
    %874 = vector.extract_strided_slice %873 {offsets = [0, 0], sizes = [2, 32], strides = [1, 1]} : vector<2x128xf32> to vector<2x32xf32>
    %cst_285 = arith.constant 0.000000e+00 : f32
    %875 = vector.broadcast %cst_285 : f32 to vector<2x32xf32>
    %876 = arith.subf %875, %874 : vector<2x32xf32>
    %877 = math.exp %876 : vector<2x32xf32>
    %cst_286 = arith.constant 1.000000e+00 : f32
    %878 = vector.broadcast %cst_286 : f32 to vector<2x32xf32>
    %879 = arith.addf %878, %877 : vector<2x32xf32>
    %cst_287 = arith.constant 1.000000e+00 : f32
    %880 = vector.broadcast %cst_287 : f32 to vector<2x32xf32>
    %881 = arith.divf %880, %879 : vector<2x32xf32>
    %882 = vector.extract_strided_slice %873 {offsets = [0, 32], sizes = [2, 32], strides = [1, 1]} : vector<2x128xf32> to vector<2x32xf32>
    %cst_288 = arith.constant 0.000000e+00 : f32
    %883 = vector.broadcast %cst_288 : f32 to vector<2x32xf32>
    %884 = arith.subf %883, %882 : vector<2x32xf32>
    %885 = math.exp %884 : vector<2x32xf32>
    %cst_289 = arith.constant 1.000000e+00 : f32
    %886 = vector.broadcast %cst_289 : f32 to vector<2x32xf32>
    %887 = arith.addf %886, %885 : vector<2x32xf32>
    %cst_290 = arith.constant 1.000000e+00 : f32
    %888 = vector.broadcast %cst_290 : f32 to vector<2x32xf32>
    %889 = arith.divf %888, %887 : vector<2x32xf32>
    %890 = vector.extract_strided_slice %873 {offsets = [0, 64], sizes = [2, 32], strides = [1, 1]} : vector<2x128xf32> to vector<2x32xf32>
    %891 = math.tanh %890 : vector<2x32xf32>
    %892 = vector.extract_strided_slice %873 {offsets = [0, 96], sizes = [2, 32], strides = [1, 1]} : vector<2x128xf32> to vector<2x32xf32>
    %cst_291 = arith.constant 0.000000e+00 : f32
    %893 = vector.broadcast %cst_291 : f32 to vector<2x32xf32>
    %894 = arith.subf %893, %892 : vector<2x32xf32>
    %895 = math.exp %894 : vector<2x32xf32>
    %cst_292 = arith.constant 1.000000e+00 : f32
    %896 = vector.broadcast %cst_292 : f32 to vector<2x32xf32>
    %897 = arith.addf %896, %895 : vector<2x32xf32>
    %cst_293 = arith.constant 1.000000e+00 : f32
    %898 = vector.broadcast %cst_293 : f32 to vector<2x32xf32>
    %899 = arith.divf %898, %897 : vector<2x32xf32>
    %900 = arith.mulf %889, %834 : vector<2x32xf32>
    %901 = arith.mulf %881, %891 : vector<2x32xf32>
    %902 = arith.addf %900, %901 : vector<2x32xf32>
    %903 = math.tanh %902 : vector<2x32xf32>
    %904 = arith.mulf %899, %903 : vector<2x32xf32>
    %905 = vector.extract_strided_slice %593 {offsets = [6, 0], sizes = [2, 128], strides = [1, 1]} : vector<16x128xf32> to vector<2x128xf32>
    %cst_294 = arith.constant dense<0.000000e+00> : vector<2x128xf32>
    %906 = tpu.matmul %870, %597, %cst_294 {dimension_numbers = #tpu.dot_dimension_numbers<[1], [0], [0], [1], [0, 0, 1, 1], [], []>} : vector<2x32xf32>, vector<32x128xf32>, vector<2x128xf32> -> vector<2x128xf32>
    %907 = arith.addf %905, %906 : vector<2x128xf32>
    %908 = vector.extract_strided_slice %907 {offsets = [0, 0], sizes = [2, 32], strides = [1, 1]} : vector<2x128xf32> to vector<2x32xf32>
    %cst_295 = arith.constant 0.000000e+00 : f32
    %909 = vector.broadcast %cst_295 : f32 to vector<2x32xf32>
    %910 = arith.subf %909, %908 : vector<2x32xf32>
    %911 = math.exp %910 : vector<2x32xf32>
    %cst_296 = arith.constant 1.000000e+00 : f32
    %912 = vector.broadcast %cst_296 : f32 to vector<2x32xf32>
    %913 = arith.addf %912, %911 : vector<2x32xf32>
    %cst_297 = arith.constant 1.000000e+00 : f32
    %914 = vector.broadcast %cst_297 : f32 to vector<2x32xf32>
    %915 = arith.divf %914, %913 : vector<2x32xf32>
    %916 = vector.extract_strided_slice %907 {offsets = [0, 32], sizes = [2, 32], strides = [1, 1]} : vector<2x128xf32> to vector<2x32xf32>
    %cst_298 = arith.constant 0.000000e+00 : f32
    %917 = vector.broadcast %cst_298 : f32 to vector<2x32xf32>
    %918 = arith.subf %917, %916 : vector<2x32xf32>
    %919 = math.exp %918 : vector<2x32xf32>
    %cst_299 = arith.constant 1.000000e+00 : f32
    %920 = vector.broadcast %cst_299 : f32 to vector<2x32xf32>
    %921 = arith.addf %920, %919 : vector<2x32xf32>
    %cst_300 = arith.constant 1.000000e+00 : f32
    %922 = vector.broadcast %cst_300 : f32 to vector<2x32xf32>
    %923 = arith.divf %922, %921 : vector<2x32xf32>
    %924 = vector.extract_strided_slice %907 {offsets = [0, 64], sizes = [2, 32], strides = [1, 1]} : vector<2x128xf32> to vector<2x32xf32>
    %925 = math.tanh %924 : vector<2x32xf32>
    %926 = vector.extract_strided_slice %907 {offsets = [0, 96], sizes = [2, 32], strides = [1, 1]} : vector<2x128xf32> to vector<2x32xf32>
    %cst_301 = arith.constant 0.000000e+00 : f32
    %927 = vector.broadcast %cst_301 : f32 to vector<2x32xf32>
    %928 = arith.subf %927, %926 : vector<2x32xf32>
    %929 = math.exp %928 : vector<2x32xf32>
    %cst_302 = arith.constant 1.000000e+00 : f32
    %930 = vector.broadcast %cst_302 : f32 to vector<2x32xf32>
    %931 = arith.addf %930, %929 : vector<2x32xf32>
    %cst_303 = arith.constant 1.000000e+00 : f32
    %932 = vector.broadcast %cst_303 : f32 to vector<2x32xf32>
    %933 = arith.divf %932, %931 : vector<2x32xf32>
    %934 = arith.mulf %923, %868 : vector<2x32xf32>
    %935 = arith.mulf %915, %925 : vector<2x32xf32>
    %936 = arith.addf %934, %935 : vector<2x32xf32>
    %937 = math.tanh %936 : vector<2x32xf32>
    %938 = arith.mulf %933, %937 : vector<2x32xf32>
    %939 = vector.extract_strided_slice %586 {offsets = [10, 0], sizes = [2, 128], strides = [1, 1]} : vector<16x128xf32> to vector<2x128xf32>
    %cst_304 = arith.constant dense<0.000000e+00> : vector<2x128xf32>
    %940 = tpu.matmul %904, %595, %cst_304 {dimension_numbers = #tpu.dot_dimension_numbers<[1], [0], [0], [1], [0, 0, 1, 1], [], []>} : vector<2x32xf32>, vector<32x128xf32>, vector<2x128xf32> -> vector<2x128xf32>
    %941 = arith.addf %939, %940 : vector<2x128xf32>
    %942 = vector.extract_strided_slice %941 {offsets = [0, 0], sizes = [2, 32], strides = [1, 1]} : vector<2x128xf32> to vector<2x32xf32>
    %cst_305 = arith.constant 0.000000e+00 : f32
    %943 = vector.broadcast %cst_305 : f32 to vector<2x32xf32>
    %944 = arith.subf %943, %942 : vector<2x32xf32>
    %945 = math.exp %944 : vector<2x32xf32>
    %cst_306 = arith.constant 1.000000e+00 : f32
    %946 = vector.broadcast %cst_306 : f32 to vector<2x32xf32>
    %947 = arith.addf %946, %945 : vector<2x32xf32>
    %cst_307 = arith.constant 1.000000e+00 : f32
    %948 = vector.broadcast %cst_307 : f32 to vector<2x32xf32>
    %949 = arith.divf %948, %947 : vector<2x32xf32>
    %950 = vector.extract_strided_slice %941 {offsets = [0, 32], sizes = [2, 32], strides = [1, 1]} : vector<2x128xf32> to vector<2x32xf32>
    %cst_308 = arith.constant 0.000000e+00 : f32
    %951 = vector.broadcast %cst_308 : f32 to vector<2x32xf32>
    %952 = arith.subf %951, %950 : vector<2x32xf32>
    %953 = math.exp %952 : vector<2x32xf32>
    %cst_309 = arith.constant 1.000000e+00 : f32
    %954 = vector.broadcast %cst_309 : f32 to vector<2x32xf32>
    %955 = arith.addf %954, %953 : vector<2x32xf32>
    %cst_310 = arith.constant 1.000000e+00 : f32
    %956 = vector.broadcast %cst_310 : f32 to vector<2x32xf32>
    %957 = arith.divf %956, %955 : vector<2x32xf32>
    %958 = vector.extract_strided_slice %941 {offsets = [0, 64], sizes = [2, 32], strides = [1, 1]} : vector<2x128xf32> to vector<2x32xf32>
    %959 = math.tanh %958 : vector<2x32xf32>
    %960 = vector.extract_strided_slice %941 {offsets = [0, 96], sizes = [2, 32], strides = [1, 1]} : vector<2x128xf32> to vector<2x32xf32>
    %cst_311 = arith.constant 0.000000e+00 : f32
    %961 = vector.broadcast %cst_311 : f32 to vector<2x32xf32>
    %962 = arith.subf %961, %960 : vector<2x32xf32>
    %963 = math.exp %962 : vector<2x32xf32>
    %cst_312 = arith.constant 1.000000e+00 : f32
    %964 = vector.broadcast %cst_312 : f32 to vector<2x32xf32>
    %965 = arith.addf %964, %963 : vector<2x32xf32>
    %cst_313 = arith.constant 1.000000e+00 : f32
    %966 = vector.broadcast %cst_313 : f32 to vector<2x32xf32>
    %967 = arith.divf %966, %965 : vector<2x32xf32>
    %968 = arith.mulf %957, %902 : vector<2x32xf32>
    %969 = arith.mulf %949, %959 : vector<2x32xf32>
    %970 = arith.addf %968, %969 : vector<2x32xf32>
    %971 = math.tanh %970 : vector<2x32xf32>
    %972 = arith.mulf %967, %971 : vector<2x32xf32>
    %973 = vector.extract_strided_slice %593 {offsets = [4, 0], sizes = [2, 128], strides = [1, 1]} : vector<16x128xf32> to vector<2x128xf32>
    %cst_314 = arith.constant dense<0.000000e+00> : vector<2x128xf32>
    %974 = tpu.matmul %938, %597, %cst_314 {dimension_numbers = #tpu.dot_dimension_numbers<[1], [0], [0], [1], [0, 0, 1, 1], [], []>} : vector<2x32xf32>, vector<32x128xf32>, vector<2x128xf32> -> vector<2x128xf32>
    %975 = arith.addf %973, %974 : vector<2x128xf32>
    %976 = vector.extract_strided_slice %975 {offsets = [0, 0], sizes = [2, 32], strides = [1, 1]} : vector<2x128xf32> to vector<2x32xf32>
    %cst_315 = arith.constant 0.000000e+00 : f32
    %977 = vector.broadcast %cst_315 : f32 to vector<2x32xf32>
    %978 = arith.subf %977, %976 : vector<2x32xf32>
    %979 = math.exp %978 : vector<2x32xf32>
    %cst_316 = arith.constant 1.000000e+00 : f32
    %980 = vector.broadcast %cst_316 : f32 to vector<2x32xf32>
    %981 = arith.addf %980, %979 : vector<2x32xf32>
    %cst_317 = arith.constant 1.000000e+00 : f32
    %982 = vector.broadcast %cst_317 : f32 to vector<2x32xf32>
    %983 = arith.divf %982, %981 : vector<2x32xf32>
    %984 = vector.extract_strided_slice %975 {offsets = [0, 32], sizes = [2, 32], strides = [1, 1]} : vector<2x128xf32> to vector<2x32xf32>
    %cst_318 = arith.constant 0.000000e+00 : f32
    %985 = vector.broadcast %cst_318 : f32 to vector<2x32xf32>
    %986 = arith.subf %985, %984 : vector<2x32xf32>
    %987 = math.exp %986 : vector<2x32xf32>
    %cst_319 = arith.constant 1.000000e+00 : f32
    %988 = vector.broadcast %cst_319 : f32 to vector<2x32xf32>
    %989 = arith.addf %988, %987 : vector<2x32xf32>
    %cst_320 = arith.constant 1.000000e+00 : f32
    %990 = vector.broadcast %cst_320 : f32 to vector<2x32xf32>
    %991 = arith.divf %990, %989 : vector<2x32xf32>
    %992 = vector.extract_strided_slice %975 {offsets = [0, 64], sizes = [2, 32], strides = [1, 1]} : vector<2x128xf32> to vector<2x32xf32>
    %993 = math.tanh %992 : vector<2x32xf32>
    %994 = vector.extract_strided_slice %975 {offsets = [0, 96], sizes = [2, 32], strides = [1, 1]} : vector<2x128xf32> to vector<2x32xf32>
    %cst_321 = arith.constant 0.000000e+00 : f32
    %995 = vector.broadcast %cst_321 : f32 to vector<2x32xf32>
    %996 = arith.subf %995, %994 : vector<2x32xf32>
    %997 = math.exp %996 : vector<2x32xf32>
    %cst_322 = arith.constant 1.000000e+00 : f32
    %998 = vector.broadcast %cst_322 : f32 to vector<2x32xf32>
    %999 = arith.addf %998, %997 : vector<2x32xf32>
    %cst_323 = arith.constant 1.000000e+00 : f32
    %1000 = vector.broadcast %cst_323 : f32 to vector<2x32xf32>
    %1001 = arith.divf %1000, %999 : vector<2x32xf32>
    %1002 = arith.mulf %991, %936 : vector<2x32xf32>
    %1003 = arith.mulf %983, %993 : vector<2x32xf32>
    %1004 = arith.addf %1002, %1003 : vector<2x32xf32>
    %1005 = math.tanh %1004 : vector<2x32xf32>
    %1006 = arith.mulf %1001, %1005 : vector<2x32xf32>
    %1007 = vector.extract_strided_slice %586 {offsets = [12, 0], sizes = [2, 128], strides = [1, 1]} : vector<16x128xf32> to vector<2x128xf32>
    %cst_324 = arith.constant dense<0.000000e+00> : vector<2x128xf32>
    %1008 = tpu.matmul %972, %595, %cst_324 {dimension_numbers = #tpu.dot_dimension_numbers<[1], [0], [0], [1], [0, 0, 1, 1], [], []>} : vector<2x32xf32>, vector<32x128xf32>, vector<2x128xf32> -> vector<2x128xf32>
    %1009 = arith.addf %1007, %1008 : vector<2x128xf32>
    %1010 = vector.extract_strided_slice %1009 {offsets = [0, 0], sizes = [2, 32], strides = [1, 1]} : vector<2x128xf32> to vector<2x32xf32>
    %cst_325 = arith.constant 0.000000e+00 : f32
    %1011 = vector.broadcast %cst_325 : f32 to vector<2x32xf32>
    %1012 = arith.subf %1011, %1010 : vector<2x32xf32>
    %1013 = math.exp %1012 : vector<2x32xf32>
    %cst_326 = arith.constant 1.000000e+00 : f32
    %1014 = vector.broadcast %cst_326 : f32 to vector<2x32xf32>
    %1015 = arith.addf %1014, %1013 : vector<2x32xf32>
    %cst_327 = arith.constant 1.000000e+00 : f32
    %1016 = vector.broadcast %cst_327 : f32 to vector<2x32xf32>
    %1017 = arith.divf %1016, %1015 : vector<2x32xf32>
    %1018 = vector.extract_strided_slice %1009 {offsets = [0, 32], sizes = [2, 32], strides = [1, 1]} : vector<2x128xf32> to vector<2x32xf32>
    %cst_328 = arith.constant 0.000000e+00 : f32
    %1019 = vector.broadcast %cst_328 : f32 to vector<2x32xf32>
    %1020 = arith.subf %1019, %1018 : vector<2x32xf32>
    %1021 = math.exp %1020 : vector<2x32xf32>
    %cst_329 = arith.constant 1.000000e+00 : f32
    %1022 = vector.broadcast %cst_329 : f32 to vector<2x32xf32>
    %1023 = arith.addf %1022, %1021 : vector<2x32xf32>
    %cst_330 = arith.constant 1.000000e+00 : f32
    %1024 = vector.broadcast %cst_330 : f32 to vector<2x32xf32>
    %1025 = arith.divf %1024, %1023 : vector<2x32xf32>
    %1026 = vector.extract_strided_slice %1009 {offsets = [0, 64], sizes = [2, 32], strides = [1, 1]} : vector<2x128xf32> to vector<2x32xf32>
    %1027 = math.tanh %1026 : vector<2x32xf32>
    %1028 = vector.extract_strided_slice %1009 {offsets = [0, 96], sizes = [2, 32], strides = [1, 1]} : vector<2x128xf32> to vector<2x32xf32>
    %cst_331 = arith.constant 0.000000e+00 : f32
    %1029 = vector.broadcast %cst_331 : f32 to vector<2x32xf32>
    %1030 = arith.subf %1029, %1028 : vector<2x32xf32>
    %1031 = math.exp %1030 : vector<2x32xf32>
    %cst_332 = arith.constant 1.000000e+00 : f32
    %1032 = vector.broadcast %cst_332 : f32 to vector<2x32xf32>
    %1033 = arith.addf %1032, %1031 : vector<2x32xf32>
    %cst_333 = arith.constant 1.000000e+00 : f32
    %1034 = vector.broadcast %cst_333 : f32 to vector<2x32xf32>
    %1035 = arith.divf %1034, %1033 : vector<2x32xf32>
    %1036 = arith.mulf %1025, %970 : vector<2x32xf32>
    %1037 = arith.mulf %1017, %1027 : vector<2x32xf32>
    %1038 = arith.addf %1036, %1037 : vector<2x32xf32>
    %1039 = math.tanh %1038 : vector<2x32xf32>
    %1040 = arith.mulf %1035, %1039 : vector<2x32xf32>
    %1041 = vector.extract_strided_slice %593 {offsets = [2, 0], sizes = [2, 128], strides = [1, 1]} : vector<16x128xf32> to vector<2x128xf32>
    %cst_334 = arith.constant dense<0.000000e+00> : vector<2x128xf32>
    %1042 = tpu.matmul %1006, %597, %cst_334 {dimension_numbers = #tpu.dot_dimension_numbers<[1], [0], [0], [1], [0, 0, 1, 1], [], []>} : vector<2x32xf32>, vector<32x128xf32>, vector<2x128xf32> -> vector<2x128xf32>
    %1043 = arith.addf %1041, %1042 : vector<2x128xf32>
    %1044 = vector.extract_strided_slice %1043 {offsets = [0, 0], sizes = [2, 32], strides = [1, 1]} : vector<2x128xf32> to vector<2x32xf32>
    %cst_335 = arith.constant 0.000000e+00 : f32
    %1045 = vector.broadcast %cst_335 : f32 to vector<2x32xf32>
    %1046 = arith.subf %1045, %1044 : vector<2x32xf32>
    %1047 = math.exp %1046 : vector<2x32xf32>
    %cst_336 = arith.constant 1.000000e+00 : f32
    %1048 = vector.broadcast %cst_336 : f32 to vector<2x32xf32>
    %1049 = arith.addf %1048, %1047 : vector<2x32xf32>
    %cst_337 = arith.constant 1.000000e+00 : f32
    %1050 = vector.broadcast %cst_337 : f32 to vector<2x32xf32>
    %1051 = arith.divf %1050, %1049 : vector<2x32xf32>
    %1052 = vector.extract_strided_slice %1043 {offsets = [0, 32], sizes = [2, 32], strides = [1, 1]} : vector<2x128xf32> to vector<2x32xf32>
    %cst_338 = arith.constant 0.000000e+00 : f32
    %1053 = vector.broadcast %cst_338 : f32 to vector<2x32xf32>
    %1054 = arith.subf %1053, %1052 : vector<2x32xf32>
    %1055 = math.exp %1054 : vector<2x32xf32>
    %cst_339 = arith.constant 1.000000e+00 : f32
    %1056 = vector.broadcast %cst_339 : f32 to vector<2x32xf32>
    %1057 = arith.addf %1056, %1055 : vector<2x32xf32>
    %cst_340 = arith.constant 1.000000e+00 : f32
    %1058 = vector.broadcast %cst_340 : f32 to vector<2x32xf32>
    %1059 = arith.divf %1058, %1057 : vector<2x32xf32>
    %1060 = vector.extract_strided_slice %1043 {offsets = [0, 64], sizes = [2, 32], strides = [1, 1]} : vector<2x128xf32> to vector<2x32xf32>
    %1061 = math.tanh %1060 : vector<2x32xf32>
    %1062 = vector.extract_strided_slice %1043 {offsets = [0, 96], sizes = [2, 32], strides = [1, 1]} : vector<2x128xf32> to vector<2x32xf32>
    %cst_341 = arith.constant 0.000000e+00 : f32
    %1063 = vector.broadcast %cst_341 : f32 to vector<2x32xf32>
    %1064 = arith.subf %1063, %1062 : vector<2x32xf32>
    %1065 = math.exp %1064 : vector<2x32xf32>
    %cst_342 = arith.constant 1.000000e+00 : f32
    %1066 = vector.broadcast %cst_342 : f32 to vector<2x32xf32>
    %1067 = arith.addf %1066, %1065 : vector<2x32xf32>
    %cst_343 = arith.constant 1.000000e+00 : f32
    %1068 = vector.broadcast %cst_343 : f32 to vector<2x32xf32>
    %1069 = arith.divf %1068, %1067 : vector<2x32xf32>
    %1070 = arith.mulf %1059, %1004 : vector<2x32xf32>
    %1071 = arith.mulf %1051, %1061 : vector<2x32xf32>
    %1072 = arith.addf %1070, %1071 : vector<2x32xf32>
    %1073 = math.tanh %1072 : vector<2x32xf32>
    %1074 = arith.mulf %1069, %1073 : vector<2x32xf32>
    %1075 = vector.extract_strided_slice %586 {offsets = [14, 0], sizes = [2, 128], strides = [1, 1]} : vector<16x128xf32> to vector<2x128xf32>
    %cst_344 = arith.constant dense<0.000000e+00> : vector<2x128xf32>
    %1076 = tpu.matmul %1040, %595, %cst_344 {dimension_numbers = #tpu.dot_dimension_numbers<[1], [0], [0], [1], [0, 0, 1, 1], [], []>} : vector<2x32xf32>, vector<32x128xf32>, vector<2x128xf32> -> vector<2x128xf32>
    %1077 = arith.addf %1075, %1076 : vector<2x128xf32>
    %1078 = vector.extract_strided_slice %1077 {offsets = [0, 0], sizes = [2, 32], strides = [1, 1]} : vector<2x128xf32> to vector<2x32xf32>
    %cst_345 = arith.constant 0.000000e+00 : f32
    %1079 = vector.broadcast %cst_345 : f32 to vector<2x32xf32>
    %1080 = arith.subf %1079, %1078 : vector<2x32xf32>
    %1081 = math.exp %1080 : vector<2x32xf32>
    %cst_346 = arith.constant 1.000000e+00 : f32
    %1082 = vector.broadcast %cst_346 : f32 to vector<2x32xf32>
    %1083 = arith.addf %1082, %1081 : vector<2x32xf32>
    %cst_347 = arith.constant 1.000000e+00 : f32
    %1084 = vector.broadcast %cst_347 : f32 to vector<2x32xf32>
    %1085 = arith.divf %1084, %1083 : vector<2x32xf32>
    %1086 = vector.extract_strided_slice %1077 {offsets = [0, 32], sizes = [2, 32], strides = [1, 1]} : vector<2x128xf32> to vector<2x32xf32>
    %cst_348 = arith.constant 0.000000e+00 : f32
    %1087 = vector.broadcast %cst_348 : f32 to vector<2x32xf32>
    %1088 = arith.subf %1087, %1086 : vector<2x32xf32>
    %1089 = math.exp %1088 : vector<2x32xf32>
    %cst_349 = arith.constant 1.000000e+00 : f32
    %1090 = vector.broadcast %cst_349 : f32 to vector<2x32xf32>
    %1091 = arith.addf %1090, %1089 : vector<2x32xf32>
    %cst_350 = arith.constant 1.000000e+00 : f32
    %1092 = vector.broadcast %cst_350 : f32 to vector<2x32xf32>
    %1093 = arith.divf %1092, %1091 : vector<2x32xf32>
    %1094 = vector.extract_strided_slice %1077 {offsets = [0, 64], sizes = [2, 32], strides = [1, 1]} : vector<2x128xf32> to vector<2x32xf32>
    %1095 = math.tanh %1094 : vector<2x32xf32>
    %1096 = vector.extract_strided_slice %1077 {offsets = [0, 96], sizes = [2, 32], strides = [1, 1]} : vector<2x128xf32> to vector<2x32xf32>
    %cst_351 = arith.constant 0.000000e+00 : f32
    %1097 = vector.broadcast %cst_351 : f32 to vector<2x32xf32>
    %1098 = arith.subf %1097, %1096 : vector<2x32xf32>
    %1099 = math.exp %1098 : vector<2x32xf32>
    %cst_352 = arith.constant 1.000000e+00 : f32
    %1100 = vector.broadcast %cst_352 : f32 to vector<2x32xf32>
    %1101 = arith.addf %1100, %1099 : vector<2x32xf32>
    %cst_353 = arith.constant 1.000000e+00 : f32
    %1102 = vector.broadcast %cst_353 : f32 to vector<2x32xf32>
    %1103 = arith.divf %1102, %1101 : vector<2x32xf32>
    %1104 = arith.mulf %1093, %1038 : vector<2x32xf32>
    %1105 = arith.mulf %1085, %1095 : vector<2x32xf32>
    %1106 = arith.addf %1104, %1105 : vector<2x32xf32>
    %1107 = math.tanh %1106 : vector<2x32xf32>
    %1108 = arith.mulf %1103, %1107 : vector<2x32xf32>
    %1109 = vector.extract_strided_slice %593 {offsets = [0, 0], sizes = [2, 128], strides = [1, 1]} : vector<16x128xf32> to vector<2x128xf32>
    %cst_354 = arith.constant dense<0.000000e+00> : vector<2x128xf32>
    %1110 = tpu.matmul %1074, %597, %cst_354 {dimension_numbers = #tpu.dot_dimension_numbers<[1], [0], [0], [1], [0, 0, 1, 1], [], []>} : vector<2x32xf32>, vector<32x128xf32>, vector<2x128xf32> -> vector<2x128xf32>
    %1111 = arith.addf %1109, %1110 : vector<2x128xf32>
    %1112 = vector.extract_strided_slice %1111 {offsets = [0, 0], sizes = [2, 32], strides = [1, 1]} : vector<2x128xf32> to vector<2x32xf32>
    %cst_355 = arith.constant 0.000000e+00 : f32
    %1113 = vector.broadcast %cst_355 : f32 to vector<2x32xf32>
    %1114 = arith.subf %1113, %1112 : vector<2x32xf32>
    %1115 = math.exp %1114 : vector<2x32xf32>
    %cst_356 = arith.constant 1.000000e+00 : f32
    %1116 = vector.broadcast %cst_356 : f32 to vector<2x32xf32>
    %1117 = arith.addf %1116, %1115 : vector<2x32xf32>
    %cst_357 = arith.constant 1.000000e+00 : f32
    %1118 = vector.broadcast %cst_357 : f32 to vector<2x32xf32>
    %1119 = arith.divf %1118, %1117 : vector<2x32xf32>
    %1120 = vector.extract_strided_slice %1111 {offsets = [0, 32], sizes = [2, 32], strides = [1, 1]} : vector<2x128xf32> to vector<2x32xf32>
    %cst_358 = arith.constant 0.000000e+00 : f32
    %1121 = vector.broadcast %cst_358 : f32 to vector<2x32xf32>
    %1122 = arith.subf %1121, %1120 : vector<2x32xf32>
    %1123 = math.exp %1122 : vector<2x32xf32>
    %cst_359 = arith.constant 1.000000e+00 : f32
    %1124 = vector.broadcast %cst_359 : f32 to vector<2x32xf32>
    %1125 = arith.addf %1124, %1123 : vector<2x32xf32>
    %cst_360 = arith.constant 1.000000e+00 : f32
    %1126 = vector.broadcast %cst_360 : f32 to vector<2x32xf32>
    %1127 = arith.divf %1126, %1125 : vector<2x32xf32>
    %1128 = vector.extract_strided_slice %1111 {offsets = [0, 64], sizes = [2, 32], strides = [1, 1]} : vector<2x128xf32> to vector<2x32xf32>
    %1129 = math.tanh %1128 : vector<2x32xf32>
    %1130 = vector.extract_strided_slice %1111 {offsets = [0, 96], sizes = [2, 32], strides = [1, 1]} : vector<2x128xf32> to vector<2x32xf32>
    %cst_361 = arith.constant 0.000000e+00 : f32
    %1131 = vector.broadcast %cst_361 : f32 to vector<2x32xf32>
    %1132 = arith.subf %1131, %1130 : vector<2x32xf32>
    %1133 = math.exp %1132 : vector<2x32xf32>
    %cst_362 = arith.constant 1.000000e+00 : f32
    %1134 = vector.broadcast %cst_362 : f32 to vector<2x32xf32>
    %1135 = arith.addf %1134, %1133 : vector<2x32xf32>
    %cst_363 = arith.constant 1.000000e+00 : f32
    %1136 = vector.broadcast %cst_363 : f32 to vector<2x32xf32>
    %1137 = arith.divf %1136, %1135 : vector<2x32xf32>
    %1138 = arith.mulf %1127, %1072 : vector<2x32xf32>
    %1139 = arith.mulf %1119, %1129 : vector<2x32xf32>
    %1140 = arith.addf %1138, %1139 : vector<2x32xf32>
    %1141 = math.tanh %1140 : vector<2x32xf32>
    %1142 = arith.mulf %1137, %1141 : vector<2x32xf32>
    %1143 = tpu.concatenate %632, %1142 in 1 : vector<2x32xf32>, vector<2x32xf32> -> vector<2x64xf32>
    %1144 = tpu.concatenate %700, %1074 in 1 : vector<2x32xf32>, vector<2x32xf32> -> vector<2x64xf32>
    %1145 = tpu.concatenate %768, %1006 in 1 : vector<2x32xf32>, vector<2x32xf32> -> vector<2x64xf32>
    %1146 = tpu.concatenate %836, %938 in 1 : vector<2x32xf32>, vector<2x32xf32> -> vector<2x64xf32>
    %1147 = tpu.concatenate %904, %870 in 1 : vector<2x32xf32>, vector<2x32xf32> -> vector<2x64xf32>
    %1148 = tpu.concatenate %972, %802 in 1 : vector<2x32xf32>, vector<2x32xf32> -> vector<2x64xf32>
    %1149 = tpu.concatenate %1040, %734 in 1 : vector<2x32xf32>, vector<2x32xf32> -> vector<2x64xf32>
    %1150 = tpu.concatenate %1108, %666 in 1 : vector<2x32xf32>, vector<2x32xf32> -> vector<2x64xf32>
    %1151 = tpu.concatenate %1143, %1144, %1145, %1146, %1147, %1148, %1149, %1150 in 1 : vector<2x64xf32>, vector<2x64xf32>, vector<2x64xf32>, vector<2x64xf32>, vector<2x64xf32>, vector<2x64xf32>, vector<2x64xf32>, vector<2x64xf32> -> vector<2x512xf32>
    %c0_364 = arith.constant 0 : index
    %c0_365 = arith.constant 0 : index
    %1152 = vector.load %arg8[%c0_364, %c0_365] : memref<512x32xf32, #tpu.memory_space<vmem>>, vector<512x32xf32>
    %cst_366 = arith.constant dense<0.000000e+00> : vector<2x32xf32>
    %1153 = tpu.matmul %1151, %1152, %cst_366 {dimension_numbers = #tpu.dot_dimension_numbers<[1], [0], [0], [1], [0, 0, 1, 1], [], []>} : vector<2x512xf32>, vector<512x32xf32>, vector<2x32xf32> -> vector<2x32xf32>
    %c0_367 = arith.constant 0 : index
    %c0_368 = arith.constant 0 : index
    %1154 = vector.load %arg9[%c0_367, %c0_368] : memref<1x32xf32, #tpu.memory_space<vmem>>, vector<1x32xf32>
    %1155 = vector.broadcast %1154 : vector<1x32xf32> to vector<2x32xf32>
    %1156 = arith.addf %1153, %1155 : vector<2x32xf32>
    %cst_369 = arith.constant 0.000000e+00 : f32
    %1157 = vector.broadcast %cst_369 : f32 to vector<2x32xf32>
    %1158 = arith.maximumf %1156, %1157 : vector<2x32xf32>
    %c0_370 = arith.constant 0 : index
    %c0_371 = arith.constant 0 : index
    %1159 = vector.load %arg10[%c0_370, %c0_371] : memref<32x32xf32, #tpu.memory_space<vmem>>, vector<32x32xf32>
    %cst_372 = arith.constant dense<0.000000e+00> : vector<2x32xf32>
    %1160 = tpu.matmul %1158, %1159, %cst_372 {dimension_numbers = #tpu.dot_dimension_numbers<[1], [0], [0], [1], [0, 0, 1, 1], [], []>} : vector<2x32xf32>, vector<32x32xf32>, vector<2x32xf32> -> vector<2x32xf32>
    %c0_373 = arith.constant 0 : index
    %c0_374 = arith.constant 0 : index
    %1161 = vector.load %arg11[%c0_373, %c0_374] : memref<1x32xf32, #tpu.memory_space<vmem>>, vector<1x32xf32>
    %1162 = vector.broadcast %1161 : vector<1x32xf32> to vector<2x32xf32>
    %1163 = arith.addf %1160, %1162 : vector<2x32xf32>
    %cst_375 = arith.constant 0.000000e+00 : f32
    %1164 = vector.broadcast %cst_375 : f32 to vector<2x32xf32>
    %1165 = arith.maximumf %1163, %1164 : vector<2x32xf32>
    %c0_376 = arith.constant 0 : index
    %c0_377 = arith.constant 0 : index
    %1166 = vector.load %arg12[%c0_376, %c0_377] : memref<32x2xf32, #tpu.memory_space<vmem>>, vector<32x2xf32>
    %cst_378 = arith.constant dense<0.000000e+00> : vector<2x2xf32>
    %1167 = tpu.matmul %1165, %1166, %cst_378 {dimension_numbers = #tpu.dot_dimension_numbers<[1], [0], [0], [1], [0, 0, 1, 1], [], []>} : vector<2x32xf32>, vector<32x2xf32>, vector<2x2xf32> -> vector<2x2xf32>
    %c0_379 = arith.constant 0 : index
    %c0_380 = arith.constant 0 : index
    %1168 = vector.load %arg13[%c0_379, %c0_380] : memref<1x2xf32, #tpu.memory_space<vmem>>, vector<1x2xf32>
    %1169 = vector.broadcast %1168 : vector<1x2xf32> to vector<2x2xf32>
    %1170 = arith.addf %1167, %1169 : vector<2x2xf32>
    %cst_381 = arith.constant 0.000000e+00 : f32
    %1171 = vector.broadcast %cst_381 : f32 to vector<2x2xf32>
    %1172 = arith.maximumf %1170, %1171 : vector<2x2xf32>
    %cst_382 = arith.constant dense<0xFF800000> : vector<2xf32>
    %1173 = vector.multi_reduction <maximumf>, %1172, %cst_382 [1] : vector<2x2xf32> to vector<2xf32>
    %1174 = vector.shape_cast %1173 : vector<2xf32> to vector<2x1xf32>
    %1175 = vector.broadcast %1174 : vector<2x1xf32> to vector<2x2xf32>
    %1176 = arith.subf %1172, %1175 : vector<2x2xf32>
    %1177 = math.exp %1176 : vector<2x2xf32>
    %cst_383 = arith.constant dense<0.000000e+00> : vector<2xf32>
    %1178 = vector.multi_reduction <add>, %1177, %cst_383 [1] : vector<2x2xf32> to vector<2xf32>
    %1179 = vector.shape_cast %1178 : vector<2xf32> to vector<2x1xf32>
    %1180 = tpu.reciprocal %1179 {approx = true} : vector<2x1xf32> -> vector<2x1xf32>
    %1181 = vector.broadcast %1180 : vector<2x1xf32> to vector<2x2xf32>
    %1182 = arith.mulf %1177, %1181 : vector<2x2xf32>
    %c0_384 = arith.constant 0 : index
    %c0_385 = arith.constant 0 : index
    %1183 = vector.load %arg14[%c0_384, %c0_385] : memref<2x2xf32, #tpu.memory_space<vmem>>, vector<2x2xf32>
    tpu.vector_store %arg14[%c0_384, %c0_385], %1182 {strides = array<i32>} : memref<2x2xf32, #tpu.memory_space<vmem>>, vector<2x2xf32>,
    return
  }
}

</mosaic_0001>

<llo_original>
// kernel: rnn_model_forward.1
$region0: #{rnn_model_forward.1}
  #allocation0 [shape = 'u32[]', space=smem, size = 0x4, offset = 0x4, fixed_abs, tag = 'smem constant byte address 0x4 - core index']
  #allocation1 [shape = 'u32[72,128]{1,0:T(1,128)}', space=vmem, size = 0x9000, scoped, tag = 'internal scratch']
  %s0 = inlined_call_operand.vmem [shape: s32[16,1], index: 0, kind: input, shape index: {}]
  %s1 = inlined_call_operand.vmem [shape: f32[50,32], index: 1, kind: input, shape index: {}]
  %s2 = inlined_call_operand.vmem [shape: f32[2,32,128], index: 2, kind: input, shape index: {}]
  %s3 = inlined_call_operand.vmem [shape: f32[2,32,128], index: 3, kind: input, shape index: {}]
  %s4 = inlined_call_operand.vmem [shape: f32[2,1,128], index: 4, kind: input, shape index: {}]
  %s5 = inlined_call_operand.vmem [shape: f32[2,64,128], index: 5, kind: input, shape index: {}]
  %s6 = inlined_call_operand.vmem [shape: f32[2,32,128], index: 6, kind: input, shape index: {}]
  %s7 = inlined_call_operand.vmem [shape: f32[2,1,128], index: 7, kind: input, shape index: {}]
  %s8 = inlined_call_operand.vmem [shape: f32[512,32], index: 8, kind: input, shape index: {}]
  %s9 = inlined_call_operand.vmem [shape: f32[1,32], index: 9, kind: input, shape index: {}]
  %s10 = inlined_call_operand.vmem [shape: f32[32,32], index: 10, kind: input, shape index: {}]
  %s11 = inlined_call_operand.vmem [shape: f32[1,32], index: 11, kind: input, shape index: {}]
  %s12 = inlined_call_operand.vmem [shape: f32[32,2], index: 12, kind: input, shape index: {}]
  %s13 = inlined_call_operand.vmem [shape: f32[1,2], index: 13, kind: input, shape index: {}]
  %s14 = inlined_call_operand.hbm [shape: f32[2,2], index: 14, kind: output, shape index: {}]
  %s15 = sld [smem:[#allocation0]]
  $region66: #{rnn_model_forward.1} parent=0
    _
  %s17 = ssub.s32 1, %s15
  %s18 = scalar_select 0, %s17, %s15
  $region1: #{rnn_model_forward.1} parent=0
    #allocation2 [shape = 'u8[1024]{0}', space=vmem, size = 0x400, scoped, tag = 'output window, operand 0, single buffered']
    #allocation3 [shape = 's32[1]{0}', space=sflag, size = 0x4, scoped, tag = 'scoped memory for rnn_model_forward.1']
    %19 = vsyncpa [#allocation3], 0
    // Predicated region
    $region2: #{rnn_model_forward.1} parent=1 // pred_check
      _
    $region3: #{rnn_model_forward.1} parent=1 // pred_check_branch
      %21 = sbr.rel (0) target = $region5
    $region4: #{rnn_model_forward.1} parent=1 // pred_region
      _
    $region5: #{rnn_model_forward.1} parent=1 // pred_fallthru
      _
    // Predicated region
    $region6: #{rnn_model_forward.1} parent=1 // pred_check
      _
    $region7: #{rnn_model_forward.1} parent=1 // pred_check_branch
      %23 = sbr.rel (0) target = $region9
    $region8: #{rnn_model_forward.1} parent=1 // pred_region
      _
    $region9: #{rnn_model_forward.1} parent=1 // pred_fallthru
      _
    // Predicated region
    $region10: #{rnn_model_forward.1} parent=1 // pred_check
      _
    $region11: #{rnn_model_forward.1} parent=1 // pred_check_branch
      %25 = sbr.rel (0) target = $region13
    $region12: #{rnn_model_forward.1} parent=1 // pred_region
      _
    $region13: #{rnn_model_forward.1} parent=1 // pred_fallthru
      _
    // Predicated region
    $region14: #{rnn_model_forward.1} parent=1 // pred_check
      _
    $region15: #{rnn_model_forward.1} parent=1 // pred_check_branch
      %27 = sbr.rel (0) target = $region17
    $region16: #{rnn_model_forward.1} parent=1 // pred_region
      _
    $region17: #{rnn_model_forward.1} parent=1 // pred_fallthru
      _
    // Predicated region
    $region18: #{rnn_model_forward.1} parent=1 // pred_check
      _
    $region19: #{rnn_model_forward.1} parent=1 // pred_check_branch
      %29 = sbr.rel (0) target = $region21
    $region20: #{rnn_model_forward.1} parent=1 // pred_region
      _
    $region21: #{rnn_model_forward.1} parent=1 // pred_fallthru
      _
    // Predicated region
    $region22: #{rnn_model_forward.1} parent=1 // pred_check
      _
    $region23: #{rnn_model_forward.1} parent=1 // pred_check_branch
      %31 = sbr.rel (0) target = $region25
    $region24: #{rnn_model_forward.1} parent=1 // pred_region
      _
    $region25: #{rnn_model_forward.1} parent=1 // pred_fallthru
      _
    // Predicated region
    $region26: #{rnn_model_forward.1} parent=1 // pred_check
      _
    $region27: #{rnn_model_forward.1} parent=1 // pred_check_branch
      %33 = sbr.rel (0) target = $region29
    $region28: #{rnn_model_forward.1} parent=1 // pred_region
      _
    $region29: #{rnn_model_forward.1} parent=1 // pred_fallthru
      _
    // Predicated region
    $region30: #{rnn_model_forward.1} parent=1 // pred_check
      _
    $region31: #{rnn_model_forward.1} parent=1 // pred_check_branch
      %35 = sbr.rel (0) target = $region33
    $region32: #{rnn_model_forward.1} parent=1 // pred_region
      _
    $region33: #{rnn_model_forward.1} parent=1 // pred_fallthru
      _
    // Predicated region
    $region34: #{rnn_model_forward.1} parent=1 // pred_check
      _
    $region35: #{rnn_model_forward.1} parent=1 // pred_check_branch
      %37 = sbr.rel (0) target = $region37
    $region36: #{rnn_model_forward.1} parent=1 // pred_region
      _
    $region37: #{rnn_model_forward.1} parent=1 // pred_fallthru
      _
    // Predicated region
    $region38: #{rnn_model_forward.1} parent=1 // pred_check
      _
    $region39: #{rnn_model_forward.1} parent=1 // pred_check_branch
      %39 = sbr.rel (0) target = $region41
    $region40: #{rnn_model_forward.1} parent=1 // pred_region
      _
    $region41: #{rnn_model_forward.1} parent=1 // pred_fallthru
      _
    // Predicated region
    $region42: #{rnn_model_forward.1} parent=1 // pred_check
      _
    $region43: #{rnn_model_forward.1} parent=1 // pred_check_branch
      %41 = sbr.rel (0) target = $region45
    $region44: #{rnn_model_forward.1} parent=1 // pred_region
      _
    $region45: #{rnn_model_forward.1} parent=1 // pred_fallthru
      _
    // Predicated region
    $region46: #{rnn_model_forward.1} parent=1 // pred_check
      _
    $region47: #{rnn_model_forward.1} parent=1 // pred_check_branch
      %43 = sbr.rel (0) target = $region49
    $region48: #{rnn_model_forward.1} parent=1 // pred_region
      _
    $region49: #{rnn_model_forward.1} parent=1 // pred_fallthru
      _
    // Predicated region
    $region50: #{rnn_model_forward.1} parent=1 // pred_check
      _
    $region51: #{rnn_model_forward.1} parent=1 // pred_check_branch
      %45 = sbr.rel (0) target = $region53
    $region52: #{rnn_model_forward.1} parent=1 // pred_region
      _
    $region53: #{rnn_model_forward.1} parent=1 // pred_fallthru
      _
    // Predicated region
    $region54: #{rnn_model_forward.1} parent=1 // pred_check
      _
    $region55: #{rnn_model_forward.1} parent=1 // pred_check_branch
      %47 = sbr.rel (0) target = $region57
    $region56: #{rnn_model_forward.1} parent=1 // pred_region
      _
    $region57: #{rnn_model_forward.1} parent=1 // pred_fallthru
      _
    %v48 = vld [vmem:[%s0] sm:$0xff]
    %v49 = vld [vmem:[%s0 + $0x8] sm:$0xff]
    %v50 = vlaneseq
    %v51 = vand.u32 %v50, 127
    %52 = vset.pattern.permute.xlu0 0
    %53 = vperm.xlu0 %52, %v48
    %v54 = vpop.permute.xlu0 %53
    %55 = vset.pattern.permute.xlu0 0
    %56 = vperm.xlu0 %55, %v49
    %v57 = vpop.permute.xlu0 %56
    %vm58 = vcmp.eq.s32.totalorder %v51, %v54
    %vm59 = vcmp.eq.s32.totalorder %v51, %v57
    %v60 = vsel %vm58, 1, 0
    %v61 = vsel %vm59, 1, 0
    %v62 = vcvt.s32.f32 %v60
    %v63 = vcvt.s32.f32 %v61
    %v64 = vld [vmem:[%s1] sm:$0xff]
    %v65 = vld [vmem:[%s1 + $0x8] sm:$0xff]
    %v66 = vld [vmem:[%s1 + $0x10] sm:$0xff]
    %v67 = vld [vmem:[%s1 + $0x18] sm:$0xff]
    %v68 = vld [vmem:[%s1 + $0x20] sm:$0xff]
    %v69 = vld [vmem:[%s1 + $0x28] sm:$0xff]
    %v70 = vld [vmem:[%s1 + $0x30] sm:$0x3]
    %vm71 = vcmask 408576
    %v73 = vsel %vm71, %v62, 0
    %v76 = vsel %vm71, %v63, 0
    %vm78 = vcmask 1041408
    %v80 = vsel %vm78, %v70, 0
    %82 = vmatpush.msra.mxu0 0.0
    %83 = vmatpush.msra.mxu0 0.0
    %84 = vmatpush.msra.mxu0 0.0
    %85 = vmatpush.msra.mxu0 0.0
    %86 = vmatpush.msra.mxu0 0.0
    %87 = vmatpush.msra.mxu0 0.0
    %88 = vmatpush.msra.mxu0 0.0
    %89 = vmatpush.msra.mxu0 0.0
    %90 = vmatpush.msra.mxu0 0.0
    %91 = vmatpush.msra.mxu0 %v80
    %92 = vmatpush.msra.mxu0 %v69
    %93 = vmatpush.msra.mxu0 %v68
    %94 = vmatpush.msra.mxu0 %v67
    %95 = vmatpush.msra.mxu0 %v66
    %96 = vmatpush.msra.mxu0 %v65
    %97 = vmatpush.msra.mxu0 %v64
    %98 = vmatmul.f32.gmra.mxu0 %v73
    %v99 = vpop.f32.mrf.mxu0
    %v100 = vadd.f32 0.0, %v99
    %101 = vmatmul.f32.gmra.mxu0 %v76
    %v102 = vpop.f32.mrf.mxu0
    %v103 = vadd.f32 0.0, %v102
    %104 = vdwg.mxu0
    %v105 = vld [vmem:[%s2] sm:$0xff]
    %v106 = vld [vmem:[%s2 + $0x8] sm:$0xff]
    %v107 = vld [vmem:[%s2 + $0x10] sm:$0xff]
    %v108 = vld [vmem:[%s2 + $0x18] sm:$0xff]
    %v109 = vld [vmem:[%s4] sm:$0x1]
    %v111 = vperm.slane %v109, 0
    %vm113 = vcmask 261120
    %v115 = vsel %vm113, %v100, 0
    %v118 = vsel %vm113, %v103, 0
    %120 = vmatpush.msra.mxu0 0.0
    %121 = vmatpush.msra.mxu0 0.0
    %122 = vmatpush.msra.mxu0 0.0
    %123 = vmatpush.msra.mxu0 0.0
    %124 = vmatpush.msra.mxu0 0.0
    %125 = vmatpush.msra.mxu0 0.0
    %126 = vmatpush.msra.mxu0 0.0
    %127 = vmatpush.msra.mxu0 0.0
    %128 = vmatpush.msra.mxu0 0.0
    %129 = vmatpush.msra.mxu0 0.0
    %130 = vmatpush.msra.mxu0 0.0
    %131 = vmatpush.msra.mxu0 0.0
    %132 = vmatpush.msra.mxu0 %v108
    %133 = vmatpush.msra.mxu0 %v107
    %134 = vmatpush.msra.mxu0 %v106
    %135 = vmatpush.msra.mxu0 %v105
    %136 = vmatmul.f32.gmra.mxu0 %v115
    %v137 = vpop.f32.mrf.mxu0
    %v138 = vadd.f32 %v111, %v137
    %139 = vmatmul.f32.gmra.mxu0 %v118
    %v140 = vpop.f32.mrf.mxu0
    %v141 = vadd.f32 %v111, %v140
    %142 = vdwg.mxu0
    %s143 = scalar_lea.vmem %s2, 32
    %v144 = vld [vmem:[%s143] sm:$0xff]
    %v145 = vld [vmem:[%s143 + $0x8] sm:$0xff]
    %v146 = vld [vmem:[%s143 + $0x10] sm:$0xff]
    %v147 = vld [vmem:[%s143 + $0x18] sm:$0xff]
    %s148 = scalar_lea.vmem %s4, 1
    %v149 = vld [vmem:[%s148] sm:$0x1]
    %v151 = vperm.slane %v149, 0
    %153 = vmatpush.msra.mxu0 0.0
    %154 = vmatpush.msra.mxu0 0.0
    %155 = vmatpush.msra.mxu0 0.0
    %156 = vmatpush.msra.mxu0 0.0
    %157 = vmatpush.msra.mxu0 0.0
    %158 = vmatpush.msra.mxu0 0.0
    %159 = vmatpush.msra.mxu0 0.0
    %160 = vmatpush.msra.mxu0 0.0
    %161 = vmatpush.msra.mxu0 0.0
    %162 = vmatpush.msra.mxu0 0.0
    %163 = vmatpush.msra.mxu0 0.0
    %164 = vmatpush.msra.mxu0 0.0
    %165 = vmatpush.msra.mxu0 %v147
    %166 = vmatpush.msra.mxu0 %v146
    %167 = vmatpush.msra.mxu0 %v145
    %168 = vmatpush.msra.mxu0 %v144
    %169 = vmatmul.f32.gmra.mxu0 %v115
    %v170 = vpop.f32.mrf.mxu0
    %v171 = vadd.f32 %v151, %v170
    %172 = vmatmul.f32.gmra.mxu0 %v118
    %v173 = vpop.f32.mrf.mxu0
    %v174 = vadd.f32 %v151, %v173
    %175 = vdwg.mxu0
    %v176 = vld [vmem:[%s3] sm:$0xff]
    %v177 = vld [vmem:[%s3 + $0x8] sm:$0xff]
    %v178 = vld [vmem:[%s3 + $0x10] sm:$0xff]
    %v179 = vld [vmem:[%s3 + $0x18] sm:$0xff]
    %s180 = scalar_lea.vmem %s3, 32
    %v181 = vld [vmem:[%s180] sm:$0xff]
    %v182 = vld [vmem:[%s180 + $0x8] sm:$0xff]
    %v183 = vld [vmem:[%s180 + $0x10] sm:$0xff]
    %v184 = vld [vmem:[%s180 + $0x18] sm:$0xff]
    %v186 = vsel %vm113, 0.0, 0
    %188 = vmatpush.msra.mxu0 0.0
    %189 = vmatpush.msra.mxu0 0.0
    %190 = vmatpush.msra.mxu0 0.0
    %191 = vmatpush.msra.mxu0 0.0
    %192 = vmatpush.msra.mxu0 0.0
    %193 = vmatpush.msra.mxu0 0.0
    %194 = vmatpush.msra.mxu0 0.0
    %195 = vmatpush.msra.mxu0 0.0
    %196 = vmatpush.msra.mxu0 0.0
    %197 = vmatpush.msra.mxu0 0.0
    %198 = vmatpush.msra.mxu0 0.0
    %199 = vmatpush.msra.mxu0 0.0
    %200 = vmatpush.msra.mxu0 %v179
    %201 = vmatpush.msra.mxu0 %v178
    %202 = vmatpush.msra.mxu0 %v177
    %203 = vmatpush.msra.mxu0 %v176
    %204 = vmatmul.f32.gmra.mxu0 %v186
    %v205 = vpop.f32.mrf.mxu0
    %v206 = vadd.f32 0.0, %v205
    %207 = vdwg.mxu0
    %v208 = vadd.f32 %v138, %v206
    %v209 = vsub.f32 0.0, %v208
    %v210 = vmul.f32 %v209, 1.442695
    %v211 = vpow.pop %v210
    %v212 = vadd.f32 %v211, 1.0
    %v213 = vrcp.pop %v212
    %v214 = vmul.f32 %v212, %v213
    %v215 = vsub.f32 1.0, %v214
    %v216 = vmul.f32 %v213, %v215
    %v217 = vadd.f32 %v213, %v216
    %vm218 = vweird.f32 %v212
    %vm219 = vweird.f32 %v213
    %vm220 = vmor %vm218, %vm219
    %v221 = vsel %vm220, %v213, %v217
    %v222 = vand.u32 2147483647, %v212
    %vm223 = vcmp.eq.f32.partialorder %v222, 8.507059e+37
    %v224 = vand.u32 %v212, 2147483648
    %v225 = vor.u32 1.1754944e-38, %v224
    %v226 = vsel %vm223, %v225, %v221
    %v227 = vmul.f32 1.0, %v226
    %v228 = vtanh.pop %v208
    %v229 = vmul.f32 %v227, 0.0
    %231 = vrot.lane.b32.xlu0 %v228, 64
    %v232 = vpop.permute.xlu0 %231
    %v234 = vmul.f32 %v227, %v232
    %236 = vrot.lane.b32.xlu0 %v234, 32
    %v237 = vpop.permute.xlu0 %236
    %v239 = vadd.f32 %v229, %v237
    %v240 = vtanh.pop %v239
    %242 = vrot.lane.b32.xlu0 %v240, 64
    %v243 = vpop.permute.xlu0 %242
    %v245 = vmul.f32 %v227, %v243
    %246 = vmatpush.msra.mxu0 0.0
    %247 = vmatpush.msra.mxu0 0.0
    %248 = vmatpush.msra.mxu0 0.0
    %249 = vmatpush.msra.mxu0 0.0
    %250 = vmatpush.msra.mxu0 0.0
    %251 = vmatpush.msra.mxu0 0.0
    %252 = vmatpush.msra.mxu0 0.0
    %253 = vmatpush.msra.mxu0 0.0
    %254 = vmatpush.msra.mxu0 0.0
    %255 = vmatpush.msra.mxu0 0.0
    %256 = vmatpush.msra.mxu0 0.0
    %257 = vmatpush.msra.mxu0 0.0
    %258 = vmatpush.msra.mxu0 %v184
    %259 = vmatpush.msra.mxu0 %v183
    %260 = vmatpush.msra.mxu0 %v182
    %261 = vmatpush.msra.mxu0 %v181
    %262 = vmatmul.f32.gmra.mxu0 %v186
    %v263 = vpop.f32.mrf.mxu0
    %v264 = vadd.f32 0.0, %v263
    %265 = vdwg.mxu0
    %v267 = vrot.slane %v264, 2
    %v269 = vadd.f32 %v174, %v267
    %v270 = vsub.f32 0.0, %v269
    %v271 = vmul.f32 %v270, 1.442695
    %v272 = vpow.pop %v271
    %v273 = vadd.f32 %v272, 1.0
    %v274 = vrcp.pop %v273
    %v275 = vmul.f32 %v273, %v274
    %v276 = vsub.f32 1.0, %v275
    %v277 = vmul.f32 %v274, %v276
    %v278 = vadd.f32 %v274, %v277
    %vm279 = vweird.f32 %v273
    %vm280 = vweird.f32 %v274
    %vm281 = vmor %vm279, %vm280
    %v282 = vsel %vm281, %v274, %v278
    %v283 = vand.u32 2147483647, %v273
    %vm284 = vcmp.eq.f32.partialorder %v283, 8.507059e+37
    %v285 = vand.u32 %v273, 2147483648
    %v286 = vor.u32 1.1754944e-38, %v285
    %v287 = vsel %vm284, %v286, %v282
    %v288 = vmul.f32 1.0, %v287
    %v289 = vtanh.pop %v269
    %v290 = vmul.f32 %v288, 0.0
    %292 = vrot.lane.b32.xlu0 %v289, 64
    %v293 = vpop.permute.xlu0 %292
    %v295 = vmul.f32 %v288, %v293
    %297 = vrot.lane.b32.xlu0 %v295, 32
    %v298 = vpop.permute.xlu0 %297
    %v300 = vadd.f32 %v290, %v298
    %v301 = vtanh.pop %v300
    %303 = vrot.lane.b32.xlu0 %v301, 64
    %v304 = vpop.permute.xlu0 %303
    %v306 = vmul.f32 %v288, %v304
    %308 = vrot.lane.b32.xlu0 %v245, 32
    %v309 = vpop.permute.xlu0 %308
    %v310 = vsel %vm113, %v309, 0
    %312 = vmatpush.msra.mxu0 0.0
    %313 = vmatpush.msra.mxu0 0.0
    %314 = vmatpush.msra.mxu0 0.0
    %315 = vmatpush.msra.mxu0 0.0
    %316 = vmatpush.msra.mxu0 0.0
    %317 = vmatpush.msra.mxu0 0.0
    %318 = vmatpush.msra.mxu0 0.0
    %319 = vmatpush.msra.mxu0 0.0
    %320 = vmatpush.msra.mxu0 0.0
    %321 = vmatpush.msra.mxu0 0.0
    %322 = vmatpush.msra.mxu0 0.0
    %323 = vmatpush.msra.mxu0 0.0
    %324 = vmatpush.msra.mxu0 %v179
    %325 = vmatpush.msra.mxu0 %v178
    %326 = vmatpush.msra.mxu0 %v177
    %327 = vmatpush.msra.mxu0 %v176
    %328 = vmatmul.f32.gmra.mxu0 %v310
    %v329 = vpop.f32.mrf.mxu0
    %v330 = vadd.f32 0.0, %v329
    %331 = vdwg.mxu0
    %v333 = vrot.slane %v330, 6
    %v335 = vadd.f32 %v138, %v333
    %v336 = vsub.f32 0.0, %v335
    %v337 = vmul.f32 %v336, 1.442695
    %v338 = vpow.pop %v337
    %v339 = vadd.f32 %v338, 1.0
    %v340 = vrcp.pop %v339
    %v341 = vmul.f32 %v339, %v340
    %v342 = vsub.f32 1.0, %v341
    %v343 = vmul.f32 %v340, %v342
    %v344 = vadd.f32 %v340, %v343
    %vm345 = vweird.f32 %v339
    %vm346 = vweird.f32 %v340
    %vm347 = vmor %vm345, %vm346
    %v348 = vsel %vm347, %v340, %v344
    %v349 = vand.u32 2147483647, %v339
    %vm350 = vcmp.eq.f32.partialorder %v349, 8.507059e+37
    %v351 = vand.u32 %v339, 2147483648
    %v352 = vor.u32 1.1754944e-38, %v351
    %v353 = vsel %vm350, %v352, %v348
    %v354 = vmul.f32 1.0, %v353
    %v355 = vtanh.pop %v335
    %v357 = vrot.slane %v239, 6
    %v359 = vmul.f32 %v354, %v357
    %361 = vrot.lane.b32.xlu0 %v355, 64
    %v362 = vpop.permute.xlu0 %361
    %v364 = vmul.f32 %v354, %v362
    %366 = vrot.lane.b32.xlu0 %v364, 32
    %v367 = vpop.permute.xlu0 %366
    %v369 = vadd.f32 %v359, %v367
    %v370 = vtanh.pop %v369
    %372 = vrot.lane.b32.xlu0 %v370, 64
    %v373 = vpop.permute.xlu0 %372
    %v375 = vmul.f32 %v354, %v373
    %v377 = vrot.slane %v306, 6
    %378 = vrot.lane.b32.xlu0 %v377, 32
    %v379 = vpop.permute.xlu0 %378
    %v380 = vsel %vm113, %v379, 0
    %382 = vmatpush.msra.mxu0 0.0
    %383 = vmatpush.msra.mxu0 0.0
    %384 = vmatpush.msra.mxu0 0.0
    %385 = vmatpush.msra.mxu0 0.0
    %386 = vmatpush.msra.mxu0 0.0
    %387 = vmatpush.msra.mxu0 0.0
    %388 = vmatpush.msra.mxu0 0.0
    %389 = vmatpush.msra.mxu0 0.0
    %390 = vmatpush.msra.mxu0 0.0
    %391 = vmatpush.msra.mxu0 0.0
    %392 = vmatpush.msra.mxu0 0.0
    %393 = vmatpush.msra.mxu0 0.0
    %394 = vmatpush.msra.mxu0 %v184
    %395 = vmatpush.msra.mxu0 %v183
    %396 = vmatpush.msra.mxu0 %v182
    %397 = vmatpush.msra.mxu0 %v181
    %398 = vmatmul.f32.gmra.mxu0 %v380
    %v399 = vpop.f32.mrf.mxu0
    %v400 = vadd.f32 0.0, %v399
    %401 = vdwg.mxu0
    %v403 = vrot.slane %v400, 4
    %v405 = vadd.f32 %v174, %v403
    %v406 = vsub.f32 0.0, %v405
    %v407 = vmul.f32 %v406, 1.442695
    %v408 = vpow.pop %v407
    %v409 = vadd.f32 %v408, 1.0
    %v410 = vrcp.pop %v409
    %v411 = vmul.f32 %v409, %v410
    %v412 = vsub.f32 1.0, %v411
    %v413 = vmul.f32 %v410, %v412
    %v414 = vadd.f32 %v410, %v413
    %vm415 = vweird.f32 %v409
    %vm416 = vweird.f32 %v410
    %vm417 = vmor %vm415, %vm416
    %v418 = vsel %vm417, %v410, %v414
    %v419 = vand.u32 2147483647, %v409
    %vm420 = vcmp.eq.f32.partialorder %v419, 8.507059e+37
    %v421 = vand.u32 %v409, 2147483648
    %v422 = vor.u32 1.1754944e-38, %v421
    %v423 = vsel %vm420, %v422, %v418
    %v424 = vmul.f32 1.0, %v423
    %v425 = vtanh.pop %v405
    %v427 = vrot.slane %v300, 2
    %v429 = vmul.f32 %v424, %v427
    %431 = vrot.lane.b32.xlu0 %v425, 64
    %v432 = vpop.permute.xlu0 %431
    %v434 = vmul.f32 %v424, %v432
    %436 = vrot.lane.b32.xlu0 %v434, 32
    %v437 = vpop.permute.xlu0 %436
    %v439 = vadd.f32 %v429, %v437
    %v440 = vtanh.pop %v439
    %442 = vrot.lane.b32.xlu0 %v440, 64
    %v443 = vpop.permute.xlu0 %442
    %v445 = vmul.f32 %v424, %v443
    %v447 = vrot.slane %v375, 2
    %448 = vrot.lane.b32.xlu0 %v447, 32
    %v449 = vpop.permute.xlu0 %448
    %v450 = vsel %vm113, %v449, 0
    %452 = vmatpush.msra.mxu0 0.0
    %453 = vmatpush.msra.mxu0 0.0
    %454 = vmatpush.msra.mxu0 0.0
    %455 = vmatpush.msra.mxu0 0.0
    %456 = vmatpush.msra.mxu0 0.0
    %457 = vmatpush.msra.mxu0 0.0
    %458 = vmatpush.msra.mxu0 0.0
    %459 = vmatpush.msra.mxu0 0.0
    %460 = vmatpush.msra.mxu0 0.0
    %461 = vmatpush.msra.mxu0 0.0
    %462 = vmatpush.msra.mxu0 0.0
    %463 = vmatpush.msra.mxu0 0.0
    %464 = vmatpush.msra.mxu0 %v179
    %465 = vmatpush.msra.mxu0 %v178
    %466 = vmatpush.msra.mxu0 %v177
    %467 = vmatpush.msra.mxu0 %v176
    %468 = vmatmul.f32.gmra.mxu0 %v450
    %v469 = vpop.f32.mrf.mxu0
    %v470 = vadd.f32 0.0, %v469
    %471 = vdwg.mxu0
    %v473 = vrot.slane %v470, 4
    %v475 = vadd.f32 %v138, %v473
    %v476 = vsub.f32 0.0, %v475
    %v477 = vmul.f32 %v476, 1.442695
    %v478 = vpow.pop %v477
    %v479 = vadd.f32 %v478, 1.0
    %v480 = vrcp.pop %v479
    %v481 = vmul.f32 %v479, %v480
    %v482 = vsub.f32 1.0, %v481
    %v483 = vmul.f32 %v480, %v482
    %v484 = vadd.f32 %v480, %v483
    %vm485 = vweird.f32 %v479
    %vm486 = vweird.f32 %v480
    %vm487 = vmor %vm485, %vm486
    %v488 = vsel %vm487, %v480, %v484
    %v489 = vand.u32 2147483647, %v479
    %vm490 = vcmp.eq.f32.partialorder %v489, 8.507059e+37
    %v491 = vand.u32 %v479, 2147483648
    %v492 = vor.u32 1.1754944e-38, %v491
    %v493 = vsel %vm490, %v492, %v488
    %v494 = vmul.f32 1.0, %v493
    %v495 = vtanh.pop %v475
    %v497 = vrot.slane %v369, 6
    %v499 = vmul.f32 %v494, %v497
    %501 = vrot.lane.b32.xlu0 %v495, 64
    %v502 = vpop.permute.xlu0 %501
    %v504 = vmul.f32 %v494, %v502
    %506 = vrot.lane.b32.xlu0 %v504, 32
    %v507 = vpop.permute.xlu0 %506
    %v509 = vadd.f32 %v499, %v507
    %v510 = vtanh.pop %v509
    %512 = vrot.lane.b32.xlu0 %v510, 64
    %v513 = vpop.permute.xlu0 %512
    %v515 = vmul.f32 %v494, %v513
    %v517 = vrot.slane %v445, 4
    %518 = vrot.lane.b32.xlu0 %v517, 32
    %v519 = vpop.permute.xlu0 %518
    %v520 = vsel %vm113, %v519, 0
    %522 = vmatpush.msra.mxu0 0.0
    %523 = vmatpush.msra.mxu0 0.0
    %524 = vmatpush.msra.mxu0 0.0
    %525 = vmatpush.msra.mxu0 0.0
    %526 = vmatpush.msra.mxu0 0.0
    %527 = vmatpush.msra.mxu0 0.0
    %528 = vmatpush.msra.mxu0 0.0
    %529 = vmatpush.msra.mxu0 0.0
    %530 = vmatpush.msra.mxu0 0.0
    %531 = vmatpush.msra.mxu0 0.0
    %532 = vmatpush.msra.mxu0 0.0
    %533 = vmatpush.msra.mxu0 0.0
    %534 = vmatpush.msra.mxu0 %v184
    %535 = vmatpush.msra.mxu0 %v183
    %536 = vmatpush.msra.mxu0 %v182
    %537 = vmatpush.msra.mxu0 %v181
    %538 = vmatmul.f32.gmra.mxu0 %v520
    %v539 = vpop.f32.mrf.mxu0
    %v540 = vadd.f32 0.0, %v539
    %541 = vdwg.mxu0
    %v543 = vrot.slane %v540, 6
    %v545 = vadd.f32 %v174, %v543
    %v546 = vsub.f32 0.0, %v545
    %v547 = vmul.f32 %v546, 1.442695
    %v548 = vpow.pop %v547
    %v549 = vadd.f32 %v548, 1.0
    %v550 = vrcp.pop %v549
    %v551 = vmul.f32 %v549, %v550
    %v552 = vsub.f32 1.0, %v551
    %v553 = vmul.f32 %v550, %v552
    %v554 = vadd.f32 %v550, %v553
    %vm555 = vweird.f32 %v549
    %vm556 = vweird.f32 %v550
    %vm557 = vmor %vm555, %vm556
    %v558 = vsel %vm557, %v550, %v554
    %v559 = vand.u32 2147483647, %v549
    %vm560 = vcmp.eq.f32.partialorder %v559, 8.507059e+37
    %v561 = vand.u32 %v549, 2147483648
    %v562 = vor.u32 1.1754944e-38, %v561
    %v563 = vsel %vm560, %v562, %v558
    %v564 = vmul.f32 1.0, %v563
    %v565 = vtanh.pop %v545
    %v567 = vrot.slane %v439, 2
    %v569 = vmul.f32 %v564, %v567
    %571 = vrot.lane.b32.xlu0 %v565, 64
    %v572 = vpop.permute.xlu0 %571
    %v574 = vmul.f32 %v564, %v572
    %576 = vrot.lane.b32.xlu0 %v574, 32
    %v577 = vpop.permute.xlu0 %576
    %v579 = vadd.f32 %v569, %v577
    %v580 = vtanh.pop %v579
    %582 = vrot.lane.b32.xlu0 %v580, 64
    %v583 = vpop.permute.xlu0 %582
    %v585 = vmul.f32 %v564, %v583
    %v587 = vrot.slane %v515, 4
    %588 = vrot.lane.b32.xlu0 %v587, 32
    %v589 = vpop.permute.xlu0 %588
    %v590 = vsel %vm113, %v589, 0
    %592 = vmatpush.msra.mxu0 0.0
    %593 = vmatpush.msra.mxu0 0.0
    %594 = vmatpush.msra.mxu0 0.0
    %595 = vmatpush.msra.mxu0 0.0
    %596 = vmatpush.msra.mxu0 0.0
    %597 = vmatpush.msra.mxu0 0.0
    %598 = vmatpush.msra.mxu0 0.0
    %599 = vmatpush.msra.mxu0 0.0
    %600 = vmatpush.msra.mxu0 0.0
    %601 = vmatpush.msra.mxu0 0.0
    %602 = vmatpush.msra.mxu0 0.0
    %603 = vmatpush.msra.mxu0 0.0
    %604 = vmatpush.msra.mxu0 %v179
    %605 = vmatpush.msra.mxu0 %v178
    %606 = vmatpush.msra.mxu0 %v177
    %607 = vmatpush.msra.mxu0 %v176
    %608 = vmatmul.f32.gmra.mxu0 %v590
    %v609 = vpop.f32.mrf.mxu0
    %v610 = vadd.f32 0.0, %v609
    %611 = vdwg.mxu0
    %v613 = vrot.slane %v610, 2
    %v615 = vadd.f32 %v138, %v613
    %v616 = vsub.f32 0.0, %v615
    %v617 = vmul.f32 %v616, 1.442695
    %v618 = vpow.pop %v617
    %v619 = vadd.f32 %v618, 1.0
    %v620 = vrcp.pop %v619
    %v621 = vmul.f32 %v619, %v620
    %v622 = vsub.f32 1.0, %v621
    %v623 = vmul.f32 %v620, %v622
    %v624 = vadd.f32 %v620, %v623
    %vm625 = vweird.f32 %v619
    %vm626 = vweird.f32 %v620
    %vm627 = vmor %vm625, %vm626
    %v628 = vsel %vm627, %v620, %v624
    %v629 = vand.u32 2147483647, %v619
    %vm630 = vcmp.eq.f32.partialorder %v629, 8.507059e+37
    %v631 = vand.u32 %v619, 2147483648
    %v632 = vor.u32 1.1754944e-38, %v631
    %v633 = vsel %vm630, %v632, %v628
    %v634 = vmul.f32 1.0, %v633
    %v635 = vtanh.pop %v615
    %v637 = vrot.slane %v509, 6
    %v639 = vmul.f32 %v634, %v637
    %641 = vrot.lane.b32.xlu0 %v635, 64
    %v642 = vpop.permute.xlu0 %641
    %v644 = vmul.f32 %v634, %v642
    %646 = vrot.lane.b32.xlu0 %v644, 32
    %v647 = vpop.permute.xlu0 %646
    %v649 = vadd.f32 %v639, %v647
    %v650 = vtanh.pop %v649
    %652 = vrot.lane.b32.xlu0 %v650, 64
    %v653 = vpop.permute.xlu0 %652
    %v655 = vmul.f32 %v634, %v653
    %v657 = vrot.slane %v585, 2
    %658 = vrot.lane.b32.xlu0 %v657, 32
    %v659 = vpop.permute.xlu0 %658
    %v660 = vsel %vm113, %v659, 0
    %662 = vmatpush.msra.mxu0 0.0
    %663 = vmatpush.msra.mxu0 0.0
    %664 = vmatpush.msra.mxu0 0.0
    %665 = vmatpush.msra.mxu0 0.0
    %666 = vmatpush.msra.mxu0 0.0
    %667 = vmatpush.msra.mxu0 0.0
    %668 = vmatpush.msra.mxu0 0.0
    %669 = vmatpush.msra.mxu0 0.0
    %670 = vmatpush.msra.mxu0 0.0
    %671 = vmatpush.msra.mxu0 0.0
    %672 = vmatpush.msra.mxu0 0.0
    %673 = vmatpush.msra.mxu0 0.0
    %674 = vmatpush.msra.mxu0 %v184
    %675 = vmatpush.msra.mxu0 %v183
    %676 = vmatpush.msra.mxu0 %v182
    %677 = vmatpush.msra.mxu0 %v181
    %678 = vmatmul.f32.gmra.mxu0 %v660
    %v679 = vpop.f32.mrf.mxu0
    %v680 = vadd.f32 0.0, %v679
    %681 = vdwg.mxu0
    %v682 = vadd.f32 %v174, %v680
    %v683 = vsub.f32 0.0, %v682
    %v684 = vmul.f32 %v683, 1.442695
    %v685 = vpow.pop %v684
    %v686 = vadd.f32 %v685, 1.0
    %v687 = vrcp.pop %v686
    %v688 = vmul.f32 %v686, %v687
    %v689 = vsub.f32 1.0, %v688
    %v690 = vmul.f32 %v687, %v689
    %v691 = vadd.f32 %v687, %v690
    %vm692 = vweird.f32 %v686
    %vm693 = vweird.f32 %v687
    %vm694 = vmor %vm692, %vm693
    %v695 = vsel %vm694, %v687, %v691
    %v696 = vand.u32 2147483647, %v686
    %vm697 = vcmp.eq.f32.partialorder %v696, 8.507059e+37
    %v698 = vand.u32 %v686, 2147483648
    %v699 = vor.u32 1.1754944e-38, %v698
    %v700 = vsel %vm697, %v699, %v695
    %v701 = vmul.f32 1.0, %v700
    %v702 = vtanh.pop %v682
    %v704 = vrot.slane %v579, 2
    %v706 = vmul.f32 %v701, %v704
    %708 = vrot.lane.b32.xlu0 %v702, 64
    %v709 = vpop.permute.xlu0 %708
    %v711 = vmul.f32 %v701, %v709
    %713 = vrot.lane.b32.xlu0 %v711, 32
    %v714 = vpop.permute.xlu0 %713
    %v716 = vadd.f32 %v706, %v714
    %v717 = vtanh.pop %v716
    %719 = vrot.lane.b32.xlu0 %v717, 64
    %v720 = vpop.permute.xlu0 %719
    %v722 = vmul.f32 %v701, %v720
    %v724 = vrot.slane %v655, 6
    %725 = vrot.lane.b32.xlu0 %v724, 32
    %v726 = vpop.permute.xlu0 %725
    %v727 = vsel %vm113, %v726, 0
    %729 = vmatpush.msra.mxu0 0.0
    %730 = vmatpush.msra.mxu0 0.0
    %731 = vmatpush.msra.mxu0 0.0
    %732 = vmatpush.msra.mxu0 0.0
    %733 = vmatpush.msra.mxu0 0.0
    %734 = vmatpush.msra.mxu0 0.0
    %735 = vmatpush.msra.mxu0 0.0
    %736 = vmatpush.msra.mxu0 0.0
    %737 = vmatpush.msra.mxu0 0.0
    %738 = vmatpush.msra.mxu0 0.0
    %739 = vmatpush.msra.mxu0 0.0
    %740 = vmatpush.msra.mxu0 0.0
    %741 = vmatpush.msra.mxu0 %v179
    %742 = vmatpush.msra.mxu0 %v178
    %743 = vmatpush.msra.mxu0 %v177
    %744 = vmatpush.msra.mxu0 %v176
    %745 = vmatmul.f32.gmra.mxu0 %v727
    %v746 = vpop.f32.mrf.mxu0
    %v747 = vadd.f32 0.0, %v746
    %748 = vdwg.mxu0
    %v749 = vadd.f32 %v141, %v747
    %v750 = vsub.f32 0.0, %v749
    %v751 = vmul.f32 %v750, 1.442695
    %v752 = vpow.pop %v751
    %v753 = vadd.f32 %v752, 1.0
    %v754 = vrcp.pop %v753
    %v755 = vmul.f32 %v753, %v754
    %v756 = vsub.f32 1.0, %v755
    %v757 = vmul.f32 %v754, %v756
    %v758 = vadd.f32 %v754, %v757
    %vm759 = vweird.f32 %v753
    %vm760 = vweird.f32 %v754
    %vm761 = vmor %vm759, %vm760
    %v762 = vsel %vm761, %v754, %v758
    %v763 = vand.u32 2147483647, %v753
    %vm764 = vcmp.eq.f32.partialorder %v763, 8.507059e+37
    %v765 = vand.u32 %v753, 2147483648
    %v766 = vor.u32 1.1754944e-38, %v765
    %v767 = vsel %vm764, %v766, %v762
    %v768 = vmul.f32 1.0, %v767
    %v769 = vtanh.pop %v749
    %v771 = vrot.slane %v649, 6
    %v773 = vmul.f32 %v768, %v771
    %775 = vrot.lane.b32.xlu0 %v769, 64
    %v776 = vpop.permute.xlu0 %775
    %v778 = vmul.f32 %v768, %v776
    %780 = vrot.lane.b32.xlu0 %v778, 32
    %v781 = vpop.permute.xlu0 %780
    %v783 = vadd.f32 %v773, %v781
    %v784 = vtanh.pop %v783
    %786 = vrot.lane.b32.xlu0 %v784, 64
    %v787 = vpop.permute.xlu0 %786
    %v789 = vmul.f32 %v768, %v787
    %791 = vrot.lane.b32.xlu0 %v722, 32
    %v792 = vpop.permute.xlu0 %791
    %v793 = vsel %vm113, %v792, 0
    %795 = vmatpush.msra.mxu0 0.0
    %796 = vmatpush.msra.mxu0 0.0
    %797 = vmatpush.msra.mxu0 0.0
    %798 = vmatpush.msra.mxu0 0.0
    %799 = vmatpush.msra.mxu0 0.0
    %800 = vmatpush.msra.mxu0 0.0
    %801 = vmatpush.msra.mxu0 0.0
    %802 = vmatpush.msra.mxu0 0.0
    %803 = vmatpush.msra.mxu0 0.0
    %804 = vmatpush.msra.mxu0 0.0
    %805 = vmatpush.msra.mxu0 0.0
    %806 = vmatpush.msra.mxu0 0.0
    %807 = vmatpush.msra.mxu0 %v184
    %808 = vmatpush.msra.mxu0 %v183
    %809 = vmatpush.msra.mxu0 %v182
    %810 = vmatpush.msra.mxu0 %v181
    %811 = vmatmul.f32.gmra.mxu0 %v793
    %v812 = vpop.f32.mrf.mxu0
    %v813 = vadd.f32 0.0, %v812
    %814 = vdwg.mxu0
    %v816 = vrot.slane %v813, 2
    %v818 = vadd.f32 %v171, %v816
    %v819 = vsub.f32 0.0, %v818
    %v820 = vmul.f32 %v819, 1.442695
    %v821 = vpow.pop %v820
    %v822 = vadd.f32 %v821, 1.0
    %v823 = vrcp.pop %v822
    %v824 = vmul.f32 %v822, %v823
    %v825 = vsub.f32 1.0, %v824
    %v826 = vmul.f32 %v823, %v825
    %v827 = vadd.f32 %v823, %v826
    %vm828 = vweird.f32 %v822
    %vm829 = vweird.f32 %v823
    %vm830 = vmor %vm828, %vm829
    %v831 = vsel %vm830, %v823, %v827
    %v832 = vand.u32 2147483647, %v822
    %vm833 = vcmp.eq.f32.partialorder %v832, 8.507059e+37
    %v834 = vand.u32 %v822, 2147483648
    %v835 = vor.u32 1.1754944e-38, %v834
    %v836 = vsel %vm833, %v835, %v831
    %v837 = vmul.f32 1.0, %v836
    %v838 = vtanh.pop %v818
    %v840 = vrot.slane %v716, 2
    %v842 = vmul.f32 %v837, %v840
    %844 = vrot.lane.b32.xlu0 %v838, 64
    %v845 = vpop.permute.xlu0 %844
    %v847 = vmul.f32 %v837, %v845
    %849 = vrot.lane.b32.xlu0 %v847, 32
    %v850 = vpop.permute.xlu0 %849
    %v852 = vadd.f32 %v842, %v850
    %v853 = vtanh.pop %v852
    %855 = vrot.lane.b32.xlu0 %v853, 64
    %v856 = vpop.permute.xlu0 %855
    %v858 = vmul.f32 %v837, %v856
    %860 = vrot.lane.b32.xlu0 %v789, 32
    %v861 = vpop.permute.xlu0 %860
    %v862 = vsel %vm113, %v861, 0
    %864 = vmatpush.msra.mxu0 0.0
    %865 = vmatpush.msra.mxu0 0.0
    %866 = vmatpush.msra.mxu0 0.0
    %867 = vmatpush.msra.mxu0 0.0
    %868 = vmatpush.msra.mxu0 0.0
    %869 = vmatpush.msra.mxu0 0.0
    %870 = vmatpush.msra.mxu0 0.0
    %871 = vmatpush.msra.mxu0 0.0
    %872 = vmatpush.msra.mxu0 0.0
    %873 = vmatpush.msra.mxu0 0.0
    %874 = vmatpush.msra.mxu0 0.0
    %875 = vmatpush.msra.mxu0 0.0
    %876 = vmatpush.msra.mxu0 %v179
    %877 = vmatpush.msra.mxu0 %v178
    %878 = vmatpush.msra.mxu0 %v177
    %879 = vmatpush.msra.mxu0 %v176
    %880 = vmatmul.f32.gmra.mxu0 %v862
    %v881 = vpop.f32.mrf.mxu0
    %v882 = vadd.f32 0.0, %v881
    %883 = vdwg.mxu0
    %v885 = vrot.slane %v882, 6
    %v887 = vadd.f32 %v141, %v885
    %v888 = vsub.f32 0.0, %v887
    %v889 = vmul.f32 %v888, 1.442695
    %v890 = vpow.pop %v889
    %v891 = vadd.f32 %v890, 1.0
    %v892 = vrcp.pop %v891
    %v893 = vmul.f32 %v891, %v892
    %v894 = vsub.f32 1.0, %v893
    %v895 = vmul.f32 %v892, %v894
    %v896 = vadd.f32 %v892, %v895
    %vm897 = vweird.f32 %v891
    %vm898 = vweird.f32 %v892
    %vm899 = vmor %vm897, %vm898
    %v900 = vsel %vm899, %v892, %v896
    %v901 = vand.u32 2147483647, %v891
    %vm902 = vcmp.eq.f32.partialorder %v901, 8.507059e+37
    %v903 = vand.u32 %v891, 2147483648
    %v904 = vor.u32 1.1754944e-38, %v903
    %v905 = vsel %vm902, %v904, %v900
    %v906 = vmul.f32 1.0, %v905
    %v907 = vtanh.pop %v887
    %v909 = vrot.slane %v783, 6
    %v911 = vmul.f32 %v906, %v909
    %913 = vrot.lane.b32.xlu0 %v907, 64
    %v914 = vpop.permute.xlu0 %913
    %v916 = vmul.f32 %v906, %v914
    %918 = vrot.lane.b32.xlu0 %v916, 32
    %v919 = vpop.permute.xlu0 %918
    %v921 = vadd.f32 %v911, %v919
    %v922 = vtanh.pop %v921
    %924 = vrot.lane.b32.xlu0 %v922, 64
    %v925 = vpop.permute.xlu0 %924
    %v927 = vmul.f32 %v906, %v925
    %v929 = vrot.slane %v858, 6
    %930 = vrot.lane.b32.xlu0 %v929, 32
    %v931 = vpop.permute.xlu0 %930
    %v932 = vsel %vm113, %v931, 0
    %934 = vmatpush.msra.mxu0 0.0
    %935 = vmatpush.msra.mxu0 0.0
    %936 = vmatpush.msra.mxu0 0.0
    %937 = vmatpush.msra.mxu0 0.0
    %938 = vmatpush.msra.mxu0 0.0
    %939 = vmatpush.msra.mxu0 0.0
    %940 = vmatpush.msra.mxu0 0.0
    %941 = vmatpush.msra.mxu0 0.0
    %942 = vmatpush.msra.mxu0 0.0
    %943 = vmatpush.msra.mxu0 0.0
    %944 = vmatpush.msra.mxu0 0.0
    %945 = vmatpush.msra.mxu0 0.0
    %946 = vmatpush.msra.mxu0 %v184
    %947 = vmatpush.msra.mxu0 %v183
    %948 = vmatpush.msra.mxu0 %v182
    %949 = vmatpush.msra.mxu0 %v181
    %950 = vmatmul.f32.gmra.mxu0 %v932
    %v951 = vpop.f32.mrf.mxu0
    %v952 = vadd.f32 0.0, %v951
    %953 = vdwg.mxu0
    %v955 = vrot.slane %v952, 4
    %v957 = vadd.f32 %v171, %v955
    %v958 = vsub.f32 0.0, %v957
    %v959 = vmul.f32 %v958, 1.442695
    %v960 = vpow.pop %v959
    %v961 = vadd.f32 %v960, 1.0
    %v962 = vrcp.pop %v961
    %v963 = vmul.f32 %v961, %v962
    %v964 = vsub.f32 1.0, %v963
    %v965 = vmul.f32 %v962, %v964
    %v966 = vadd.f32 %v962, %v965
    %vm967 = vweird.f32 %v961
    %vm968 = vweird.f32 %v962
    %vm969 = vmor %vm967, %vm968
    %v970 = vsel %vm969, %v962, %v966
    %v971 = vand.u32 2147483647, %v961
    %vm972 = vcmp.eq.f32.partialorder %v971, 8.507059e+37
    %v973 = vand.u32 %v961, 2147483648
    %v974 = vor.u32 1.1754944e-38, %v973
    %v975 = vsel %vm972, %v974, %v970
    %v976 = vmul.f32 1.0, %v975
    %v977 = vtanh.pop %v957
    %v979 = vrot.slane %v852, 2
    %v981 = vmul.f32 %v976, %v979
    %983 = vrot.lane.b32.xlu0 %v977, 64
    %v984 = vpop.permute.xlu0 %983
    %v986 = vmul.f32 %v976, %v984
    %988 = vrot.lane.b32.xlu0 %v986, 32
    %v989 = vpop.permute.xlu0 %988
    %v991 = vadd.f32 %v981, %v989
    %v992 = vtanh.pop %v991
    %994 = vrot.lane.b32.xlu0 %v992, 64
    %v995 = vpop.permute.xlu0 %994
    %v997 = vmul.f32 %v976, %v995
    %v999 = vrot.slane %v927, 2
    %1000 = vrot.lane.b32.xlu0 %v999, 32
    %v1001 = vpop.permute.xlu0 %1000
    %v1002 = vsel %vm113, %v1001, 0
    %1004 = vmatpush.msra.mxu0 0.0
    %1005 = vmatpush.msra.mxu0 0.0
    %1006 = vmatpush.msra.mxu0 0.0
    %1007 = vmatpush.msra.mxu0 0.0
    %1008 = vmatpush.msra.mxu0 0.0
    %1009 = vmatpush.msra.mxu0 0.0
    %1010 = vmatpush.msra.mxu0 0.0
    %1011 = vmatpush.msra.mxu0 0.0
    %1012 = vmatpush.msra.mxu0 0.0
    %1013 = vmatpush.msra.mxu0 0.0
    %1014 = vmatpush.msra.mxu0 0.0
    %1015 = vmatpush.msra.mxu0 0.0
    %1016 = vmatpush.msra.mxu0 %v179
    %1017 = vmatpush.msra.mxu0 %v178
    %1018 = vmatpush.msra.mxu0 %v177
    %1019 = vmatpush.msra.mxu0 %v176
    %1020 = vmatmul.f32.gmra.mxu0 %v1002
    %v1021 = vpop.f32.mrf.mxu0
    %v1022 = vadd.f32 0.0, %v1021
    %1023 = vdwg.mxu0
    %v1025 = vrot.slane %v1022, 4
    %v1027 = vadd.f32 %v141, %v1025
    %v1028 = vsub.f32 0.0, %v1027
    %v1029 = vmul.f32 %v1028, 1.442695
    %v1030 = vpow.pop %v1029
    %v1031 = vadd.f32 %v1030, 1.0
    %v1032 = vrcp.pop %v1031
    %v1033 = vmul.f32 %v1031, %v1032
    %v1034 = vsub.f32 1.0, %v1033
    %v1035 = vmul.f32 %v1032, %v1034
    %v1036 = vadd.f32 %v1032, %v1035
    %vm1037 = vweird.f32 %v1031
    %vm1038 = vweird.f32 %v1032
    %vm1039 = vmor %vm1037, %vm1038
    %v1040 = vsel %vm1039, %v1032, %v1036
    %v1041 = vand.u32 2147483647, %v1031
    %vm1042 = vcmp.eq.f32.partialorder %v1041, 8.507059e+37
    %v1043 = vand.u32 %v1031, 2147483648
    %v1044 = vor.u32 1.1754944e-38, %v1043
    %v1045 = vsel %vm1042, %v1044, %v1040
    %v1046 = vmul.f32 1.0, %v1045
    %v1047 = vtanh.pop %v1027
    %v1049 = vrot.slane %v921, 6
    %v1051 = vmul.f32 %v1046, %v1049
    %1053 = vrot.lane.b32.xlu0 %v1047, 64
    %v1054 = vpop.permute.xlu0 %1053
    %v1056 = vmul.f32 %v1046, %v1054
    %1058 = vrot.lane.b32.xlu0 %v1056, 32
    %v1059 = vpop.permute.xlu0 %1058
    %v1061 = vadd.f32 %v1051, %v1059
    %v1062 = vtanh.pop %v1061
    %1064 = vrot.lane.b32.xlu0 %v1062, 64
    %v1065 = vpop.permute.xlu0 %1064
    %v1067 = vmul.f32 %v1046, %v1065
    %v1069 = vrot.slane %v997, 4
    %1070 = vrot.lane.b32.xlu0 %v1069, 32
    %v1071 = vpop.permute.xlu0 %1070
    %v1072 = vsel %vm113, %v1071, 0
    %1074 = vmatpush.msra.mxu0 0.0
    %1075 = vmatpush.msra.mxu0 0.0
    %1076 = vmatpush.msra.mxu0 0.0
    %1077 = vmatpush.msra.mxu0 0.0
    %1078 = vmatpush.msra.mxu0 0.0
    %1079 = vmatpush.msra.mxu0 0.0
    %1080 = vmatpush.msra.mxu0 0.0
    %1081 = vmatpush.msra.mxu0 0.0
    %1082 = vmatpush.msra.mxu0 0.0
    %1083 = vmatpush.msra.mxu0 0.0
    %1084 = vmatpush.msra.mxu0 0.0
    %1085 = vmatpush.msra.mxu0 0.0
    %1086 = vmatpush.msra.mxu0 %v184
    %1087 = vmatpush.msra.mxu0 %v183
    %1088 = vmatpush.msra.mxu0 %v182
    %1089 = vmatpush.msra.mxu0 %v181
    %1090 = vmatmul.f32.gmra.mxu0 %v1072
    %v1091 = vpop.f32.mrf.mxu0
    %v1092 = vadd.f32 0.0, %v1091
    %1093 = vdwg.mxu0
    %v1095 = vrot.slane %v1092, 6
    %v1097 = vadd.f32 %v171, %v1095
    %v1098 = vsub.f32 0.0, %v1097
    %v1099 = vmul.f32 %v1098, 1.442695
    %v1100 = vpow.pop %v1099
    %v1101 = vadd.f32 %v1100, 1.0
    %v1102 = vrcp.pop %v1101
    %v1103 = vmul.f32 %v1101, %v1102
    %v1104 = vsub.f32 1.0, %v1103
    %v1105 = vmul.f32 %v1102, %v1104
    %v1106 = vadd.f32 %v1102, %v1105
    %vm1107 = vweird.f32 %v1101
    %vm1108 = vweird.f32 %v1102
    %vm1109 = vmor %vm1107, %vm1108
    %v1110 = vsel %vm1109, %v1102, %v1106
    %v1111 = vand.u32 2147483647, %v1101
    %vm1112 = vcmp.eq.f32.partialorder %v1111, 8.507059e+37
    %v1113 = vand.u32 %v1101, 2147483648
    %v1114 = vor.u32 1.1754944e-38, %v1113
    %v1115 = vsel %vm1112, %v1114, %v1110
    %v1116 = vmul.f32 1.0, %v1115
    %v1117 = vtanh.pop %v1097
    %v1119 = vrot.slane %v991, 2
    %v1121 = vmul.f32 %v1116, %v1119
    %1123 = vrot.lane.b32.xlu0 %v1117, 64
    %v1124 = vpop.permute.xlu0 %1123
    %v1126 = vmul.f32 %v1116, %v1124
    %1128 = vrot.lane.b32.xlu0 %v1126, 32
    %v1129 = vpop.permute.xlu0 %1128
    %v1131 = vadd.f32 %v1121, %v1129
    %v1132 = vtanh.pop %v1131
    %1134 = vrot.lane.b32.xlu0 %v1132, 64
    %v1135 = vpop.permute.xlu0 %1134
    %v1137 = vmul.f32 %v1116, %v1135
    %v1139 = vrot.slane %v1067, 4
    %1140 = vrot.lane.b32.xlu0 %v1139, 32
    %v1141 = vpop.permute.xlu0 %1140
    %v1142 = vsel %vm113, %v1141, 0
    %1144 = vmatpush.msra.mxu0 0.0
    %1145 = vmatpush.msra.mxu0 0.0
    %1146 = vmatpush.msra.mxu0 0.0
    %1147 = vmatpush.msra.mxu0 0.0
    %1148 = vmatpush.msra.mxu0 0.0
    %1149 = vmatpush.msra.mxu0 0.0
    %1150 = vmatpush.msra.mxu0 0.0
    %1151 = vmatpush.msra.mxu0 0.0
    %1152 = vmatpush.msra.mxu0 0.0
    %1153 = vmatpush.msra.mxu0 0.0
    %1154 = vmatpush.msra.mxu0 0.0
    %1155 = vmatpush.msra.mxu0 0.0
    %1156 = vmatpush.msra.mxu0 %v179
    %1157 = vmatpush.msra.mxu0 %v178
    %1158 = vmatpush.msra.mxu0 %v177
    %1159 = vmatpush.msra.mxu0 %v176
    %1160 = vmatmul.f32.gmra.mxu0 %v1142
    %v1161 = vpop.f32.mrf.mxu0
    %v1162 = vadd.f32 0.0, %v1161
    %1163 = vdwg.mxu0
    %v1165 = vrot.slane %v1162, 2
    %v1167 = vadd.f32 %v141, %v1165
    %v1168 = vsub.f32 0.0, %v1167
    %v1169 = vmul.f32 %v1168, 1.442695
    %v1170 = vpow.pop %v1169
    %v1171 = vadd.f32 %v1170, 1.0
    %v1172 = vrcp.pop %v1171
    %v1173 = vmul.f32 %v1171, %v1172
    %v1174 = vsub.f32 1.0, %v1173
    %v1175 = vmul.f32 %v1172, %v1174
    %v1176 = vadd.f32 %v1172, %v1175
    %vm1177 = vweird.f32 %v1171
    %vm1178 = vweird.f32 %v1172
    %vm1179 = vmor %vm1177, %vm1178
    %v1180 = vsel %vm1179, %v1172, %v1176
    %v1181 = vand.u32 2147483647, %v1171
    %vm1182 = vcmp.eq.f32.partialorder %v1181, 8.507059e+37
    %v1183 = vand.u32 %v1171, 2147483648
    %v1184 = vor.u32 1.1754944e-38, %v1183
    %v1185 = vsel %vm1182, %v1184, %v1180
    %v1186 = vmul.f32 1.0, %v1185
    %v1187 = vtanh.pop %v1167
    %v1189 = vrot.slane %v1061, 6
    %v1191 = vmul.f32 %v1186, %v1189
    %1193 = vrot.lane.b32.xlu0 %v1187, 64
    %v1194 = vpop.permute.xlu0 %1193
    %v1196 = vmul.f32 %v1186, %v1194
    %1198 = vrot.lane.b32.xlu0 %v1196, 32
    %v1199 = vpop.permute.xlu0 %1198
    %v1201 = vadd.f32 %v1191, %v1199
    %v1202 = vtanh.pop %v1201
    %1204 = vrot.lane.b32.xlu0 %v1202, 64
    %v1205 = vpop.permute.xlu0 %1204
    %v1207 = vmul.f32 %v1186, %v1205
    %v1209 = vrot.slane %v1137, 2
    %1210 = vrot.lane.b32.xlu0 %v1209, 32
    %v1211 = vpop.permute.xlu0 %1210
    %v1212 = vsel %vm113, %v1211, 0
    %1214 = vmatpush.msra.mxu0 0.0
    %1215 = vmatpush.msra.mxu0 0.0
    %1216 = vmatpush.msra.mxu0 0.0
    %1217 = vmatpush.msra.mxu0 0.0
    %1218 = vmatpush.msra.mxu0 0.0
    %1219 = vmatpush.msra.mxu0 0.0
    %1220 = vmatpush.msra.mxu0 0.0
    %1221 = vmatpush.msra.mxu0 0.0
    %1222 = vmatpush.msra.mxu0 0.0
    %1223 = vmatpush.msra.mxu0 0.0
    %1224 = vmatpush.msra.mxu0 0.0
    %1225 = vmatpush.msra.mxu0 0.0
    %1226 = vmatpush.msra.mxu0 %v184
    %1227 = vmatpush.msra.mxu0 %v183
    %1228 = vmatpush.msra.mxu0 %v182
    %1229 = vmatpush.msra.mxu0 %v181
    %1230 = vmatmul.f32.gmra.mxu0 %v1212
    %v1231 = vpop.f32.mrf.mxu0
    %v1232 = vadd.f32 0.0, %v1231
    %1233 = vdwg.mxu0
    %v1234 = vadd.f32 %v171, %v1232
    %v1235 = vsub.f32 0.0, %v1234
    %v1236 = vmul.f32 %v1235, 1.442695
    %v1237 = vpow.pop %v1236
    %v1238 = vadd.f32 %v1237, 1.0
    %v1239 = vrcp.pop %v1238
    %v1240 = vmul.f32 %v1238, %v1239
    %v1241 = vsub.f32 1.0, %v1240
    %v1242 = vmul.f32 %v1239, %v1241
    %v1243 = vadd.f32 %v1239, %v1242
    %vm1244 = vweird.f32 %v1238
    %vm1245 = vweird.f32 %v1239
    %vm1246 = vmor %vm1244, %vm1245
    %v1247 = vsel %vm1246, %v1239, %v1243
    %v1248 = vand.u32 2147483647, %v1238
    %vm1249 = vcmp.eq.f32.partialorder %v1248, 8.507059e+37
    %v1250 = vand.u32 %v1238, 2147483648
    %v1251 = vor.u32 1.1754944e-38, %v1250
    %v1252 = vsel %vm1249, %v1251, %v1247
    %v1253 = vmul.f32 1.0, %v1252
    %v1254 = vtanh.pop %v1234
    %v1256 = vrot.slane %v1131, 2
    %v1258 = vmul.f32 %v1253, %v1256
    %1260 = vrot.lane.b32.xlu0 %v1254, 64
    %v1261 = vpop.permute.xlu0 %1260
    %v1263 = vmul.f32 %v1253, %v1261
    %1265 = vrot.lane.b32.xlu0 %v1263, 32
    %v1266 = vpop.permute.xlu0 %1265
    %v1268 = vadd.f32 %v1258, %v1266
    %v1269 = vtanh.pop %v1268
    %1271 = vrot.lane.b32.xlu0 %v1269, 64
    %v1272 = vpop.permute.xlu0 %1271
    %v1274 = vmul.f32 %v1253, %v1272
    %1277 = vrot.lane.b32.xlu0 %v1274, 64
    %v1278 = vpop.permute.xlu0 %1277
    %v1280 = vsel %vm113, %v309, %v1278
    %1281 = vrot.lane.b32.xlu0 %v375, 32
    %v1282 = vpop.permute.xlu0 %1281
    %1284 = vrot.lane.b32.xlu0 %v1137, 64
    %v1285 = vpop.permute.xlu0 %1284
    %v1287 = vsel %vm113, %v1282, %v1285
    %1288 = vrot.lane.b32.xlu0 %v515, 32
    %v1289 = vpop.permute.xlu0 %1288
    %1291 = vrot.lane.b32.xlu0 %v997, 64
    %v1292 = vpop.permute.xlu0 %1291
    %v1294 = vsel %vm113, %v1289, %v1292
    %1295 = vrot.lane.b32.xlu0 %v655, 32
    %v1296 = vpop.permute.xlu0 %1295
    %1298 = vrot.lane.b32.xlu0 %v858, 64
    %v1299 = vpop.permute.xlu0 %1298
    %v1301 = vsel %vm113, %v1296, %v1299
    %1303 = vrot.lane.b32.xlu0 %v722, 64
    %v1304 = vpop.permute.xlu0 %1303
    %v1306 = vsel %vm113, %v861, %v1304
    %1307 = vrot.lane.b32.xlu0 %v927, 32
    %v1308 = vpop.permute.xlu0 %1307
    %1310 = vrot.lane.b32.xlu0 %v585, 64
    %v1311 = vpop.permute.xlu0 %1310
    %v1313 = vsel %vm113, %v1308, %v1311
    %1314 = vrot.lane.b32.xlu0 %v1067, 32
    %v1315 = vpop.permute.xlu0 %1314
    %1317 = vrot.lane.b32.xlu0 %v445, 64
    %v1318 = vpop.permute.xlu0 %1317
    %v1320 = vsel %vm113, %v1315, %v1318
    %1322 = vrot.lane.b32.xlu0 %v1207, 32
    %v1323 = vpop.permute.xlu0 %1322
    %1325 = vrot.lane.b32.xlu0 %v306, 64
    %v1326 = vpop.permute.xlu0 %1325
    %v1328 = vsel %vm113, %v1323, %v1326
    %v1329 = vsel %vm78, %v1280, %v1287
    %vm1330 = vcmask 1043456
    %v1331 = vsel %vm1330, %v1329, %v1294
    %vm1332 = vcmask 1045504
    %v1333 = vsel %vm1332, %v1331, %v1301
    %v1334 = vsel %vm78, %v1306, %v1313
    %v1335 = vsel %vm1330, %v1334, %v1320
    %v1336 = vsel %vm1332, %v1335, %v1328
    %v1337 = vld [vmem:[%s5] sm:$0xff]
    %v1338 = vld [vmem:[%s5 + $0x8] sm:$0xff]
    %v1339 = vld [vmem:[%s5 + $0x10] sm:$0xff]
    %v1340 = vld [vmem:[%s5 + $0x18] sm:$0xff]
    %v1341 = vld [vmem:[%s5 + $0x20] sm:$0xff]
    %v1342 = vld [vmem:[%s5 + $0x28] sm:$0xff]
    %v1343 = vld [vmem:[%s5 + $0x30] sm:$0xff]
    %v1344 = vld [vmem:[%s5 + $0x38] sm:$0xff]
    %v1345 = vld [vmem:[%s7] sm:$0x1]
    %v1347 = vperm.slane %v1345, 0
    %vm1349 = vcmask 523264
    %v1351 = vsel %vm1349, %v1333, 0
    %v1354 = vsel %vm1349, %v1336, 0
    %1356 = vmatpush.msra.mxu0 0.0
    %1357 = vmatpush.msra.mxu0 0.0
    %1358 = vmatpush.msra.mxu0 0.0
    %1359 = vmatpush.msra.mxu0 0.0
    %1360 = vmatpush.msra.mxu0 0.0
    %1361 = vmatpush.msra.mxu0 0.0
    %1362 = vmatpush.msra.mxu0 0.0
    %1363 = vmatpush.msra.mxu0 0.0
    %1364 = vmatpush.msra.mxu0 %v1344
    %1365 = vmatpush.msra.mxu0 %v1343
    %1366 = vmatpush.msra.mxu0 %v1342
    %1367 = vmatpush.msra.mxu0 %v1341
    %1368 = vmatpush.msra.mxu0 %v1340
    %1369 = vmatpush.msra.mxu0 %v1339
    %1370 = vmatpush.msra.mxu0 %v1338
    %1371 = vmatpush.msra.mxu0 %v1337
    %1372 = vmatmul.f32.gmra.mxu0 %v1351
    %v1373 = vpop.f32.mrf.mxu0
    %v1374 = vadd.f32 %v1347, %v1373
    %1375 = vmatmul.f32.gmra.mxu0 %v1354
    %v1376 = vpop.f32.mrf.mxu0
    %v1377 = vadd.f32 %v1347, %v1376
    %1378 = vdwg.mxu0
    %s1379 = scalar_lea.vmem %s5, 64
    %v1380 = vld [vmem:[%s1379] sm:$0xff]
    %v1381 = vld [vmem:[%s1379 + $0x8] sm:$0xff]
    %v1382 = vld [vmem:[%s1379 + $0x10] sm:$0xff]
    %v1383 = vld [vmem:[%s1379 + $0x18] sm:$0xff]
    %v1384 = vld [vmem:[%s1379 + $0x20] sm:$0xff]
    %v1385 = vld [vmem:[%s1379 + $0x28] sm:$0xff]
    %v1386 = vld [vmem:[%s1379 + $0x30] sm:$0xff]
    %v1387 = vld [vmem:[%s1379 + $0x38] sm:$0xff]
    %s1388 = scalar_lea.vmem %s7, 1
    %v1389 = vld [vmem:[%s1388] sm:$0x1]
    %v1391 = vperm.slane %v1389, 0
    %1393 = vmatpush.msra.mxu0 0.0
    %1394 = vmatpush.msra.mxu0 0.0
    %1395 = vmatpush.msra.mxu0 0.0
    %1396 = vmatpush.msra.mxu0 0.0
    %1397 = vmatpush.msra.mxu0 0.0
    %1398 = vmatpush.msra.mxu0 0.0
    %1399 = vmatpush.msra.mxu0 0.0
    %1400 = vmatpush.msra.mxu0 0.0
    %1401 = vmatpush.msra.mxu0 %v1387
    %1402 = vmatpush.msra.mxu0 %v1386
    %1403 = vmatpush.msra.mxu0 %v1385
    %1404 = vmatpush.msra.mxu0 %v1384
    %1405 = vmatpush.msra.mxu0 %v1383
    %1406 = vmatpush.msra.mxu0 %v1382
    %1407 = vmatpush.msra.mxu0 %v1381
    %1408 = vmatpush.msra.mxu0 %v1380
    %1409 = vmatmul.f32.gmra.mxu0 %v1351
    %v1410 = vpop.f32.mrf.mxu0
    %v1411 = vadd.f32 %v1391, %v1410
    %1412 = vmatmul.f32.gmra.mxu0 %v1354
    %v1413 = vpop.f32.mrf.mxu0
    %v1414 = vadd.f32 %v1391, %v1413
    %1415 = vdwg.mxu0
    %v1416 = vld [vmem:[%s6] sm:$0xff]
    %v1417 = vld [vmem:[%s6 + $0x8] sm:$0xff]
    %v1418 = vld [vmem:[%s6 + $0x10] sm:$0xff]
    %v1419 = vld [vmem:[%s6 + $0x18] sm:$0xff]
    %s1420 = scalar_lea.vmem %s6, 32
    %v1421 = vld [vmem:[%s1420] sm:$0xff]
    %v1422 = vld [vmem:[%s1420 + $0x8] sm:$0xff]
    %v1423 = vld [vmem:[%s1420 + $0x10] sm:$0xff]
    %v1424 = vld [vmem:[%s1420 + $0x18] sm:$0xff]
    %1425 = vmatpush.msra.mxu0 0.0
    %1426 = vmatpush.msra.mxu0 0.0
    %1427 = vmatpush.msra.mxu0 0.0
    %1428 = vmatpush.msra.mxu0 0.0
    %1429 = vmatpush.msra.mxu0 0.0
    %1430 = vmatpush.msra.mxu0 0.0
    %1431 = vmatpush.msra.mxu0 0.0
    %1432 = vmatpush.msra.mxu0 0.0
    %1433 = vmatpush.msra.mxu0 0.0
    %1434 = vmatpush.msra.mxu0 0.0
    %1435 = vmatpush.msra.mxu0 0.0
    %1436 = vmatpush.msra.mxu0 0.0
    %1437 = vmatpush.msra.mxu0 %v1419
    %1438 = vmatpush.msra.mxu0 %v1418
    %1439 = vmatpush.msra.mxu0 %v1417
    %1440 = vmatpush.msra.mxu0 %v1416
    %1441 = vmatmul.f32.gmra.mxu0 %v186
    %v1442 = vpop.f32.mrf.mxu0
    %v1443 = vadd.f32 0.0, %v1442
    %1444 = vdwg.mxu0
    %v1445 = vadd.f32 %v1374, %v1443
    %v1446 = vsub.f32 0.0, %v1445
    %v1447 = vmul.f32 %v1446, 1.442695
    %v1448 = vpow.pop %v1447
    %v1449 = vadd.f32 %v1448, 1.0
    %v1450 = vrcp.pop %v1449
    %v1451 = vmul.f32 %v1449, %v1450
    %v1452 = vsub.f32 1.0, %v1451
    %v1453 = vmul.f32 %v1450, %v1452
    %v1454 = vadd.f32 %v1450, %v1453
    %vm1455 = vweird.f32 %v1449
    %vm1456 = vweird.f32 %v1450
    %vm1457 = vmor %vm1455, %vm1456
    %v1458 = vsel %vm1457, %v1450, %v1454
    %v1459 = vand.u32 2147483647, %v1449
    %vm1460 = vcmp.eq.f32.partialorder %v1459, 8.507059e+37
    %v1461 = vand.u32 %v1449, 2147483648
    %v1462 = vor.u32 1.1754944e-38, %v1461
    %v1463 = vsel %vm1460, %v1462, %v1458
    %v1464 = vmul.f32 1.0, %v1463
    %v1465 = vtanh.pop %v1445
    %v1466 = vmul.f32 %v1464, 0.0
    %1468 = vrot.lane.b32.xlu0 %v1465, 64
    %v1469 = vpop.permute.xlu0 %1468
    %v1471 = vmul.f32 %v1464, %v1469
    %1473 = vrot.lane.b32.xlu0 %v1471, 32
    %v1474 = vpop.permute.xlu0 %1473
    %v1476 = vadd.f32 %v1466, %v1474
    %v1477 = vtanh.pop %v1476
    %1479 = vrot.lane.b32.xlu0 %v1477, 64
    %v1480 = vpop.permute.xlu0 %1479
    %v1482 = vmul.f32 %v1464, %v1480
    %1483 = vmatpush.msra.mxu0 0.0
    %1484 = vmatpush.msra.mxu0 0.0
    %1485 = vmatpush.msra.mxu0 0.0
    %1486 = vmatpush.msra.mxu0 0.0
    %1487 = vmatpush.msra.mxu0 0.0
    %1488 = vmatpush.msra.mxu0 0.0
    %1489 = vmatpush.msra.mxu0 0.0
    %1490 = vmatpush.msra.mxu0 0.0
    %1491 = vmatpush.msra.mxu0 0.0
    %1492 = vmatpush.msra.mxu0 0.0
    %1493 = vmatpush.msra.mxu0 0.0
    %1494 = vmatpush.msra.mxu0 0.0
    %1495 = vmatpush.msra.mxu0 %v1424
    %1496 = vmatpush.msra.mxu0 %v1423
    %1497 = vmatpush.msra.mxu0 %v1422
    %1498 = vmatpush.msra.mxu0 %v1421
    %1499 = vmatmul.f32.gmra.mxu0 %v186
    %v1500 = vpop.f32.mrf.mxu0
    %v1501 = vadd.f32 0.0, %v1500
    %1502 = vdwg.mxu0
    %v1504 = vrot.slane %v1501, 2
    %v1506 = vadd.f32 %v1414, %v1504
    %v1507 = vsub.f32 0.0, %v1506
    %v1508 = vmul.f32 %v1507, 1.442695
    %v1509 = vpow.pop %v1508
    %v1510 = vadd.f32 %v1509, 1.0
    %v1511 = vrcp.pop %v1510
    %v1512 = vmul.f32 %v1510, %v1511
    %v1513 = vsub.f32 1.0, %v1512
    %v1514 = vmul.f32 %v1511, %v1513
    %v1515 = vadd.f32 %v1511, %v1514
    %vm1516 = vweird.f32 %v1510
    %vm1517 = vweird.f32 %v1511
    %vm1518 = vmor %vm1516, %vm1517
    %v1519 = vsel %vm1518, %v1511, %v1515
    %v1520 = vand.u32 2147483647, %v1510
    %vm1521 = vcmp.eq.f32.partialorder %v1520, 8.507059e+37
    %v1522 = vand.u32 %v1510, 2147483648
    %v1523 = vor.u32 1.1754944e-38, %v1522
    %v1524 = vsel %vm1521, %v1523, %v1519
    %v1525 = vmul.f32 1.0, %v1524
    %v1526 = vtanh.pop %v1506
    %v1527 = vmul.f32 %v1525, 0.0
    %1529 = vrot.lane.b32.xlu0 %v1526, 64
    %v1530 = vpop.permute.xlu0 %1529
    %v1532 = vmul.f32 %v1525, %v1530
    %1534 = vrot.lane.b32.xlu0 %v1532, 32
    %v1535 = vpop.permute.xlu0 %1534
    %v1537 = vadd.f32 %v1527, %v1535
    %v1538 = vtanh.pop %v1537
    %1540 = vrot.lane.b32.xlu0 %v1538, 64
    %v1541 = vpop.permute.xlu0 %1540
    %v1543 = vmul.f32 %v1525, %v1541
    %1545 = vrot.lane.b32.xlu0 %v1482, 32
    %v1546 = vpop.permute.xlu0 %1545
    %v1547 = vsel %vm113, %v1546, 0
    %1549 = vmatpush.msra.mxu0 0.0
    %1550 = vmatpush.msra.mxu0 0.0
    %1551 = vmatpush.msra.mxu0 0.0
    %1552 = vmatpush.msra.mxu0 0.0
    %1553 = vmatpush.msra.mxu0 0.0
    %1554 = vmatpush.msra.mxu0 0.0
    %1555 = vmatpush.msra.mxu0 0.0
    %1556 = vmatpush.msra.mxu0 0.0
    %1557 = vmatpush.msra.mxu0 0.0
    %1558 = vmatpush.msra.mxu0 0.0
    %1559 = vmatpush.msra.mxu0 0.0
    %1560 = vmatpush.msra.mxu0 0.0
    %1561 = vmatpush.msra.mxu0 %v1419
    %1562 = vmatpush.msra.mxu0 %v1418
    %1563 = vmatpush.msra.mxu0 %v1417
    %1564 = vmatpush.msra.mxu0 %v1416
    %1565 = vmatmul.f32.gmra.mxu0 %v1547
    %v1566 = vpop.f32.mrf.mxu0
    %v1567 = vadd.f32 0.0, %v1566
    %1568 = vdwg.mxu0
    %v1570 = vrot.slane %v1567, 6
    %v1572 = vadd.f32 %v1374, %v1570
    %v1573 = vsub.f32 0.0, %v1572
    %v1574 = vmul.f32 %v1573, 1.442695
    %v1575 = vpow.pop %v1574
    %v1576 = vadd.f32 %v1575, 1.0
    %v1577 = vrcp.pop %v1576
    %v1578 = vmul.f32 %v1576, %v1577
    %v1579 = vsub.f32 1.0, %v1578
    %v1580 = vmul.f32 %v1577, %v1579
    %v1581 = vadd.f32 %v1577, %v1580
    %vm1582 = vweird.f32 %v1576
    %vm1583 = vweird.f32 %v1577
    %vm1584 = vmor %vm1582, %vm1583
    %v1585 = vsel %vm1584, %v1577, %v1581
    %v1586 = vand.u32 2147483647, %v1576
    %vm1587 = vcmp.eq.f32.partialorder %v1586, 8.507059e+37
    %v1588 = vand.u32 %v1576, 2147483648
    %v1589 = vor.u32 1.1754944e-38, %v1588
    %v1590 = vsel %vm1587, %v1589, %v1585
    %v1591 = vmul.f32 1.0, %v1590
    %v1592 = vtanh.pop %v1572
    %v1594 = vrot.slane %v1476, 6
    %v1596 = vmul.f32 %v1591, %v1594
    %1598 = vrot.lane.b32.xlu0 %v1592, 64
    %v1599 = vpop.permute.xlu0 %1598
    %v1601 = vmul.f32 %v1591, %v1599
    %1603 = vrot.lane.b32.xlu0 %v1601, 32
    %v1604 = vpop.permute.xlu0 %1603
    %v1606 = vadd.f32 %v1596, %v1604
    %v1607 = vtanh.pop %v1606
    %1609 = vrot.lane.b32.xlu0 %v1607, 64
    %v1610 = vpop.permute.xlu0 %1609
    %v1612 = vmul.f32 %v1591, %v1610
    %v1614 = vrot.slane %v1543, 6
    %1615 = vrot.lane.b32.xlu0 %v1614, 32
    %v1616 = vpop.permute.xlu0 %1615
    %v1617 = vsel %vm113, %v1616, 0
    %1619 = vmatpush.msra.mxu0 0.0
    %1620 = vmatpush.msra.mxu0 0.0
    %1621 = vmatpush.msra.mxu0 0.0
    %1622 = vmatpush.msra.mxu0 0.0
    %1623 = vmatpush.msra.mxu0 0.0
    %1624 = vmatpush.msra.mxu0 0.0
    %1625 = vmatpush.msra.mxu0 0.0
    %1626 = vmatpush.msra.mxu0 0.0
    %1627 = vmatpush.msra.mxu0 0.0
    %1628 = vmatpush.msra.mxu0 0.0
    %1629 = vmatpush.msra.mxu0 0.0
    %1630 = vmatpush.msra.mxu0 0.0
    %1631 = vmatpush.msra.mxu0 %v1424
    %1632 = vmatpush.msra.mxu0 %v1423
    %1633 = vmatpush.msra.mxu0 %v1422
    %1634 = vmatpush.msra.mxu0 %v1421
    %1635 = vmatmul.f32.gmra.mxu0 %v1617
    %v1636 = vpop.f32.mrf.mxu0
    %v1637 = vadd.f32 0.0, %v1636
    %1638 = vdwg.mxu0
    %v1640 = vrot.slane %v1637, 4
    %v1642 = vadd.f32 %v1414, %v1640
    %v1643 = vsub.f32 0.0, %v1642
    %v1644 = vmul.f32 %v1643, 1.442695
    %v1645 = vpow.pop %v1644
    %v1646 = vadd.f32 %v1645, 1.0
    %v1647 = vrcp.pop %v1646
    %v1648 = vmul.f32 %v1646, %v1647
    %v1649 = vsub.f32 1.0, %v1648
    %v1650 = vmul.f32 %v1647, %v1649
    %v1651 = vadd.f32 %v1647, %v1650
    %vm1652 = vweird.f32 %v1646
    %vm1653 = vweird.f32 %v1647
    %vm1654 = vmor %vm1652, %vm1653
    %v1655 = vsel %vm1654, %v1647, %v1651
    %v1656 = vand.u32 2147483647, %v1646
    %vm1657 = vcmp.eq.f32.partialorder %v1656, 8.507059e+37
    %v1658 = vand.u32 %v1646, 2147483648
    %v1659 = vor.u32 1.1754944e-38, %v1658
    %v1660 = vsel %vm1657, %v1659, %v1655
    %v1661 = vmul.f32 1.0, %v1660
    %v1662 = vtanh.pop %v1642
    %v1664 = vrot.slane %v1537, 2
    %v1666 = vmul.f32 %v1661, %v1664
    %1668 = vrot.lane.b32.xlu0 %v1662, 64
    %v1669 = vpop.permute.xlu0 %1668
    %v1671 = vmul.f32 %v1661, %v1669
    %1673 = vrot.lane.b32.xlu0 %v1671, 32
    %v1674 = vpop.permute.xlu0 %1673
    %v1676 = vadd.f32 %v1666, %v1674
    %v1677 = vtanh.pop %v1676
    %1679 = vrot.lane.b32.xlu0 %v1677, 64
    %v1680 = vpop.permute.xlu0 %1679
    %v1682 = vmul.f32 %v1661, %v1680
    %v1684 = vrot.slane %v1612, 2
    %1685 = vrot.lane.b32.xlu0 %v1684, 32
    %v1686 = vpop.permute.xlu0 %1685
    %v1687 = vsel %vm113, %v1686, 0
    %1689 = vmatpush.msra.mxu0 0.0
    %1690 = vmatpush.msra.mxu0 0.0
    %1691 = vmatpush.msra.mxu0 0.0
    %1692 = vmatpush.msra.mxu0 0.0
    %1693 = vmatpush.msra.mxu0 0.0
    %1694 = vmatpush.msra.mxu0 0.0
    %1695 = vmatpush.msra.mxu0 0.0
    %1696 = vmatpush.msra.mxu0 0.0
    %1697 = vmatpush.msra.mxu0 0.0
    %1698 = vmatpush.msra.mxu0 0.0
    %1699 = vmatpush.msra.mxu0 0.0
    %1700 = vmatpush.msra.mxu0 0.0
    %1701 = vmatpush.msra.mxu0 %v1419
    %1702 = vmatpush.msra.mxu0 %v1418
    %1703 = vmatpush.msra.mxu0 %v1417
    %1704 = vmatpush.msra.mxu0 %v1416
    %1705 = vmatmul.f32.gmra.mxu0 %v1687
    %v1706 = vpop.f32.mrf.mxu0
    %v1707 = vadd.f32 0.0, %v1706
    %1708 = vdwg.mxu0
    %v1710 = vrot.slane %v1707, 4
    %v1712 = vadd.f32 %v1374, %v1710
    %v1713 = vsub.f32 0.0, %v1712
    %v1714 = vmul.f32 %v1713, 1.442695
    %v1715 = vpow.pop %v1714
    %v1716 = vadd.f32 %v1715, 1.0
    %v1717 = vrcp.pop %v1716
    %v1718 = vmul.f32 %v1716, %v1717
    %v1719 = vsub.f32 1.0, %v1718
    %v1720 = vmul.f32 %v1717, %v1719
    %v1721 = vadd.f32 %v1717, %v1720
    %vm1722 = vweird.f32 %v1716
    %vm1723 = vweird.f32 %v1717
    %vm1724 = vmor %vm1722, %vm1723
    %v1725 = vsel %vm1724, %v1717, %v1721
    %v1726 = vand.u32 2147483647, %v1716
    %vm1727 = vcmp.eq.f32.partialorder %v1726, 8.507059e+37
    %v1728 = vand.u32 %v1716, 2147483648
    %v1729 = vor.u32 1.1754944e-38, %v1728
    %v1730 = vsel %vm1727, %v1729, %v1725
    %v1731 = vmul.f32 1.0, %v1730
    %v1732 = vtanh.pop %v1712
    %v1734 = vrot.slane %v1606, 6
    %v1736 = vmul.f32 %v1731, %v1734
    %1738 = vrot.lane.b32.xlu0 %v1732, 64
    %v1739 = vpop.permute.xlu0 %1738
    %v1741 = vmul.f32 %v1731, %v1739
    %1743 = vrot.lane.b32.xlu0 %v1741, 32
    %v1744 = vpop.permute.xlu0 %1743
    %v1746 = vadd.f32 %v1736, %v1744
    %v1747 = vtanh.pop %v1746
    %1749 = vrot.lane.b32.xlu0 %v1747, 64
    %v1750 = vpop.permute.xlu0 %1749
    %v1752 = vmul.f32 %v1731, %v1750
    %v1754 = vrot.slane %v1682, 4
    %1755 = vrot.lane.b32.xlu0 %v1754, 32
    %v1756 = vpop.permute.xlu0 %1755
    %v1757 = vsel %vm113, %v1756, 0
    %1759 = vmatpush.msra.mxu0 0.0
    %1760 = vmatpush.msra.mxu0 0.0
    %1761 = vmatpush.msra.mxu0 0.0
    %1762 = vmatpush.msra.mxu0 0.0
    %1763 = vmatpush.msra.mxu0 0.0
    %1764 = vmatpush.msra.mxu0 0.0
    %1765 = vmatpush.msra.mxu0 0.0
    %1766 = vmatpush.msra.mxu0 0.0
    %1767 = vmatpush.msra.mxu0 0.0
    %1768 = vmatpush.msra.mxu0 0.0
    %1769 = vmatpush.msra.mxu0 0.0
    %1770 = vmatpush.msra.mxu0 0.0
    %1771 = vmatpush.msra.mxu0 %v1424
    %1772 = vmatpush.msra.mxu0 %v1423
    %1773 = vmatpush.msra.mxu0 %v1422
    %1774 = vmatpush.msra.mxu0 %v1421
    %1775 = vmatmul.f32.gmra.mxu0 %v1757
    %v1776 = vpop.f32.mrf.mxu0
    %v1777 = vadd.f32 0.0, %v1776
    %1778 = vdwg.mxu0
    %v1780 = vrot.slane %v1777, 6
    %v1782 = vadd.f32 %v1414, %v1780
    %v1783 = vsub.f32 0.0, %v1782
    %v1784 = vmul.f32 %v1783, 1.442695
    %v1785 = vpow.pop %v1784
    %v1786 = vadd.f32 %v1785, 1.0
    %v1787 = vrcp.pop %v1786
    %v1788 = vmul.f32 %v1786, %v1787
    %v1789 = vsub.f32 1.0, %v1788
    %v1790 = vmul.f32 %v1787, %v1789
    %v1791 = vadd.f32 %v1787, %v1790
    %vm1792 = vweird.f32 %v1786
    %vm1793 = vweird.f32 %v1787
    %vm1794 = vmor %vm1792, %vm1793
    %v1795 = vsel %vm1794, %v1787, %v1791
    %v1796 = vand.u32 2147483647, %v1786
    %vm1797 = vcmp.eq.f32.partialorder %v1796, 8.507059e+37
    %v1798 = vand.u32 %v1786, 2147483648
    %v1799 = vor.u32 1.1754944e-38, %v1798
    %v1800 = vsel %vm1797, %v1799, %v1795
    %v1801 = vmul.f32 1.0, %v1800
    %v1802 = vtanh.pop %v1782
    %v1804 = vrot.slane %v1676, 2
    %v1806 = vmul.f32 %v1801, %v1804
    %1808 = vrot.lane.b32.xlu0 %v1802, 64
    %v1809 = vpop.permute.xlu0 %1808
    %v1811 = vmul.f32 %v1801, %v1809
    %1813 = vrot.lane.b32.xlu0 %v1811, 32
    %v1814 = vpop.permute.xlu0 %1813
    %v1816 = vadd.f32 %v1806, %v1814
    %v1817 = vtanh.pop %v1816
    %1819 = vrot.lane.b32.xlu0 %v1817, 64
    %v1820 = vpop.permute.xlu0 %1819
    %v1822 = vmul.f32 %v1801, %v1820
    %v1824 = vrot.slane %v1752, 4
    %1825 = vrot.lane.b32.xlu0 %v1824, 32
    %v1826 = vpop.permute.xlu0 %1825
    %v1827 = vsel %vm113, %v1826, 0
    %1829 = vmatpush.msra.mxu0 0.0
    %1830 = vmatpush.msra.mxu0 0.0
    %1831 = vmatpush.msra.mxu0 0.0
    %1832 = vmatpush.msra.mxu0 0.0
    %1833 = vmatpush.msra.mxu0 0.0
    %1834 = vmatpush.msra.mxu0 0.0
    %1835 = vmatpush.msra.mxu0 0.0
    %1836 = vmatpush.msra.mxu0 0.0
    %1837 = vmatpush.msra.mxu0 0.0
    %1838 = vmatpush.msra.mxu0 0.0
    %1839 = vmatpush.msra.mxu0 0.0
    %1840 = vmatpush.msra.mxu0 0.0
    %1841 = vmatpush.msra.mxu0 %v1419
    %1842 = vmatpush.msra.mxu0 %v1418
    %1843 = vmatpush.msra.mxu0 %v1417
    %1844 = vmatpush.msra.mxu0 %v1416
    %1845 = vmatmul.f32.gmra.mxu0 %v1827
    %v1846 = vpop.f32.mrf.mxu0
    %v1847 = vadd.f32 0.0, %v1846
    %1848 = vdwg.mxu0
    %v1850 = vrot.slane %v1847, 2
    %v1852 = vadd.f32 %v1374, %v1850
    %v1853 = vsub.f32 0.0, %v1852
    %v1854 = vmul.f32 %v1853, 1.442695
    %v1855 = vpow.pop %v1854
    %v1856 = vadd.f32 %v1855, 1.0
    %v1857 = vrcp.pop %v1856
    %v1858 = vmul.f32 %v1856, %v1857
    %v1859 = vsub.f32 1.0, %v1858
    %v1860 = vmul.f32 %v1857, %v1859
    %v1861 = vadd.f32 %v1857, %v1860
    %vm1862 = vweird.f32 %v1856
    %vm1863 = vweird.f32 %v1857
    %vm1864 = vmor %vm1862, %vm1863
    %v1865 = vsel %vm1864, %v1857, %v1861
    %v1866 = vand.u32 2147483647, %v1856
    %vm1867 = vcmp.eq.f32.partialorder %v1866, 8.507059e+37
    %v1868 = vand.u32 %v1856, 2147483648
    %v1869 = vor.u32 1.1754944e-38, %v1868
    %v1870 = vsel %vm1867, %v1869, %v1865
    %v1871 = vmul.f32 1.0, %v1870
    %v1872 = vtanh.pop %v1852
    %v1874 = vrot.slane %v1746, 6
    %v1876 = vmul.f32 %v1871, %v1874
    %1878 = vrot.lane.b32.xlu0 %v1872, 64
    %v1879 = vpop.permute.xlu0 %1878
    %v1881 = vmul.f32 %v1871, %v1879
    %1883 = vrot.lane.b32.xlu0 %v1881, 32
    %v1884 = vpop.permute.xlu0 %1883
    %v1886 = vadd.f32 %v1876, %v1884
    %v1887 = vtanh.pop %v1886
    %1889 = vrot.lane.b32.xlu0 %v1887, 64
    %v1890 = vpop.permute.xlu0 %1889
    %v1892 = vmul.f32 %v1871, %v1890
    %v1894 = vrot.slane %v1822, 2
    %1895 = vrot.lane.b32.xlu0 %v1894, 32
    %v1896 = vpop.permute.xlu0 %1895
    %v1897 = vsel %vm113, %v1896, 0
    %1899 = vmatpush.msra.mxu0 0.0
    %1900 = vmatpush.msra.mxu0 0.0
    %1901 = vmatpush.msra.mxu0 0.0
    %1902 = vmatpush.msra.mxu0 0.0
    %1903 = vmatpush.msra.mxu0 0.0
    %1904 = vmatpush.msra.mxu0 0.0
    %1905 = vmatpush.msra.mxu0 0.0
    %1906 = vmatpush.msra.mxu0 0.0
    %1907 = vmatpush.msra.mxu0 0.0
    %1908 = vmatpush.msra.mxu0 0.0
    %1909 = vmatpush.msra.mxu0 0.0
    %1910 = vmatpush.msra.mxu0 0.0
    %1911 = vmatpush.msra.mxu0 %v1424
    %1912 = vmatpush.msra.mxu0 %v1423
    %1913 = vmatpush.msra.mxu0 %v1422
    %1914 = vmatpush.msra.mxu0 %v1421
    %1915 = vmatmul.f32.gmra.mxu0 %v1897
    %v1916 = vpop.f32.mrf.mxu0
    %v1917 = vadd.f32 0.0, %v1916
    %1918 = vdwg.mxu0
    %v1919 = vadd.f32 %v1414, %v1917
    %v1920 = vsub.f32 0.0, %v1919
    %v1921 = vmul.f32 %v1920, 1.442695
    %v1922 = vpow.pop %v1921
    %v1923 = vadd.f32 %v1922, 1.0
    %v1924 = vrcp.pop %v1923
    %v1925 = vmul.f32 %v1923, %v1924
    %v1926 = vsub.f32 1.0, %v1925
    %v1927 = vmul.f32 %v1924, %v1926
    %v1928 = vadd.f32 %v1924, %v1927
    %vm1929 = vweird.f32 %v1923
    %vm1930 = vweird.f32 %v1924
    %vm1931 = vmor %vm1929, %vm1930
    %v1932 = vsel %vm1931, %v1924, %v1928
    %v1933 = vand.u32 2147483647, %v1923
    %vm1934 = vcmp.eq.f32.partialorder %v1933, 8.507059e+37
    %v1935 = vand.u32 %v1923, 2147483648
    %v1936 = vor.u32 1.1754944e-38, %v1935
    %v1937 = vsel %vm1934, %v1936, %v1932
    %v1938 = vmul.f32 1.0, %v1937
    %v1939 = vtanh.pop %v1919
    %v1941 = vrot.slane %v1816, 2
    %v1943 = vmul.f32 %v1938, %v1941
    %1945 = vrot.lane.b32.xlu0 %v1939, 64
    %v1946 = vpop.permute.xlu0 %1945
    %v1948 = vmul.f32 %v1938, %v1946
    %1950 = vrot.lane.b32.xlu0 %v1948, 32
    %v1951 = vpop.permute.xlu0 %1950
    %v1953 = vadd.f32 %v1943, %v1951
    %v1954 = vtanh.pop %v1953
    %1956 = vrot.lane.b32.xlu0 %v1954, 64
    %v1957 = vpop.permute.xlu0 %1956
    %v1959 = vmul.f32 %v1938, %v1957
    %v1961 = vrot.slane %v1892, 6
    %1962 = vrot.lane.b32.xlu0 %v1961, 32
    %v1963 = vpop.permute.xlu0 %1962
    %v1964 = vsel %vm113, %v1963, 0
    %1966 = vmatpush.msra.mxu0 0.0
    %1967 = vmatpush.msra.mxu0 0.0
    %1968 = vmatpush.msra.mxu0 0.0
    %1969 = vmatpush.msra.mxu0 0.0
    %1970 = vmatpush.msra.mxu0 0.0
    %1971 = vmatpush.msra.mxu0 0.0
    %1972 = vmatpush.msra.mxu0 0.0
    %1973 = vmatpush.msra.mxu0 0.0
    %1974 = vmatpush.msra.mxu0 0.0
    %1975 = vmatpush.msra.mxu0 0.0
    %1976 = vmatpush.msra.mxu0 0.0
    %1977 = vmatpush.msra.mxu0 0.0
    %1978 = vmatpush.msra.mxu0 %v1419
    %1979 = vmatpush.msra.mxu0 %v1418
    %1980 = vmatpush.msra.mxu0 %v1417
    %1981 = vmatpush.msra.mxu0 %v1416
    %1982 = vmatmul.f32.gmra.mxu0 %v1964
    %v1983 = vpop.f32.mrf.mxu0
    %v1984 = vadd.f32 0.0, %v1983
    %1985 = vdwg.mxu0
    %v1986 = vadd.f32 %v1377, %v1984
    %v1987 = vsub.f32 0.0, %v1986
    %v1988 = vmul.f32 %v1987, 1.442695
    %v1989 = vpow.pop %v1988
    %v1990 = vadd.f32 %v1989, 1.0
    %v1991 = vrcp.pop %v1990
    %v1992 = vmul.f32 %v1990, %v1991
    %v1993 = vsub.f32 1.0, %v1992
    %v1994 = vmul.f32 %v1991, %v1993
    %v1995 = vadd.f32 %v1991, %v1994
    %vm1996 = vweird.f32 %v1990
    %vm1997 = vweird.f32 %v1991
    %vm1998 = vmor %vm1996, %vm1997
    %v1999 = vsel %vm1998, %v1991, %v1995
    %v2000 = vand.u32 2147483647, %v1990
    %vm2001 = vcmp.eq.f32.partialorder %v2000, 8.507059e+37
    %v2002 = vand.u32 %v1990, 2147483648
    %v2003 = vor.u32 1.1754944e-38, %v2002
    %v2004 = vsel %vm2001, %v2003, %v1999
    %v2005 = vmul.f32 1.0, %v2004
    %v2006 = vtanh.pop %v1986
    %v2008 = vrot.slane %v1886, 6
    %v2010 = vmul.f32 %v2005, %v2008
    %2012 = vrot.lane.b32.xlu0 %v2006, 64
    %v2013 = vpop.permute.xlu0 %2012
    %v2015 = vmul.f32 %v2005, %v2013
    %2017 = vrot.lane.b32.xlu0 %v2015, 32
    %v2018 = vpop.permute.xlu0 %2017
    %v2020 = vadd.f32 %v2010, %v2018
    %v2021 = vtanh.pop %v2020
    %2023 = vrot.lane.b32.xlu0 %v2021, 64
    %v2024 = vpop.permute.xlu0 %2023
    %v2026 = vmul.f32 %v2005, %v2024
    %2028 = vrot.lane.b32.xlu0 %v1959, 32
    %v2029 = vpop.permute.xlu0 %2028
    %v2030 = vsel %vm113, %v2029, 0
    %2032 = vmatpush.msra.mxu0 0.0
    %2033 = vmatpush.msra.mxu0 0.0
    %2034 = vmatpush.msra.mxu0 0.0
    %2035 = vmatpush.msra.mxu0 0.0
    %2036 = vmatpush.msra.mxu0 0.0
    %2037 = vmatpush.msra.mxu0 0.0
    %2038 = vmatpush.msra.mxu0 0.0
    %2039 = vmatpush.msra.mxu0 0.0
    %2040 = vmatpush.msra.mxu0 0.0
    %2041 = vmatpush.msra.mxu0 0.0
    %2042 = vmatpush.msra.mxu0 0.0
    %2043 = vmatpush.msra.mxu0 0.0
    %2044 = vmatpush.msra.mxu0 %v1424
    %2045 = vmatpush.msra.mxu0 %v1423
    %2046 = vmatpush.msra.mxu0 %v1422
    %2047 = vmatpush.msra.mxu0 %v1421
    %2048 = vmatmul.f32.gmra.mxu0 %v2030
    %v2049 = vpop.f32.mrf.mxu0
    %v2050 = vadd.f32 0.0, %v2049
    %2051 = vdwg.mxu0
    %v2053 = vrot.slane %v2050, 2
    %v2055 = vadd.f32 %v1411, %v2053
    %v2056 = vsub.f32 0.0, %v2055
    %v2057 = vmul.f32 %v2056, 1.442695
    %v2058 = vpow.pop %v2057
    %v2059 = vadd.f32 %v2058, 1.0
    %v2060 = vrcp.pop %v2059
    %v2061 = vmul.f32 %v2059, %v2060
    %v2062 = vsub.f32 1.0, %v2061
    %v2063 = vmul.f32 %v2060, %v2062
    %v2064 = vadd.f32 %v2060, %v2063
    %vm2065 = vweird.f32 %v2059
    %vm2066 = vweird.f32 %v2060
    %vm2067 = vmor %vm2065, %vm2066
    %v2068 = vsel %vm2067, %v2060, %v2064
    %v2069 = vand.u32 2147483647, %v2059
    %vm2070 = vcmp.eq.f32.partialorder %v2069, 8.507059e+37
    %v2071 = vand.u32 %v2059, 2147483648
    %v2072 = vor.u32 1.1754944e-38, %v2071
    %v2073 = vsel %vm2070, %v2072, %v2068
    %v2074 = vmul.f32 1.0, %v2073
    %v2075 = vtanh.pop %v2055
    %v2077 = vrot.slane %v1953, 2
    %v2079 = vmul.f32 %v2074, %v2077
    %2081 = vrot.lane.b32.xlu0 %v2075, 64
    %v2082 = vpop.permute.xlu0 %2081
    %v2084 = vmul.f32 %v2074, %v2082
    %2086 = vrot.lane.b32.xlu0 %v2084, 32
    %v2087 = vpop.permute.xlu0 %2086
    %v2089 = vadd.f32 %v2079, %v2087
    %v2090 = vtanh.pop %v2089
    %2092 = vrot.lane.b32.xlu0 %v2090, 64
    %v2093 = vpop.permute.xlu0 %2092
    %v2095 = vmul.f32 %v2074, %v2093
    %2097 = vrot.lane.b32.xlu0 %v2026, 32
    %v2098 = vpop.permute.xlu0 %2097
    %v2099 = vsel %vm113, %v2098, 0
    %2101 = vmatpush.msra.mxu0 0.0
    %2102 = vmatpush.msra.mxu0 0.0
    %2103 = vmatpush.msra.mxu0 0.0
    %2104 = vmatpush.msra.mxu0 0.0
    %2105 = vmatpush.msra.mxu0 0.0
    %2106 = vmatpush.msra.mxu0 0.0
    %2107 = vmatpush.msra.mxu0 0.0
    %2108 = vmatpush.msra.mxu0 0.0
    %2109 = vmatpush.msra.mxu0 0.0
    %2110 = vmatpush.msra.mxu0 0.0
    %2111 = vmatpush.msra.mxu0 0.0
    %2112 = vmatpush.msra.mxu0 0.0
    %2113 = vmatpush.msra.mxu0 %v1419
    %2114 = vmatpush.msra.mxu0 %v1418
    %2115 = vmatpush.msra.mxu0 %v1417
    %2116 = vmatpush.msra.mxu0 %v1416
    %2117 = vmatmul.f32.gmra.mxu0 %v2099
    %v2118 = vpop.f32.mrf.mxu0
    %v2119 = vadd.f32 0.0, %v2118
    %2120 = vdwg.mxu0
    %v2122 = vrot.slane %v2119, 6
    %v2124 = vadd.f32 %v1377, %v2122
    %v2125 = vsub.f32 0.0, %v2124
    %v2126 = vmul.f32 %v2125, 1.442695
    %v2127 = vpow.pop %v2126
    %v2128 = vadd.f32 %v2127, 1.0
    %v2129 = vrcp.pop %v2128
    %v2130 = vmul.f32 %v2128, %v2129
    %v2131 = vsub.f32 1.0, %v2130
    %v2132 = vmul.f32 %v2129, %v2131
    %v2133 = vadd.f32 %v2129, %v2132
    %vm2134 = vweird.f32 %v2128
    %vm2135 = vweird.f32 %v2129
    %vm2136 = vmor %vm2134, %vm2135
    %v2137 = vsel %vm2136, %v2129, %v2133
    %v2138 = vand.u32 2147483647, %v2128
    %vm2139 = vcmp.eq.f32.partialorder %v2138, 8.507059e+37
    %v2140 = vand.u32 %v2128, 2147483648
    %v2141 = vor.u32 1.1754944e-38, %v2140
    %v2142 = vsel %vm2139, %v2141, %v2137
    %v2143 = vmul.f32 1.0, %v2142
    %v2144 = vtanh.pop %v2124
    %v2146 = vrot.slane %v2020, 6
    %v2148 = vmul.f32 %v2143, %v2146
    %2150 = vrot.lane.b32.xlu0 %v2144, 64
    %v2151 = vpop.permute.xlu0 %2150
    %v2153 = vmul.f32 %v2143, %v2151
    %2155 = vrot.lane.b32.xlu0 %v2153, 32
    %v2156 = vpop.permute.xlu0 %2155
    %v2158 = vadd.f32 %v2148, %v2156
    %v2159 = vtanh.pop %v2158
    %2161 = vrot.lane.b32.xlu0 %v2159, 64
    %v2162 = vpop.permute.xlu0 %2161
    %v2164 = vmul.f32 %v2143, %v2162
    %v2166 = vrot.slane %v2095, 6
    %2167 = vrot.lane.b32.xlu0 %v2166, 32
    %v2168 = vpop.permute.xlu0 %2167
    %v2169 = vsel %vm113, %v2168, 0
    %2171 = vmatpush.msra.mxu0 0.0
    %2172 = vmatpush.msra.mxu0 0.0
    %2173 = vmatpush.msra.mxu0 0.0
    %2174 = vmatpush.msra.mxu0 0.0
    %2175 = vmatpush.msra.mxu0 0.0
    %2176 = vmatpush.msra.mxu0 0.0
    %2177 = vmatpush.msra.mxu0 0.0
    %2178 = vmatpush.msra.mxu0 0.0
    %2179 = vmatpush.msra.mxu0 0.0
    %2180 = vmatpush.msra.mxu0 0.0
    %2181 = vmatpush.msra.mxu0 0.0
    %2182 = vmatpush.msra.mxu0 0.0
    %2183 = vmatpush.msra.mxu0 %v1424
    %2184 = vmatpush.msra.mxu0 %v1423
    %2185 = vmatpush.msra.mxu0 %v1422
    %2186 = vmatpush.msra.mxu0 %v1421
    %2187 = vmatmul.f32.gmra.mxu0 %v2169
    %v2188 = vpop.f32.mrf.mxu0
    %v2189 = vadd.f32 0.0, %v2188
    %2190 = vdwg.mxu0
    %v2192 = vrot.slane %v2189, 4
    %v2194 = vadd.f32 %v1411, %v2192
    %v2195 = vsub.f32 0.0, %v2194
    %v2196 = vmul.f32 %v2195, 1.442695
    %v2197 = vpow.pop %v2196
    %v2198 = vadd.f32 %v2197, 1.0
    %v2199 = vrcp.pop %v2198
    %v2200 = vmul.f32 %v2198, %v2199
    %v2201 = vsub.f32 1.0, %v2200
    %v2202 = vmul.f32 %v2199, %v2201
    %v2203 = vadd.f32 %v2199, %v2202
    %vm2204 = vweird.f32 %v2198
    %vm2205 = vweird.f32 %v2199
    %vm2206 = vmor %vm2204, %vm2205
    %v2207 = vsel %vm2206, %v2199, %v2203
    %v2208 = vand.u32 2147483647, %v2198
    %vm2209 = vcmp.eq.f32.partialorder %v2208, 8.507059e+37
    %v2210 = vand.u32 %v2198, 2147483648
    %v2211 = vor.u32 1.1754944e-38, %v2210
    %v2212 = vsel %vm2209, %v2211, %v2207
    %v2213 = vmul.f32 1.0, %v2212
    %v2214 = vtanh.pop %v2194
    %v2216 = vrot.slane %v2089, 2
    %v2218 = vmul.f32 %v2213, %v2216
    %2220 = vrot.lane.b32.xlu0 %v2214, 64
    %v2221 = vpop.permute.xlu0 %2220
    %v2223 = vmul.f32 %v2213, %v2221
    %2225 = vrot.lane.b32.xlu0 %v2223, 32
    %v2226 = vpop.permute.xlu0 %2225
    %v2228 = vadd.f32 %v2218, %v2226
    %v2229 = vtanh.pop %v2228
    %2231 = vrot.lane.b32.xlu0 %v2229, 64
    %v2232 = vpop.permute.xlu0 %2231
    %v2234 = vmul.f32 %v2213, %v2232
    %v2236 = vrot.slane %v2164, 2
    %2237 = vrot.lane.b32.xlu0 %v2236, 32
    %v2238 = vpop.permute.xlu0 %2237
    %v2239 = vsel %vm113, %v2238, 0
    %2241 = vmatpush.msra.mxu0 0.0
    %2242 = vmatpush.msra.mxu0 0.0
    %2243 = vmatpush.msra.mxu0 0.0
    %2244 = vmatpush.msra.mxu0 0.0
    %2245 = vmatpush.msra.mxu0 0.0
    %2246 = vmatpush.msra.mxu0 0.0
    %2247 = vmatpush.msra.mxu0 0.0
    %2248 = vmatpush.msra.mxu0 0.0
    %2249 = vmatpush.msra.mxu0 0.0
    %2250 = vmatpush.msra.mxu0 0.0
    %2251 = vmatpush.msra.mxu0 0.0
    %2252 = vmatpush.msra.mxu0 0.0
    %2253 = vmatpush.msra.mxu0 %v1419
    %2254 = vmatpush.msra.mxu0 %v1418
    %2255 = vmatpush.msra.mxu0 %v1417
    %2256 = vmatpush.msra.mxu0 %v1416
    %2257 = vmatmul.f32.gmra.mxu0 %v2239
    %v2258 = vpop.f32.mrf.mxu0
    %v2259 = vadd.f32 0.0, %v2258
    %2260 = vdwg.mxu0
    %v2262 = vrot.slane %v2259, 4
    %v2264 = vadd.f32 %v1377, %v2262
    %v2265 = vsub.f32 0.0, %v2264
    %v2266 = vmul.f32 %v2265, 1.442695
    %v2267 = vpow.pop %v2266
    %v2268 = vadd.f32 %v2267, 1.0
    %v2269 = vrcp.pop %v2268
    %v2270 = vmul.f32 %v2268, %v2269
    %v2271 = vsub.f32 1.0, %v2270
    %v2272 = vmul.f32 %v2269, %v2271
    %v2273 = vadd.f32 %v2269, %v2272
    %vm2274 = vweird.f32 %v2268
    %vm2275 = vweird.f32 %v2269
    %vm2276 = vmor %vm2274, %vm2275
    %v2277 = vsel %vm2276, %v2269, %v2273
    %v2278 = vand.u32 2147483647, %v2268
    %vm2279 = vcmp.eq.f32.partialorder %v2278, 8.507059e+37
    %v2280 = vand.u32 %v2268, 2147483648
    %v2281 = vor.u32 1.1754944e-38, %v2280
    %v2282 = vsel %vm2279, %v2281, %v2277
    %v2283 = vmul.f32 1.0, %v2282
    %v2284 = vtanh.pop %v2264
    %v2286 = vrot.slane %v2158, 6
    %v2288 = vmul.f32 %v2283, %v2286
    %2290 = vrot.lane.b32.xlu0 %v2284, 64
    %v2291 = vpop.permute.xlu0 %2290
    %v2293 = vmul.f32 %v2283, %v2291
    %2295 = vrot.lane.b32.xlu0 %v2293, 32
    %v2296 = vpop.permute.xlu0 %2295
    %v2298 = vadd.f32 %v2288, %v2296
    %v2299 = vtanh.pop %v2298
    %2301 = vrot.lane.b32.xlu0 %v2299, 64
    %v2302 = vpop.permute.xlu0 %2301
    %v2304 = vmul.f32 %v2283, %v2302
    %v2306 = vrot.slane %v2234, 4
    %2307 = vrot.lane.b32.xlu0 %v2306, 32
    %v2308 = vpop.permute.xlu0 %2307
    %v2309 = vsel %vm113, %v2308, 0
    %2311 = vmatpush.msra.mxu0 0.0
    %2312 = vmatpush.msra.mxu0 0.0
    %2313 = vmatpush.msra.mxu0 0.0
    %2314 = vmatpush.msra.mxu0 0.0
    %2315 = vmatpush.msra.mxu0 0.0
    %2316 = vmatpush.msra.mxu0 0.0
    %2317 = vmatpush.msra.mxu0 0.0
    %2318 = vmatpush.msra.mxu0 0.0
    %2319 = vmatpush.msra.mxu0 0.0
    %2320 = vmatpush.msra.mxu0 0.0
    %2321 = vmatpush.msra.mxu0 0.0
    %2322 = vmatpush.msra.mxu0 0.0
    %2323 = vmatpush.msra.mxu0 %v1424
    %2324 = vmatpush.msra.mxu0 %v1423
    %2325 = vmatpush.msra.mxu0 %v1422
    %2326 = vmatpush.msra.mxu0 %v1421
    %2327 = vmatmul.f32.gmra.mxu0 %v2309
    %v2328 = vpop.f32.mrf.mxu0
    %v2329 = vadd.f32 0.0, %v2328
    %2330 = vdwg.mxu0
    %v2332 = vrot.slane %v2329, 6
    %v2334 = vadd.f32 %v1411, %v2332
    %v2335 = vsub.f32 0.0, %v2334
    %v2336 = vmul.f32 %v2335, 1.442695
    %v2337 = vpow.pop %v2336
    %v2338 = vadd.f32 %v2337, 1.0
    %v2339 = vrcp.pop %v2338
    %v2340 = vmul.f32 %v2338, %v2339
    %v2341 = vsub.f32 1.0, %v2340
    %v2342 = vmul.f32 %v2339, %v2341
    %v2343 = vadd.f32 %v2339, %v2342
    %vm2344 = vweird.f32 %v2338
    %vm2345 = vweird.f32 %v2339
    %vm2346 = vmor %vm2344, %vm2345
    %v2347 = vsel %vm2346, %v2339, %v2343
    %v2348 = vand.u32 2147483647, %v2338
    %vm2349 = vcmp.eq.f32.partialorder %v2348, 8.507059e+37
    %v2350 = vand.u32 %v2338, 2147483648
    %v2351 = vor.u32 1.1754944e-38, %v2350
    %v2352 = vsel %vm2349, %v2351, %v2347
    %v2353 = vmul.f32 1.0, %v2352
    %v2354 = vtanh.pop %v2334
    %v2356 = vrot.slane %v2228, 2
    %v2358 = vmul.f32 %v2353, %v2356
    %2360 = vrot.lane.b32.xlu0 %v2354, 64
    %v2361 = vpop.permute.xlu0 %2360
    %v2363 = vmul.f32 %v2353, %v2361
    %2365 = vrot.lane.b32.xlu0 %v2363, 32
    %v2366 = vpop.permute.xlu0 %2365
    %v2368 = vadd.f32 %v2358, %v2366
    %v2369 = vtanh.pop %v2368
    %2371 = vrot.lane.b32.xlu0 %v2369, 64
    %v2372 = vpop.permute.xlu0 %2371
    %v2374 = vmul.f32 %v2353, %v2372
    %v2376 = vrot.slane %v2304, 4
    %2377 = vrot.lane.b32.xlu0 %v2376, 32
    %v2378 = vpop.permute.xlu0 %2377
    %v2379 = vsel %vm113, %v2378, 0
    %2381 = vmatpush.msra.mxu0 0.0
    %2382 = vmatpush.msra.mxu0 0.0
    %2383 = vmatpush.msra.mxu0 0.0
    %2384 = vmatpush.msra.mxu0 0.0
    %2385 = vmatpush.msra.mxu0 0.0
    %2386 = vmatpush.msra.mxu0 0.0
    %2387 = vmatpush.msra.mxu0 0.0
    %2388 = vmatpush.msra.mxu0 0.0
    %2389 = vmatpush.msra.mxu0 0.0
    %2390 = vmatpush.msra.mxu0 0.0
    %2391 = vmatpush.msra.mxu0 0.0
    %2392 = vmatpush.msra.mxu0 0.0
    %2393 = vmatpush.msra.mxu0 %v1419
    %2394 = vmatpush.msra.mxu0 %v1418
    %2395 = vmatpush.msra.mxu0 %v1417
    %2396 = vmatpush.msra.mxu0 %v1416
    %2397 = vmatmul.f32.gmra.mxu0 %v2379
    %v2398 = vpop.f32.mrf.mxu0
    %v2399 = vadd.f32 0.0, %v2398
    %2400 = vdwg.mxu0
    %v2402 = vrot.slane %v2399, 2
    %v2404 = vadd.f32 %v1377, %v2402
    %v2405 = vsub.f32 0.0, %v2404
    %v2406 = vmul.f32 %v2405, 1.442695
    %v2407 = vpow.pop %v2406
    %v2408 = vadd.f32 %v2407, 1.0
    %v2409 = vrcp.pop %v2408
    %v2410 = vmul.f32 %v2408, %v2409
    %v2411 = vsub.f32 1.0, %v2410
    %v2412 = vmul.f32 %v2409, %v2411
    %v2413 = vadd.f32 %v2409, %v2412
    %vm2414 = vweird.f32 %v2408
    %vm2415 = vweird.f32 %v2409
    %vm2416 = vmor %vm2414, %vm2415
    %v2417 = vsel %vm2416, %v2409, %v2413
    %v2418 = vand.u32 2147483647, %v2408
    %vm2419 = vcmp.eq.f32.partialorder %v2418, 8.507059e+37
    %v2420 = vand.u32 %v2408, 2147483648
    %v2421 = vor.u32 1.1754944e-38, %v2420
    %v2422 = vsel %vm2419, %v2421, %v2417
    %v2423 = vmul.f32 1.0, %v2422
    %v2424 = vtanh.pop %v2404
    %v2426 = vrot.slane %v2298, 6
    %v2428 = vmul.f32 %v2423, %v2426
    %2430 = vrot.lane.b32.xlu0 %v2424, 64
    %v2431 = vpop.permute.xlu0 %2430
    %v2433 = vmul.f32 %v2423, %v2431
    %2435 = vrot.lane.b32.xlu0 %v2433, 32
    %v2436 = vpop.permute.xlu0 %2435
    %v2438 = vadd.f32 %v2428, %v2436
    %v2439 = vtanh.pop %v2438
    %2441 = vrot.lane.b32.xlu0 %v2439, 64
    %v2442 = vpop.permute.xlu0 %2441
    %v2444 = vmul.f32 %v2423, %v2442
    %v2446 = vrot.slane %v2374, 2
    %2447 = vrot.lane.b32.xlu0 %v2446, 32
    %v2448 = vpop.permute.xlu0 %2447
    %v2449 = vsel %vm113, %v2448, 0
    %2451 = vmatpush.msra.mxu0 0.0
    %2452 = vmatpush.msra.mxu0 0.0
    %2453 = vmatpush.msra.mxu0 0.0
    %2454 = vmatpush.msra.mxu0 0.0
    %2455 = vmatpush.msra.mxu0 0.0
    %2456 = vmatpush.msra.mxu0 0.0
    %2457 = vmatpush.msra.mxu0 0.0
    %2458 = vmatpush.msra.mxu0 0.0
    %2459 = vmatpush.msra.mxu0 0.0
    %2460 = vmatpush.msra.mxu0 0.0
    %2461 = vmatpush.msra.mxu0 0.0
    %2462 = vmatpush.msra.mxu0 0.0
    %2463 = vmatpush.msra.mxu0 %v1424
    %2464 = vmatpush.msra.mxu0 %v1423
    %2465 = vmatpush.msra.mxu0 %v1422
    %2466 = vmatpush.msra.mxu0 %v1421
    %2467 = vmatmul.f32.gmra.mxu0 %v2449
    %v2468 = vpop.f32.mrf.mxu0
    %v2469 = vadd.f32 0.0, %v2468
    %2470 = vdwg.mxu0
    %v2471 = vadd.f32 %v1411, %v2469
    %v2472 = vsub.f32 0.0, %v2471
    %v2473 = vmul.f32 %v2472, 1.442695
    %v2474 = vpow.pop %v2473
    %v2475 = vadd.f32 %v2474, 1.0
    %v2476 = vrcp.pop %v2475
    %v2477 = vmul.f32 %v2475, %v2476
    %v2478 = vsub.f32 1.0, %v2477
    %v2479 = vmul.f32 %v2476, %v2478
    %v2480 = vadd.f32 %v2476, %v2479
    %vm2481 = vweird.f32 %v2475
    %vm2482 = vweird.f32 %v2476
    %vm2483 = vmor %vm2481, %vm2482
    %v2484 = vsel %vm2483, %v2476, %v2480
    %v2485 = vand.u32 2147483647, %v2475
    %vm2486 = vcmp.eq.f32.partialorder %v2485, 8.507059e+37
    %v2487 = vand.u32 %v2475, 2147483648
    %v2488 = vor.u32 1.1754944e-38, %v2487
    %v2489 = vsel %vm2486, %v2488, %v2484
    %v2490 = vmul.f32 1.0, %v2489
    %v2491 = vtanh.pop %v2471
    %v2493 = vrot.slane %v2368, 2
    %v2495 = vmul.f32 %v2490, %v2493
    %2497 = vrot.lane.b32.xlu0 %v2491, 64
    %v2498 = vpop.permute.xlu0 %2497
    %v2500 = vmul.f32 %v2490, %v2498
    %2502 = vrot.lane.b32.xlu0 %v2500, 32
    %v2503 = vpop.permute.xlu0 %2502
    %v2505 = vadd.f32 %v2495, %v2503
    %v2506 = vtanh.pop %v2505
    %2508 = vrot.lane.b32.xlu0 %v2506, 64
    %v2509 = vpop.permute.xlu0 %2508
    %v2511 = vmul.f32 %v2490, %v2509
    %2514 = vrot.lane.b32.xlu0 %v2511, 64
    %v2515 = vpop.permute.xlu0 %2514
    %v2517 = vsel %vm113, %v1546, %v2515
    %2518 = vrot.lane.b32.xlu0 %v1612, 32
    %v2519 = vpop.permute.xlu0 %2518
    %2521 = vrot.lane.b32.xlu0 %v2374, 64
    %v2522 = vpop.permute.xlu0 %2521
    %v2524 = vsel %vm113, %v2519, %v2522
    %2525 = vrot.lane.b32.xlu0 %v1752, 32
    %v2526 = vpop.permute.xlu0 %2525
    %2528 = vrot.lane.b32.xlu0 %v2234, 64
    %v2529 = vpop.permute.xlu0 %2528
    %v2531 = vsel %vm113, %v2526, %v2529
    %2532 = vrot.lane.b32.xlu0 %v1892, 32
    %v2533 = vpop.permute.xlu0 %2532
    %2535 = vrot.lane.b32.xlu0 %v2095, 64
    %v2536 = vpop.permute.xlu0 %2535
    %v2538 = vsel %vm113, %v2533, %v2536
    %2540 = vrot.lane.b32.xlu0 %v1959, 64
    %v2541 = vpop.permute.xlu0 %2540
    %v2543 = vsel %vm113, %v2098, %v2541
    %2544 = vrot.lane.b32.xlu0 %v2164, 32
    %v2545 = vpop.permute.xlu0 %2544
    %2547 = vrot.lane.b32.xlu0 %v1822, 64
    %v2548 = vpop.permute.xlu0 %2547
    %v2550 = vsel %vm113, %v2545, %v2548
    %2551 = vrot.lane.b32.xlu0 %v2304, 32
    %v2552 = vpop.permute.xlu0 %2551
    %2554 = vrot.lane.b32.xlu0 %v1682, 64
    %v2555 = vpop.permute.xlu0 %2554
    %v2557 = vsel %vm113, %v2552, %v2555
    %2559 = vrot.lane.b32.xlu0 %v2444, 32
    %v2560 = vpop.permute.xlu0 %2559
    %2562 = vrot.lane.b32.xlu0 %v1543, 64
    %v2563 = vpop.permute.xlu0 %2562
    %v2565 = vsel %vm113, %v2560, %v2563
    %v2567 = vrot.slane %v2524, 2
    %2568 = vrot.lane.b32.xlu0 %v2567, 64
    %v2569 = vpop.permute.xlu0 %2568
    %v2572 = vrot.slane %v2531, 4
    %v2575 = vrot.slane %v2538, 6
    %2576 = vrot.lane.b32.xlu0 %v2575, 64
    %v2577 = vpop.permute.xlu0 %2576
    %v2580 = vrot.slane %v2550, 2
    %2581 = vrot.lane.b32.xlu0 %v2580, 64
    %v2582 = vpop.permute.xlu0 %2581
    %v2585 = vrot.slane %v2557, 4
    %v2588 = vrot.slane %v2565, 6
    %2589 = vrot.lane.b32.xlu0 %v2588, 64
    %v2590 = vpop.permute.xlu0 %2589
    %v2592 = vsel %vm1349, %v2517, %v2569
    %v2593 = vsel %vm1349, %v2572, %v2577
    %v2594 = vsel %vm1349, %v2543, %v2582
    %v2595 = vsel %vm1349, %v2585, %v2590
    %v2596 = vld [vmem:[%s8] sm:$0xff]
    %v2597 = vld [vmem:[%s8 + $0x8] sm:$0xff]
    %v2598 = vld [vmem:[%s8 + $0x10] sm:$0xff]
    %v2599 = vld [vmem:[%s8 + $0x18] sm:$0xff]
    %v2600 = vld [vmem:[%s8 + $0x20] sm:$0xff]
    %v2601 = vld [vmem:[%s8 + $0x28] sm:$0xff]
    %v2602 = vld [vmem:[%s8 + $0x30] sm:$0xff]
    %v2603 = vld [vmem:[%s8 + $0x38] sm:$0xff]
    %v2604 = vld [vmem:[%s8 + $0x40] sm:$0xff]
    %v2605 = vld [vmem:[%s8 + $0x48] sm:$0xff]
    %v2606 = vld [vmem:[%s8 + $0x50] sm:$0xff]
    %v2607 = vld [vmem:[%s8 + $0x58] sm:$0xff]
    %v2608 = vld [vmem:[%s8 + $0x60] sm:$0xff]
    %v2609 = vld [vmem:[%s8 + $0x68] sm:$0xff]
    %v2610 = vld [vmem:[%s8 + $0x70] sm:$0xff]
    %v2611 = vld [vmem:[%s8 + $0x78] sm:$0xff]
    %v2612 = vld [vmem:[%s8 + $0x80] sm:$0xff]
    %v2613 = vld [vmem:[%s8 + $0x88] sm:$0xff]
    %v2614 = vld [vmem:[%s8 + $0x90] sm:$0xff]
    %v2615 = vld [vmem:[%s8 + $0x98] sm:$0xff]
    %v2616 = vld [vmem:[%s8 + $0xa0] sm:$0xff]
    %v2617 = vld [vmem:[%s8 + $0xa8] sm:$0xff]
    %v2618 = vld [vmem:[%s8 + $0xb0] sm:$0xff]
    %v2619 = vld [vmem:[%s8 + $0xb8] sm:$0xff]
    %v2620 = vld [vmem:[%s8 + $0xc0] sm:$0xff]
    %v2621 = vld [vmem:[%s8 + $0xc8] sm:$0xff]
    %v2622 = vld [vmem:[%s8 + $0xd0] sm:$0xff]
    %v2623 = vld [vmem:[%s8 + $0xd8] sm:$0xff]
    %v2624 = vld [vmem:[%s8 + $0xe0] sm:$0xff]
    %v2625 = vld [vmem:[%s8 + $0xe8] sm:$0xff]
    %v2626 = vld [vmem:[%s8 + $0xf0] sm:$0xff]
    %v2627 = vld [vmem:[%s8 + $0xf8] sm:$0xff]
    %v2628 = vld [vmem:[%s8 + $0x100] sm:$0xff]
    %v2629 = vld [vmem:[%s8 + $0x108] sm:$0xff]
    %v2630 = vld [vmem:[%s8 + $0x110] sm:$0xff]
    %v2631 = vld [vmem:[%s8 + $0x118] sm:$0xff]
    %v2632 = vld [vmem:[%s8 + $0x120] sm:$0xff]
    %v2633 = vld [vmem:[%s8 + $0x128] sm:$0xff]
    %v2634 = vld [vmem:[%s8 + $0x130] sm:$0xff]
    %v2635 = vld [vmem:[%s8 + $0x138] sm:$0xff]
    %v2636 = vld [vmem:[%s8 + $0x140] sm:$0xff]
    %v2637 = vld [vmem:[%s8 + $0x148] sm:$0xff]
    %v2638 = vld [vmem:[%s8 + $0x150] sm:$0xff]
    %v2639 = vld [vmem:[%s8 + $0x158] sm:$0xff]
    %v2640 = vld [vmem:[%s8 + $0x160] sm:$0xff]
    %v2641 = vld [vmem:[%s8 + $0x168] sm:$0xff]
    %v2642 = vld [vmem:[%s8 + $0x170] sm:$0xff]
    %v2643 = vld [vmem:[%s8 + $0x178] sm:$0xff]
    %v2644 = vld [vmem:[%s8 + $0x180] sm:$0xff]
    %v2645 = vld [vmem:[%s8 + $0x188] sm:$0xff]
    %v2646 = vld [vmem:[%s8 + $0x190] sm:$0xff]
    %v2647 = vld [vmem:[%s8 + $0x198] sm:$0xff]
    %v2648 = vld [vmem:[%s8 + $0x1a0] sm:$0xff]
    %v2649 = vld [vmem:[%s8 + $0x1a8] sm:$0xff]
    %v2650 = vld [vmem:[%s8 + $0x1b0] sm:$0xff]
    %v2651 = vld [vmem:[%s8 + $0x1b8] sm:$0xff]
    %v2652 = vld [vmem:[%s8 + $0x1c0] sm:$0xff]
    %v2653 = vld [vmem:[%s8 + $0x1c8] sm:$0xff]
    %v2654 = vld [vmem:[%s8 + $0x1d0] sm:$0xff]
    %v2655 = vld [vmem:[%s8 + $0x1d8] sm:$0xff]
    %v2656 = vld [vmem:[%s8 + $0x1e0] sm:$0xff]
    %v2657 = vld [vmem:[%s8 + $0x1e8] sm:$0xff]
    %v2658 = vld [vmem:[%s8 + $0x1f0] sm:$0xff]
    %v2659 = vld [vmem:[%s8 + $0x1f8] sm:$0xff]
    %v2660 = vld [vmem:[%s9] sm:$0x1]
    %v2662 = vperm.slane %v2660, 0
    %2664 = vmatpush.msra.mxu0 %v2611
    %2665 = vmatpush.msra.mxu0 %v2610
    %2666 = vmatpush.msra.mxu0 %v2609
    %2667 = vmatpush.msra.mxu0 %v2608
    %2668 = vmatpush.msra.mxu0 %v2607
    %2669 = vmatpush.msra.mxu0 %v2606
    %2670 = vmatpush.msra.mxu0 %v2605
    %2671 = vmatpush.msra.mxu0 %v2604
    %2672 = vmatpush.msra.mxu0 %v2603
    %2673 = vmatpush.msra.mxu0 %v2602
    %2674 = vmatpush.msra.mxu0 %v2601
    %2675 = vmatpush.msra.mxu0 %v2600
    %2676 = vmatpush.msra.mxu0 %v2599
    %2677 = vmatpush.msra.mxu0 %v2598
    %2678 = vmatpush.msra.mxu0 %v2597
    %2679 = vmatpush.msra.mxu0 %v2596
    %2680 = vmatmul.f32.gmra.mxu0 %v2592
    %v2681 = vpop.f32.mrf.mxu0
    %v2682 = vadd.f32 %v2662, %v2681
    %2683 = vdwg.mxu0
    %2684 = vmatpush.msra.mxu0 %v2627
    %2685 = vmatpush.msra.mxu0 %v2626
    %2686 = vmatpush.msra.mxu0 %v2625
    %2687 = vmatpush.msra.mxu0 %v2624
    %2688 = vmatpush.msra.mxu0 %v2623
    %2689 = vmatpush.msra.mxu0 %v2622
    %2690 = vmatpush.msra.mxu0 %v2621
    %2691 = vmatpush.msra.mxu0 %v2620
    %2692 = vmatpush.msra.mxu0 %v2619
    %2693 = vmatpush.msra.mxu0 %v2618
    %2694 = vmatpush.msra.mxu0 %v2617
    %2695 = vmatpush.msra.mxu0 %v2616
    %2696 = vmatpush.msra.mxu0 %v2615
    %2697 = vmatpush.msra.mxu0 %v2614
    %2698 = vmatpush.msra.mxu0 %v2613
    %2699 = vmatpush.msra.mxu0 %v2612
    %2700 = vmatmul.f32.gmra.mxu0 %v2593
    %v2701 = vpop.f32.mrf.mxu0
    %v2702 = vadd.f32 %v2682, %v2701
    %2703 = vdwg.mxu0
    %2704 = vmatpush.msra.mxu0 %v2643
    %2705 = vmatpush.msra.mxu0 %v2642
    %2706 = vmatpush.msra.mxu0 %v2641
    %2707 = vmatpush.msra.mxu0 %v2640
    %2708 = vmatpush.msra.mxu0 %v2639
    %2709 = vmatpush.msra.mxu0 %v2638
    %2710 = vmatpush.msra.mxu0 %v2637
    %2711 = vmatpush.msra.mxu0 %v2636
    %2712 = vmatpush.msra.mxu0 %v2635
    %2713 = vmatpush.msra.mxu0 %v2634
    %2714 = vmatpush.msra.mxu0 %v2633
    %2715 = vmatpush.msra.mxu0 %v2632
    %2716 = vmatpush.msra.mxu0 %v2631
    %2717 = vmatpush.msra.mxu0 %v2630
    %2718 = vmatpush.msra.mxu0 %v2629
    %2719 = vmatpush.msra.mxu0 %v2628
    %2720 = vmatmul.f32.gmra.mxu0 %v2594
    %v2721 = vpop.f32.mrf.mxu0
    %v2722 = vadd.f32 %v2702, %v2721
    %2723 = vdwg.mxu0
    %2724 = vmatpush.msra.mxu0 %v2659
    %2725 = vmatpush.msra.mxu0 %v2658
    %2726 = vmatpush.msra.mxu0 %v2657
    %2727 = vmatpush.msra.mxu0 %v2656
    %2728 = vmatpush.msra.mxu0 %v2655
    %2729 = vmatpush.msra.mxu0 %v2654
    %2730 = vmatpush.msra.mxu0 %v2653
    %2731 = vmatpush.msra.mxu0 %v2652
    %2732 = vmatpush.msra.mxu0 %v2651
    %2733 = vmatpush.msra.mxu0 %v2650
    %2734 = vmatpush.msra.mxu0 %v2649
    %2735 = vmatpush.msra.mxu0 %v2648
    %2736 = vmatpush.msra.mxu0 %v2647
    %2737 = vmatpush.msra.mxu0 %v2646
    %2738 = vmatpush.msra.mxu0 %v2645
    %2739 = vmatpush.msra.mxu0 %v2644
    %2740 = vmatmul.f32.gmra.mxu0 %v2595
    %v2741 = vpop.f32.mrf.mxu0
    %v2742 = vadd.f32 %v2722, %v2741
    %2743 = vdwg.mxu0
    %v2744 = vmax.f32 %v2742, 0.0
    %v2745 = vld [vmem:[%s10] sm:$0xff]
    %v2746 = vld [vmem:[%s10 + $0x8] sm:$0xff]
    %v2747 = vld [vmem:[%s10 + $0x10] sm:$0xff]
    %v2748 = vld [vmem:[%s10 + $0x18] sm:$0xff]
    %v2749 = vld [vmem:[%s11] sm:$0x1]
    %v2751 = vperm.slane %v2749, 0
    %v2754 = vsel %vm113, %v2744, 0
    %2756 = vmatpush.msra.mxu0 0.0
    %2757 = vmatpush.msra.mxu0 0.0
    %2758 = vmatpush.msra.mxu0 0.0
    %2759 = vmatpush.msra.mxu0 0.0
    %2760 = vmatpush.msra.mxu0 0.0
    %2761 = vmatpush.msra.mxu0 0.0
    %2762 = vmatpush.msra.mxu0 0.0
    %2763 = vmatpush.msra.mxu0 0.0
    %2764 = vmatpush.msra.mxu0 0.0
    %2765 = vmatpush.msra.mxu0 0.0
    %2766 = vmatpush.msra.mxu0 0.0
    %2767 = vmatpush.msra.mxu0 0.0
    %2768 = vmatpush.msra.mxu0 %v2748
    %2769 = vmatpush.msra.mxu0 %v2747
    %2770 = vmatpush.msra.mxu0 %v2746
    %2771 = vmatpush.msra.mxu0 %v2745
    %2772 = vmatmul.f32.gmra.mxu0 %v2754
    %v2773 = vpop.f32.mrf.mxu0
    %v2774 = vadd.f32 %v2751, %v2773
    %2775 = vdwg.mxu0
    %v2776 = vmax.f32 %v2774, 0.0
    %v2777 = vld [vmem:[%s12] sm:$0xff]
    %v2778 = vld [vmem:[%s12 + $0x8] sm:$0xff]
    %v2779 = vld [vmem:[%s12 + $0x10] sm:$0xff]
    %v2780 = vld [vmem:[%s12 + $0x18] sm:$0xff]
    %v2781 = vld [vmem:[%s13] sm:$0x1]
    %v2783 = vperm.slane %v2781, 0
    %v2786 = vsel %vm113, %v2776, 0
    %2788 = vmatpush.msra.mxu0 0.0
    %2789 = vmatpush.msra.mxu0 0.0
    %2790 = vmatpush.msra.mxu0 0.0
    %2791 = vmatpush.msra.mxu0 0.0
    %2792 = vmatpush.msra.mxu0 0.0
    %2793 = vmatpush.msra.mxu0 0.0
    %2794 = vmatpush.msra.mxu0 0.0
    %2795 = vmatpush.msra.mxu0 0.0
    %2796 = vmatpush.msra.mxu0 0.0
    %2797 = vmatpush.msra.mxu0 0.0
    %2798 = vmatpush.msra.mxu0 0.0
    %2799 = vmatpush.msra.mxu0 0.0
    %2800 = vmatpush.msra.mxu0 %v2780
    %2801 = vmatpush.msra.mxu0 %v2779
    %2802 = vmatpush.msra.mxu0 %v2778
    %2803 = vmatpush.msra.mxu0 %v2777
    %2804 = vmatmul.f32.gmra.mxu0 %v2786
    %v2805 = vpop.f32.mrf.mxu0
    %v2806 = vadd.f32 %v2783, %v2805
    %2807 = vdwg.mxu0
    %v2808 = vmax.f32 %v2806, 0.0
    %vm2809 = vcmask 9216
    %v2810 = vsel %vm2809, %v2808, -inf
    %2811 = vmax.xlane.f32.xlu0 %v2810
    %v2812 = vpop.xlane.xlu0 %2811
    %v2813 = vsub.f32 %v2808, %v2812
    %v2814 = vmul.f32 %v2813, 1.442695
    %v2815 = vpow.pop %v2814
    %v2816 = vsel %vm2809, %v2815, 0.0
    %2817 = vadd.xlane.f32.xlu0 %v2816
    %v2818 = vpop.xlane.xlu0 %2817
    %v2819 = vrcp.pop %v2818
    %v2820 = vmul.f32 %v2815, %v2819
    %2821 = vst.msk [vmem:[#allocation2] sm:$0x3] %vm2809, %v2820
    // Predicated region
    $region58: #{rnn_model_forward.1} parent=1 // pred_check
      _
    $region59: #{rnn_model_forward.1} parent=1 // pred_check_branch
      %2823 = sbr.rel (0) target = $region61
    $region60: #{rnn_model_forward.1} parent=1 // pred_region
      %2825 = vsyncadd [#allocation3], 0
      %s2827 = sshll.u32 [#allocation2], 4
      %s2828 = int_to_ptr.vmem [resolvable:$true] %s2827
      %s2829 = sshll.u32 %s14, 4
      %s2830 = int_to_ptr.hbm [resolvable:$true] %s2829
      %2832 = dma.vmem_to_hbm [thread:$0]  %s2828, 32, %s2830, [#allocation3]
    $region61: #{rnn_model_forward.1} parent=1 // pred_fallthru
      _
    // Predicated region
    $region62: #{rnn_model_forward.1} parent=1 // pred_check
      _
    $region63: #{rnn_model_forward.1} parent=1 // pred_check_branch
      %2834 = sbr.rel (0) target = $region65
    $region64: #{rnn_model_forward.1} parent=1 // pred_region
      %2836 = dma.done [#allocation3], 32
    $region65: #{rnn_model_forward.1} parent=1 // pred_fallthru
      _
    %2837 = vsyncpa [#allocation3], 1

</llo_original>
